<compile_context>
chip_gen: v7x
topology: tpu7x:2x2x1
jax: 0.10.0
libtpu: 0.0.40
codegen_flags: <defaults>
</compile_context>

<pallas_src>
import functools

import jax
import jax.numpy as jnp
from jax import lax
from jax.experimental import pallas as pl
from jax.experimental.pallas import tpu as pltpu

# ---------------- small synthetic config (mirrors cfg fields used) ----------
VOCAB = 512            # cfg.padded_vocab_size
HIDDEN = 64            # cfg.hidden_size
N_HEADS = 4            # cfg.num_attention_heads
HEAD_DIM = HIDDEN // N_HEADS          # 16
N_GROUPS = 2           # cfg.num_attention_groups (multi-query / GQA)
FFN_HIDDEN_RAW = 128   # cfg.ffn_hidden_size
MULTIPLE_OF = 256
FFN_HIDDEN = MULTIPLE_OF * ((FFN_HIDDEN_RAW + MULTIPLE_OF - 1) // MULTIPLE_OF)  # 256
N_LAYERS = 2           # cfg.num_layers
EPS = 1e-5             # cfg.layernorm_epsilon
SEQ = 16               # max_length (small)
BATCH = 2

QKV_DIM = HIDDEN + 2 * N_GROUPS * HEAD_DIM   # wqkv output width (128)
assert N_HEADS % N_GROUPS == 0


# ---------------------------------------------------------------------------
# Fused whole-encoder kernel: runs every transformer layer on all B*S rows.
# ---------------------------------------------------------------------------
def _encoder_kernel(x_ref, wqkv_ref, wo_ref, w1_ref, w2_ref, o_ref, o_scr,
                    *, seq_len, eps, n_heads, n_groups):
    T, H = x_ref.shape                       # T = B * S token rows
    L = wqkv_ref.shape[0]
    HD = H // n_heads
    HPG = n_heads // n_groups
    F = w2_ref.shape[1]

    # ---- layer-invariant: block-diagonal causal additive bias, computed once ----
    row = lax.broadcasted_iota(jnp.int32, (T, T), 0)
    col = lax.broadcasted_iota(jnp.int32, (T, T), 1)
    if (seq_len & (seq_len - 1)) == 0:       # power-of-two seq: cheap shifts
        sh = seq_len.bit_length() - 1
        same_batch = (row >> sh) == (col >> sh)
    else:
        same_batch = (row // seq_len) == (col // seq_len)
    allowed = same_batch & (col <= row)      # causal within each batch block
    bias = jnp.where(allowed, jnp.float32(0.0), jnp.float32(-1e30))   # [T, T] f32

    def rmsnorm(v):
        # StepVideoRMSNorm (gamma folded into the following weight rows).
        vf = v.astype(jnp.float32)
        return (vf * lax.rsqrt(jnp.mean(vf * vf, axis=-1, keepdims=True) + eps)
                ).astype(jnp.bfloat16)

    x = x_ref[...]                           # [T, H] bf16, resident across layers
    for l in range(L):
        # ---------------- attention ----------------
        nx = rmsnorm(x)                      # attention_norm (gamma folded in wqkv)
        # single lane-dense QKV projection  [T,H] @ [H,128]  (scale folded in Q cols)
        qkv = jnp.dot(nx, wqkv_ref[l],
                      preferred_element_type=jnp.float32).astype(jnp.bfloat16)
        for g in range(n_groups):
            base = H + g * 2 * HD
            k_g = qkv[:, base:base + HD]             # [T, hd]
            v_g = qkv[:, base + HD:base + 2 * HD]    # [T, hd]
            k_gT = k_g.T                             # [hd, T], once per group
            for hh in range(HPG):
                h = g * HPG + hh
                q_h = qkv[:, h * HD:(h + 1) * HD]    # [T, hd] (already scaled)
                s = jnp.dot(q_h, k_gT,
                            preferred_element_type=jnp.float32) + bias   # [T, T]
                p = jnp.exp(s - jnp.max(s, axis=-1, keepdims=True))
                denom = jnp.sum(p, axis=-1, keepdims=True)               # [T, 1]
                o_h = jnp.dot(p.astype(jnp.bfloat16), v_g,
                              preferred_element_type=jnp.float32)        # [T, hd]
                # deferred normalization of the small [T,hd] output (EUP recip)
                o_h = (o_h * pl.reciprocal(denom, approx=True)).astype(jnp.bfloat16)
                # lane placement into the assembled head output (static slice)
                o_scr[:, h * HD:(h + 1) * HD] = o_h
        # one lane-dense output projection  [T,H] @ [H,H]
        attn = jnp.dot(o_scr[...], wo_ref[l], preferred_element_type=jnp.float32)
        x = x + attn.astype(jnp.bfloat16)    # residual (bf16, matches reference)

        # ---------------- SwiGLU FFN ----------------
        nh = rmsnorm(x)                      # ffn_norm (gamma folded in w1)
        ab = jnp.dot(nh, w1_ref[l], preferred_element_type=jnp.float32)  # [T, 2F]
        a = ab[:, :F]                        # 256-lane-aligned slices (free)
        b = ab[:, F:]
        gated = (jax.nn.silu(a) * b).astype(jnp.bfloat16)                # [T, F]
        x = x + jnp.dot(gated, w2_ref[l],
                        preferred_element_type=jnp.float32).astype(jnp.bfloat16)

    o_ref[...] = x                           # full-H store


def _full_spec(shape):
    ndim = len(shape)
    return pl.BlockSpec(shape, lambda i, _n=ndim: (0,) * _n)


def step1_encoder_stack(hidden, wqkv, wo, w1, w2, *, seq_len, eps=EPS):
    """hidden: [B*S, H] bf16 -> [B*S, H] bf16. Single fused pallas_call (all layers)."""
    T, H = hidden.shape
    kern = functools.partial(_encoder_kernel, seq_len=seq_len, eps=eps,
                             n_heads=N_HEADS, n_groups=N_GROUPS)
    args = (hidden, wqkv, wo, w1, w2)
    return pl.pallas_call(
        kern,
        out_shape=jax.ShapeDtypeStruct((T, H), jnp.bfloat16),
        grid=(1,),
        in_specs=[_full_spec(a.shape) for a in args],
        out_specs=pl.BlockSpec((T, H), lambda i: (0, 0)),
        scratch_shapes=[pltpu.VMEM((T, H), jnp.bfloat16)],   # assembled head outputs
        compiler_params=pltpu.CompilerParams(dimension_semantics=("arbitrary",)),
    )(*args)


# ---------------------------------------------------------------------------
# Parameter construction / re-layout (plain-JAX glue, done once).
# ---------------------------------------------------------------------------
def init_params(key):
    """Deterministic synthetic parameters with the same shapes as Step1Model.

    nn.Linear(in, out) weight is [out, in]; we keep the pre-transposed [in, out]
    layout so every kernel matmul is y = x @ W_t (identical math to x @ W.T)."""
    keys = jax.random.split(key, 1 + 4 * N_LAYERS)
    scale = 0.02
    emb = (scale * jax.random.normal(keys[0], (VOCAB, HIDDEN))).astype(jnp.bfloat16)
    layers = []
    for l in range(N_LAYERS):
        k0, k1, k2, k3 = keys[1 + 4 * l: 1 + 4 * (l + 1)]
        wqkv_t = (scale * jax.random.normal(k0, (HIDDEN, QKV_DIM))).astype(jnp.bfloat16)
        wo_t = (scale * jax.random.normal(k1, (HIDDEN, HIDDEN))).astype(jnp.bfloat16)
        w1_t = (scale * jax.random.normal(k2, (HIDDEN, 2 * FFN_HIDDEN))).astype(jnp.bfloat16)
        w2_t = (scale * jax.random.normal(k3, (FFN_HIDDEN, HIDDEN))).astype(jnp.bfloat16)
        an_w = jnp.ones((1, HIDDEN), jnp.bfloat16)   # attention_norm RMSNorm weight
        fn_w = jnp.ones((1, HIDDEN), jnp.bfloat16)   # ffn_norm RMSNorm weight
        layers.append((wqkv_t, wo_t, w1_t, w2_t, an_w, fn_w))
    return {"embedding": emb, "layers": layers}


def prepare_stacked_params(params):
    """Fold RMSNorm gammas into the following matmuls, fold the softmax scale into
    the Q columns of wqkv, and stack all layers along a leading dim so a single
    kernel holds the whole stack.  Weights stay lane-dense (no per-head splits)."""
    q_scale = jnp.float32(HEAD_DIM ** (-0.5))
    col_scale = jnp.concatenate(
        [jnp.full((HIDDEN,), q_scale, jnp.float32),          # Q columns get the scale
         jnp.ones((QKV_DIM - HIDDEN,), jnp.float32)])        # K/V columns untouched
    wqkv_l, wo_l, w1_l, w2_l = [], [], [], []
    for (wqkv_t, wo_t, w1_t, w2_t, an_w, fn_w) in params["layers"]:
        g_att = an_w.reshape(HIDDEN, 1).astype(jnp.float32)
        g_ffn = fn_w.reshape(HIDDEN, 1).astype(jnp.float32)
        # diag(gamma) @ W_t  (exact: per-input-channel scale commutes into rows)
        wqkv_f = wqkv_t.astype(jnp.float32) * g_att * col_scale[None, :]
        w1_f = w1_t.astype(jnp.float32) * g_ffn
        wqkv_l.append(wqkv_f.astype(jnp.bfloat16))            # [H, 128]
        wo_l.append(wo_t)                                      # [H, H]
        w1_l.append(w1_f.astype(jnp.bfloat16))                 # [H, 2F]
        w2_l.append(w2_t)                                      # [F, H]
    return (jnp.stack(wqkv_l), jnp.stack(wo_l), jnp.stack(w1_l), jnp.stack(w2_l))


@jax.jit
def step1_text_encoder_forward(input_ids, attention_mask, emb, wqkv, wo, w1, w2):
    """Mirrors STEP1TextEncoder.forward: returns (y, y_mask), y: [B, S, H] bf16."""
    B, S = input_ids.shape
    # Embedding lookup (glue; dropout layers are no-ops in eval mode).
    h = jnp.take(emb, input_ids.reshape(B * S), axis=0).astype(jnp.bfloat16)  # [B*S, H]
    y = step1_encoder_stack(h, wqkv, wo, w1, w2, seq_len=S)
    # (PyTorch keeps [S,B,H] internally and transposes back at the end; equivalent.)
    return y.reshape(B, S, emb.shape[1]), attention_mask


if __name__ == "__main__":
    key = jax.random.PRNGKey(0)
    k_ids, k_params = jax.random.split(key)

    # Synthetic "tokenized prompts": BOS=1, random body, EOS=2, PAD=2 + mask.
    # TODO(synk): the sentencepiece StepChatTokenizer has no Pallas/JAX equivalent;
    # token ids are synthesized directly.
    body = jax.random.randint(k_ids, (BATCH, SEQ), minval=3, maxval=VOCAB, dtype=jnp.int32)
    valid_lens = jnp.array([SEQ, SEQ // 2], dtype=jnp.int32)
    pos = jnp.arange(SEQ, dtype=jnp.int32)[None, :]
    input_ids = jnp.where(pos == 0, 1, body)                               # BOS
    input_ids = jnp.where(pos == (valid_lens[:, None] - 1), 2, input_ids)  # EOS
    input_ids = jnp.where(pos >= valid_lens[:, None], 2, input_ids)        # PAD
    attention_mask = (pos < valid_lens[:, None]).astype(jnp.int32)         # [B, S]

    params = init_params(k_params)
    stacked = prepare_stacked_params(params)

    y, y_mask = step1_text_encoder_forward(input_ids, attention_mask,
                                           params["embedding"], *stacked)
    jax.block_until_ready(y)
    jax.block_until_ready(y_mask)
    assert y.shape == (BATCH, SEQ, HIDDEN) and y.dtype == jnp.bfloat16
    assert y_mask.shape == (BATCH, SEQ)
    print("KERNEL_OK")
</pallas_src>

<mosaic_0001>
module attributes {stable_mosaic.version = 11 : i64} {
  func.func @_encoder_kernel(%arg0: i32, %arg1: memref<32x64xbf16, #tpu.memory_space<vmem>>, %arg2: memref<2x64x128xbf16, #tpu.memory_space<vmem>>, %arg3: memref<2x64x64xbf16, #tpu.memory_space<vmem>>, %arg4: memref<2x64x512xbf16, #tpu.memory_space<vmem>>, %arg5: memref<2x256x64xbf16, #tpu.memory_space<vmem>>, %arg6: memref<32x64xbf16, #tpu.memory_space<vmem>>, %arg7: memref<32x64xbf16, #tpu.memory_space<vmem>>) attributes {dimension_semantics = [#tpu.dimension_semantics<arbitrary>], iteration_bounds = array<i64: 1>, scalar_prefetch = 0 : i64, scratch_operands = 1 : i64, tpu.core_type = #tpu.core_type<tc>, window_params = [{pipeline_mode = #tpu.pipeline_mode<synchronous>, transform_indices = @transform_0, window_bounds = array<i64: 32, 64>}, {pipeline_mode = #tpu.pipeline_mode<synchronous>, transform_indices = @transform_1, window_bounds = array<i64: 2, 64, 128>}, {pipeline_mode = #tpu.pipeline_mode<synchronous>, transform_indices = @transform_2, window_bounds = array<i64: 2, 64, 64>}, {pipeline_mode = #tpu.pipeline_mode<synchronous>, transform_indices = @transform_3, window_bounds = array<i64: 2, 64, 512>}, {pipeline_mode = #tpu.pipeline_mode<synchronous>, transform_indices = @transform_4, window_bounds = array<i64: 2, 256, 64>}, {pipeline_mode = #tpu.pipeline_mode<synchronous>, transform_indices = @transform_5, window_bounds = array<i64: 32, 64>}]} {
    %0 = tpu.iota {dimensions = array<i32: 0>} : vector<32x32xi32>
    %1 = tpu.iota {dimensions = array<i32: 1>} : vector<32x32xi32>
    %c4_i32 = arith.constant 4 : i32
    %2 = vector.broadcast %c4_i32 : i32 to vector<32x32xi32>
    %3 = arith.shrsi %0, %2 : vector<32x32xi32>
    %c4_i32_0 = arith.constant 4 : i32
    %4 = vector.broadcast %c4_i32_0 : i32 to vector<32x32xi32>
    %5 = arith.shrsi %1, %4 : vector<32x32xi32>
    %6 = arith.cmpi eq, %3, %5 : vector<32x32xi32>
    %7 = arith.cmpi sle, %1, %0 : vector<32x32xi32>
    %8 = arith.andi %6, %7 : vector<32x32xi1>
    %cst = arith.constant 0.000000e+00 : f32
    %cst_1 = arith.constant -1.000000e+30 : f32
    %9 = vector.broadcast %cst : f32 to vector<32x32xf32>
    %10 = vector.broadcast %cst_1 : f32 to vector<32x32xf32>
    %11 = arith.select %8, %9, %10 : vector<32x32xi1>, vector<32x32xf32>
    %c0 = arith.constant 0 : index
    %c0_2 = arith.constant 0 : index
    %12 = vector.load %arg1[%c0, %c0_2] : memref<32x64xbf16, #tpu.memory_space<vmem>>, vector<32x64xbf16>
    %13 = arith.extf %12 : vector<32x64xbf16> to vector<32x64xf32>
    %14 = arith.mulf %13, %13 : vector<32x64xf32>
    %cst_3 = arith.constant dense<0.000000e+00> : vector<32xf32>
    %15 = vector.multi_reduction <add>, %14, %cst_3 [1] : vector<32x64xf32> to vector<32xf32>
    %16 = vector.shape_cast %15 : vector<32xf32> to vector<32x1xf32>
    %cst_4 = arith.constant 6.400000e+01 : f32
    %17 = vector.broadcast %cst_4 : f32 to vector<32x1xf32>
    %18 = arith.divf %16, %17 : vector<32x1xf32>
    %cst_5 = arith.constant 9.99999974E-6 : f32
    %19 = vector.broadcast %cst_5 : f32 to vector<32x1xf32>
    %20 = arith.addf %18, %19 : vector<32x1xf32>
    %21 = math.rsqrt %20 : vector<32x1xf32>
    %22 = vector.broadcast %21 : vector<32x1xf32> to vector<32x64xf32>
    %23 = arith.mulf %13, %22 : vector<32x64xf32>
    %24 = arith.truncf %23 : vector<32x64xf32> to vector<32x64xbf16>
    %c0_6 = arith.constant 0 : index
    %c0_7 = arith.constant 0 : index
    %c0_8 = arith.constant 0 : index
    %25 = vector.load %arg2[%c0_6, %c0_7, %c0_8] : memref<2x64x128xbf16, #tpu.memory_space<vmem>>, vector<1x64x128xbf16>
    %26 = vector.shape_cast %25 : vector<1x64x128xbf16> to vector<64x128xbf16>
    %cst_9 = arith.constant dense<0.000000e+00> : vector<32x128xf32>
    %27 = tpu.matmul %24, %26, %cst_9 {dimension_numbers = #tpu.dot_dimension_numbers<[1], [0], [0], [1], [0, 0, 1, 1], [], []>} : vector<32x64xbf16>, vector<64x128xbf16>, vector<32x128xf32> -> vector<32x128xf32>
    %28 = arith.truncf %27 : vector<32x128xf32> to vector<32x128xbf16>
    %29 = vector.extract_strided_slice %28 {offsets = [0, 64], sizes = [32, 16], strides = [1, 1]} : vector<32x128xbf16> to vector<32x16xbf16>
    %30 = vector.extract_strided_slice %28 {offsets = [0, 80], sizes = [32, 16], strides = [1, 1]} : vector<32x128xbf16> to vector<32x16xbf16>
    %31 = tpu.transpose %29, [1, 0] : vector<32x16xbf16> -> vector<16x32xbf16>
    %32 = vector.extract_strided_slice %28 {offsets = [0, 0], sizes = [32, 16], strides = [1, 1]} : vector<32x128xbf16> to vector<32x16xbf16>
    %cst_10 = arith.constant dense<0.000000e+00> : vector<32x32xf32>
    %33 = tpu.matmul %32, %31, %cst_10 {dimension_numbers = #tpu.dot_dimension_numbers<[1], [0], [0], [1], [0, 0, 1, 1], [], []>} : vector<32x16xbf16>, vector<16x32xbf16>, vector<32x32xf32> -> vector<32x32xf32>
    %34 = arith.addf %33, %11 : vector<32x32xf32>
    %cst_11 = arith.constant dense<0xFF800000> : vector<32xf32>
    %35 = vector.multi_reduction <maximumf>, %34, %cst_11 [1] : vector<32x32xf32> to vector<32xf32>
    %36 = vector.shape_cast %35 : vector<32xf32> to vector<32x1xf32>
    %37 = vector.broadcast %36 : vector<32x1xf32> to vector<32x32xf32>
    %38 = arith.subf %34, %37 : vector<32x32xf32>
    %39 = math.exp %38 : vector<32x32xf32>
    %cst_12 = arith.constant dense<0.000000e+00> : vector<32xf32>
    %40 = vector.multi_reduction <add>, %39, %cst_12 [1] : vector<32x32xf32> to vector<32xf32>
    %41 = vector.shape_cast %40 : vector<32xf32> to vector<32x1xf32>
    %42 = arith.truncf %39 : vector<32x32xf32> to vector<32x32xbf16>
    %cst_13 = arith.constant dense<0.000000e+00> : vector<32x16xf32>
    %43 = tpu.matmul %42, %30, %cst_13 {dimension_numbers = #tpu.dot_dimension_numbers<[1], [0], [0], [1], [0, 0, 1, 1], [], []>} : vector<32x32xbf16>, vector<32x16xbf16>, vector<32x16xf32> -> vector<32x16xf32>
    %44 = tpu.reciprocal %41 {approx = true} : vector<32x1xf32> -> vector<32x1xf32>
    %45 = vector.broadcast %44 : vector<32x1xf32> to vector<32x16xf32>
    %46 = arith.mulf %43, %45 : vector<32x16xf32>
    %47 = arith.truncf %46 : vector<32x16xf32> to vector<32x16xbf16>
    %c0_14 = arith.constant 0 : index
    %c0_15 = arith.constant 0 : index
    %48 = vector.load %arg7[%c0_14, %c0_15] : memref<32x64xbf16, #tpu.memory_space<vmem>>, vector<32x16xbf16>
    tpu.vector_store %arg7[%c0_14, %c0_15], %47 {strides = array<i32>} : memref<32x64xbf16, #tpu.memory_space<vmem>>, vector<32x16xbf16>,
    %49 = vector.extract_strided_slice %28 {offsets = [0, 16], sizes = [32, 16], strides = [1, 1]} : vector<32x128xbf16> to vector<32x16xbf16>
    %cst_16 = arith.constant dense<0.000000e+00> : vector<32x32xf32>
    %50 = tpu.matmul %49, %31, %cst_16 {dimension_numbers = #tpu.dot_dimension_numbers<[1], [0], [0], [1], [0, 0, 1, 1], [], []>} : vector<32x16xbf16>, vector<16x32xbf16>, vector<32x32xf32> -> vector<32x32xf32>
    %51 = arith.addf %50, %11 : vector<32x32xf32>
    %cst_17 = arith.constant dense<0xFF800000> : vector<32xf32>
    %52 = vector.multi_reduction <maximumf>, %51, %cst_17 [1] : vector<32x32xf32> to vector<32xf32>
    %53 = vector.shape_cast %52 : vector<32xf32> to vector<32x1xf32>
    %54 = vector.broadcast %53 : vector<32x1xf32> to vector<32x32xf32>
    %55 = arith.subf %51, %54 : vector<32x32xf32>
    %56 = math.exp %55 : vector<32x32xf32>
    %cst_18 = arith.constant dense<0.000000e+00> : vector<32xf32>
    %57 = vector.multi_reduction <add>, %56, %cst_18 [1] : vector<32x32xf32> to vector<32xf32>
    %58 = vector.shape_cast %57 : vector<32xf32> to vector<32x1xf32>
    %59 = arith.truncf %56 : vector<32x32xf32> to vector<32x32xbf16>
    %cst_19 = arith.constant dense<0.000000e+00> : vector<32x16xf32>
    %60 = tpu.matmul %59, %30, %cst_19 {dimension_numbers = #tpu.dot_dimension_numbers<[1], [0], [0], [1], [0, 0, 1, 1], [], []>} : vector<32x32xbf16>, vector<32x16xbf16>, vector<32x16xf32> -> vector<32x16xf32>
    %61 = tpu.reciprocal %58 {approx = true} : vector<32x1xf32> -> vector<32x1xf32>
    %62 = vector.broadcast %61 : vector<32x1xf32> to vector<32x16xf32>
    %63 = arith.mulf %60, %62 : vector<32x16xf32>
    %64 = arith.truncf %63 : vector<32x16xf32> to vector<32x16xbf16>
    %c0_20 = arith.constant 0 : index
    %c16 = arith.constant 16 : index
    %65 = vector.load %arg7[%c0_20, %c16] : memref<32x64xbf16, #tpu.memory_space<vmem>>, vector<32x16xbf16>
    tpu.vector_store %arg7[%c0_20, %c16], %64 {strides = array<i32>} : memref<32x64xbf16, #tpu.memory_space<vmem>>, vector<32x16xbf16>,
    %66 = vector.extract_strided_slice %28 {offsets = [0, 96], sizes = [32, 16], strides = [1, 1]} : vector<32x128xbf16> to vector<32x16xbf16>
    %67 = vector.extract_strided_slice %28 {offsets = [0, 112], sizes = [32, 16], strides = [1, 1]} : vector<32x128xbf16> to vector<32x16xbf16>
    %68 = tpu.transpose %66, [1, 0] : vector<32x16xbf16> -> vector<16x32xbf16>
    %69 = vector.extract_strided_slice %28 {offsets = [0, 32], sizes = [32, 16], strides = [1, 1]} : vector<32x128xbf16> to vector<32x16xbf16>
    %cst_21 = arith.constant dense<0.000000e+00> : vector<32x32xf32>
    %70 = tpu.matmul %69, %68, %cst_21 {dimension_numbers = #tpu.dot_dimension_numbers<[1], [0], [0], [1], [0, 0, 1, 1], [], []>} : vector<32x16xbf16>, vector<16x32xbf16>, vector<32x32xf32> -> vector<32x32xf32>
    %71 = arith.addf %70, %11 : vector<32x32xf32>
    %cst_22 = arith.constant dense<0xFF800000> : vector<32xf32>
    %72 = vector.multi_reduction <maximumf>, %71, %cst_22 [1] : vector<32x32xf32> to vector<32xf32>
    %73 = vector.shape_cast %72 : vector<32xf32> to vector<32x1xf32>
    %74 = vector.broadcast %73 : vector<32x1xf32> to vector<32x32xf32>
    %75 = arith.subf %71, %74 : vector<32x32xf32>
    %76 = math.exp %75 : vector<32x32xf32>
    %cst_23 = arith.constant dense<0.000000e+00> : vector<32xf32>
    %77 = vector.multi_reduction <add>, %76, %cst_23 [1] : vector<32x32xf32> to vector<32xf32>
    %78 = vector.shape_cast %77 : vector<32xf32> to vector<32x1xf32>
    %79 = arith.truncf %76 : vector<32x32xf32> to vector<32x32xbf16>
    %cst_24 = arith.constant dense<0.000000e+00> : vector<32x16xf32>
    %80 = tpu.matmul %79, %67, %cst_24 {dimension_numbers = #tpu.dot_dimension_numbers<[1], [0], [0], [1], [0, 0, 1, 1], [], []>} : vector<32x32xbf16>, vector<32x16xbf16>, vector<32x16xf32> -> vector<32x16xf32>
    %81 = tpu.reciprocal %78 {approx = true} : vector<32x1xf32> -> vector<32x1xf32>
    %82 = vector.broadcast %81 : vector<32x1xf32> to vector<32x16xf32>
    %83 = arith.mulf %80, %82 : vector<32x16xf32>
    %84 = arith.truncf %83 : vector<32x16xf32> to vector<32x16xbf16>
    %c0_25 = arith.constant 0 : index
    %c32 = arith.constant 32 : index
    %85 = vector.load %arg7[%c0_25, %c32] : memref<32x64xbf16, #tpu.memory_space<vmem>>, vector<32x16xbf16>
    tpu.vector_store %arg7[%c0_25, %c32], %84 {strides = array<i32>} : memref<32x64xbf16, #tpu.memory_space<vmem>>, vector<32x16xbf16>,
    %86 = vector.extract_strided_slice %28 {offsets = [0, 48], sizes = [32, 16], strides = [1, 1]} : vector<32x128xbf16> to vector<32x16xbf16>
    %cst_26 = arith.constant dense<0.000000e+00> : vector<32x32xf32>
    %87 = tpu.matmul %86, %68, %cst_26 {dimension_numbers = #tpu.dot_dimension_numbers<[1], [0], [0], [1], [0, 0, 1, 1], [], []>} : vector<32x16xbf16>, vector<16x32xbf16>, vector<32x32xf32> -> vector<32x32xf32>
    %88 = arith.addf %87, %11 : vector<32x32xf32>
    %cst_27 = arith.constant dense<0xFF800000> : vector<32xf32>
    %89 = vector.multi_reduction <maximumf>, %88, %cst_27 [1] : vector<32x32xf32> to vector<32xf32>
    %90 = vector.shape_cast %89 : vector<32xf32> to vector<32x1xf32>
    %91 = vector.broadcast %90 : vector<32x1xf32> to vector<32x32xf32>
    %92 = arith.subf %88, %91 : vector<32x32xf32>
    %93 = math.exp %92 : vector<32x32xf32>
    %cst_28 = arith.constant dense<0.000000e+00> : vector<32xf32>
    %94 = vector.multi_reduction <add>, %93, %cst_28 [1] : vector<32x32xf32> to vector<32xf32>
    %95 = vector.shape_cast %94 : vector<32xf32> to vector<32x1xf32>
    %96 = arith.truncf %93 : vector<32x32xf32> to vector<32x32xbf16>
    %cst_29 = arith.constant dense<0.000000e+00> : vector<32x16xf32>
    %97 = tpu.matmul %96, %67, %cst_29 {dimension_numbers = #tpu.dot_dimension_numbers<[1], [0], [0], [1], [0, 0, 1, 1], [], []>} : vector<32x32xbf16>, vector<32x16xbf16>, vector<32x16xf32> -> vector<32x16xf32>
    %98 = tpu.reciprocal %95 {approx = true} : vector<32x1xf32> -> vector<32x1xf32>
    %99 = vector.broadcast %98 : vector<32x1xf32> to vector<32x16xf32>
    %100 = arith.mulf %97, %99 : vector<32x16xf32>
    %101 = arith.truncf %100 : vector<32x16xf32> to vector<32x16xbf16>
    %c0_30 = arith.constant 0 : index
    %c48 = arith.constant 48 : index
    %102 = vector.load %arg7[%c0_30, %c48] : memref<32x64xbf16, #tpu.memory_space<vmem>>, vector<32x16xbf16>
    tpu.vector_store %arg7[%c0_30, %c48], %101 {strides = array<i32>} : memref<32x64xbf16, #tpu.memory_space<vmem>>, vector<32x16xbf16>,
    %c0_31 = arith.constant 0 : index
    %c0_32 = arith.constant 0 : index
    %103 = vector.load %arg7[%c0_31, %c0_32] : memref<32x64xbf16, #tpu.memory_space<vmem>>, vector<32x64xbf16>
    %c0_33 = arith.constant 0 : index
    %c0_34 = arith.constant 0 : index
    %c0_35 = arith.constant 0 : index
    %104 = vector.load %arg3[%c0_33, %c0_34, %c0_35] : memref<2x64x64xbf16, #tpu.memory_space<vmem>>, vector<1x64x64xbf16>
    %105 = vector.shape_cast %104 : vector<1x64x64xbf16> to vector<64x64xbf16>
    %cst_36 = arith.constant dense<0.000000e+00> : vector<32x64xf32>
    %106 = tpu.matmul %103, %105, %cst_36 {dimension_numbers = #tpu.dot_dimension_numbers<[1], [0], [0], [1], [0, 0, 1, 1], [], []>} : vector<32x64xbf16>, vector<64x64xbf16>, vector<32x64xf32> -> vector<32x64xf32>
    %107 = arith.truncf %106 : vector<32x64xf32> to vector<32x64xbf16>
    %108 = arith.addf %12, %107 : vector<32x64xbf16>
    %109 = arith.extf %108 : vector<32x64xbf16> to vector<32x64xf32>
    %110 = arith.mulf %109, %109 : vector<32x64xf32>
    %cst_37 = arith.constant dense<0.000000e+00> : vector<32xf32>
    %111 = vector.multi_reduction <add>, %110, %cst_37 [1] : vector<32x64xf32> to vector<32xf32>
    %112 = vector.shape_cast %111 : vector<32xf32> to vector<32x1xf32>
    %cst_38 = arith.constant 6.400000e+01 : f32
    %113 = vector.broadcast %cst_38 : f32 to vector<32x1xf32>
    %114 = arith.divf %112, %113 : vector<32x1xf32>
    %cst_39 = arith.constant 9.99999974E-6 : f32
    %115 = vector.broadcast %cst_39 : f32 to vector<32x1xf32>
    %116 = arith.addf %114, %115 : vector<32x1xf32>
    %117 = math.rsqrt %116 : vector<32x1xf32>
    %118 = vector.broadcast %117 : vector<32x1xf32> to vector<32x64xf32>
    %119 = arith.mulf %109, %118 : vector<32x64xf32>
    %120 = arith.truncf %119 : vector<32x64xf32> to vector<32x64xbf16>
    %c0_40 = arith.constant 0 : index
    %c0_41 = arith.constant 0 : index
    %c0_42 = arith.constant 0 : index
    %121 = vector.load %arg4[%c0_40, %c0_41, %c0_42] : memref<2x64x512xbf16, #tpu.memory_space<vmem>>, vector<1x64x512xbf16>
    %122 = vector.shape_cast %121 : vector<1x64x512xbf16> to vector<64x512xbf16>
    %cst_43 = arith.constant dense<0.000000e+00> : vector<32x512xf32>
    %123 = tpu.matmul %120, %122, %cst_43 {dimension_numbers = #tpu.dot_dimension_numbers<[1], [0], [0], [1], [0, 0, 1, 1], [], []>} : vector<32x64xbf16>, vector<64x512xbf16>, vector<32x512xf32> -> vector<32x512xf32>
    %124 = vector.extract_strided_slice %123 {offsets = [0, 0], sizes = [32, 256], strides = [1, 1]} : vector<32x512xf32> to vector<32x256xf32>
    %125 = vector.extract_strided_slice %123 {offsets = [0, 256], sizes = [32, 256], strides = [1, 1]} : vector<32x512xf32> to vector<32x256xf32>
    %126 = arith.negf %124 : vector<32x256xf32>
    %127 = math.exp %126 : vector<32x256xf32>
    %cst_44 = arith.constant 1.000000e+00 : f32
    %128 = vector.broadcast %cst_44 : f32 to vector<32x256xf32>
    %129 = arith.addf %128, %127 : vector<32x256xf32>
    %130 = arith.divf %128, %129 : vector<32x256xf32>
    %131 = arith.mulf %124, %130 : vector<32x256xf32>
    %132 = arith.mulf %131, %125 : vector<32x256xf32>
    %133 = arith.truncf %132 : vector<32x256xf32> to vector<32x256xbf16>
    %c0_45 = arith.constant 0 : index
    %c0_46 = arith.constant 0 : index
    %c0_47 = arith.constant 0 : index
    %134 = vector.load %arg5[%c0_45, %c0_46, %c0_47] : memref<2x256x64xbf16, #tpu.memory_space<vmem>>, vector<1x256x64xbf16>
    %135 = vector.shape_cast %134 : vector<1x256x64xbf16> to vector<256x64xbf16>
    %cst_48 = arith.constant dense<0.000000e+00> : vector<32x64xf32>
    %136 = tpu.matmul %133, %135, %cst_48 {dimension_numbers = #tpu.dot_dimension_numbers<[1], [0], [0], [1], [0, 0, 1, 1], [], []>} : vector<32x256xbf16>, vector<256x64xbf16>, vector<32x64xf32> -> vector<32x64xf32>
    %137 = arith.truncf %136 : vector<32x64xf32> to vector<32x64xbf16>
    %138 = arith.addf %108, %137 : vector<32x64xbf16>
    %139 = arith.extf %138 : vector<32x64xbf16> to vector<32x64xf32>
    %140 = arith.mulf %139, %139 : vector<32x64xf32>
    %cst_49 = arith.constant dense<0.000000e+00> : vector<32xf32>
    %141 = vector.multi_reduction <add>, %140, %cst_49 [1] : vector<32x64xf32> to vector<32xf32>
    %142 = vector.shape_cast %141 : vector<32xf32> to vector<32x1xf32>
    %cst_50 = arith.constant 6.400000e+01 : f32
    %143 = vector.broadcast %cst_50 : f32 to vector<32x1xf32>
    %144 = arith.divf %142, %143 : vector<32x1xf32>
    %cst_51 = arith.constant 9.99999974E-6 : f32
    %145 = vector.broadcast %cst_51 : f32 to vector<32x1xf32>
    %146 = arith.addf %144, %145 : vector<32x1xf32>
    %147 = math.rsqrt %146 : vector<32x1xf32>
    %148 = vector.broadcast %147 : vector<32x1xf32> to vector<32x64xf32>
    %149 = arith.mulf %139, %148 : vector<32x64xf32>
    %150 = arith.truncf %149 : vector<32x64xf32> to vector<32x64xbf16>
    %c1 = arith.constant 1 : index
    %c0_52 = arith.constant 0 : index
    %c0_53 = arith.constant 0 : index
    %151 = vector.load %arg2[%c1, %c0_52, %c0_53] : memref<2x64x128xbf16, #tpu.memory_space<vmem>>, vector<1x64x128xbf16>
    %152 = vector.shape_cast %151 : vector<1x64x128xbf16> to vector<64x128xbf16>
    %cst_54 = arith.constant dense<0.000000e+00> : vector<32x128xf32>
    %153 = tpu.matmul %150, %152, %cst_54 {dimension_numbers = #tpu.dot_dimension_numbers<[1], [0], [0], [1], [0, 0, 1, 1], [], []>} : vector<32x64xbf16>, vector<64x128xbf16>, vector<32x128xf32> -> vector<32x128xf32>
    %154 = arith.truncf %153 : vector<32x128xf32> to vector<32x128xbf16>
    %155 = vector.extract_strided_slice %154 {offsets = [0, 64], sizes = [32, 16], strides = [1, 1]} : vector<32x128xbf16> to vector<32x16xbf16>
    %156 = vector.extract_strided_slice %154 {offsets = [0, 80], sizes = [32, 16], strides = [1, 1]} : vector<32x128xbf16> to vector<32x16xbf16>
    %157 = tpu.transpose %155, [1, 0] : vector<32x16xbf16> -> vector<16x32xbf16>
    %158 = vector.extract_strided_slice %154 {offsets = [0, 0], sizes = [32, 16], strides = [1, 1]} : vector<32x128xbf16> to vector<32x16xbf16>
    %cst_55 = arith.constant dense<0.000000e+00> : vector<32x32xf32>
    %159 = tpu.matmul %158, %157, %cst_55 {dimension_numbers = #tpu.dot_dimension_numbers<[1], [0], [0], [1], [0, 0, 1, 1], [], []>} : vector<32x16xbf16>, vector<16x32xbf16>, vector<32x32xf32> -> vector<32x32xf32>
    %160 = arith.addf %159, %11 : vector<32x32xf32>
    %cst_56 = arith.constant dense<0xFF800000> : vector<32xf32>
    %161 = vector.multi_reduction <maximumf>, %160, %cst_56 [1] : vector<32x32xf32> to vector<32xf32>
    %162 = vector.shape_cast %161 : vector<32xf32> to vector<32x1xf32>
    %163 = vector.broadcast %162 : vector<32x1xf32> to vector<32x32xf32>
    %164 = arith.subf %160, %163 : vector<32x32xf32>
    %165 = math.exp %164 : vector<32x32xf32>
    %cst_57 = arith.constant dense<0.000000e+00> : vector<32xf32>
    %166 = vector.multi_reduction <add>, %165, %cst_57 [1] : vector<32x32xf32> to vector<32xf32>
    %167 = vector.shape_cast %166 : vector<32xf32> to vector<32x1xf32>
    %168 = arith.truncf %165 : vector<32x32xf32> to vector<32x32xbf16>
    %cst_58 = arith.constant dense<0.000000e+00> : vector<32x16xf32>
    %169 = tpu.matmul %168, %156, %cst_58 {dimension_numbers = #tpu.dot_dimension_numbers<[1], [0], [0], [1], [0, 0, 1, 1], [], []>} : vector<32x32xbf16>, vector<32x16xbf16>, vector<32x16xf32> -> vector<32x16xf32>
    %170 = tpu.reciprocal %167 {approx = true} : vector<32x1xf32> -> vector<32x1xf32>
    %171 = vector.broadcast %170 : vector<32x1xf32> to vector<32x16xf32>
    %172 = arith.mulf %169, %171 : vector<32x16xf32>
    %173 = arith.truncf %172 : vector<32x16xf32> to vector<32x16xbf16>
    %c0_59 = arith.constant 0 : index
    %c0_60 = arith.constant 0 : index
    %174 = vector.load %arg7[%c0_59, %c0_60] : memref<32x64xbf16, #tpu.memory_space<vmem>>, vector<32x16xbf16>
    tpu.vector_store %arg7[%c0_59, %c0_60], %173 {strides = array<i32>} : memref<32x64xbf16, #tpu.memory_space<vmem>>, vector<32x16xbf16>,
    %175 = vector.extract_strided_slice %154 {offsets = [0, 16], sizes = [32, 16], strides = [1, 1]} : vector<32x128xbf16> to vector<32x16xbf16>
    %cst_61 = arith.constant dense<0.000000e+00> : vector<32x32xf32>
    %176 = tpu.matmul %175, %157, %cst_61 {dimension_numbers = #tpu.dot_dimension_numbers<[1], [0], [0], [1], [0, 0, 1, 1], [], []>} : vector<32x16xbf16>, vector<16x32xbf16>, vector<32x32xf32> -> vector<32x32xf32>
    %177 = arith.addf %176, %11 : vector<32x32xf32>
    %cst_62 = arith.constant dense<0xFF800000> : vector<32xf32>
    %178 = vector.multi_reduction <maximumf>, %177, %cst_62 [1] : vector<32x32xf32> to vector<32xf32>
    %179 = vector.shape_cast %178 : vector<32xf32> to vector<32x1xf32>
    %180 = vector.broadcast %179 : vector<32x1xf32> to vector<32x32xf32>
    %181 = arith.subf %177, %180 : vector<32x32xf32>
    %182 = math.exp %181 : vector<32x32xf32>
    %cst_63 = arith.constant dense<0.000000e+00> : vector<32xf32>
    %183 = vector.multi_reduction <add>, %182, %cst_63 [1] : vector<32x32xf32> to vector<32xf32>
    %184 = vector.shape_cast %183 : vector<32xf32> to vector<32x1xf32>
    %185 = arith.truncf %182 : vector<32x32xf32> to vector<32x32xbf16>
    %cst_64 = arith.constant dense<0.000000e+00> : vector<32x16xf32>
    %186 = tpu.matmul %185, %156, %cst_64 {dimension_numbers = #tpu.dot_dimension_numbers<[1], [0], [0], [1], [0, 0, 1, 1], [], []>} : vector<32x32xbf16>, vector<32x16xbf16>, vector<32x16xf32> -> vector<32x16xf32>
    %187 = tpu.reciprocal %184 {approx = true} : vector<32x1xf32> -> vector<32x1xf32>
    %188 = vector.broadcast %187 : vector<32x1xf32> to vector<32x16xf32>
    %189 = arith.mulf %186, %188 : vector<32x16xf32>
    %190 = arith.truncf %189 : vector<32x16xf32> to vector<32x16xbf16>
    %c0_65 = arith.constant 0 : index
    %c16_66 = arith.constant 16 : index
    %191 = vector.load %arg7[%c0_65, %c16_66] : memref<32x64xbf16, #tpu.memory_space<vmem>>, vector<32x16xbf16>
    tpu.vector_store %arg7[%c0_65, %c16_66], %190 {strides = array<i32>} : memref<32x64xbf16, #tpu.memory_space<vmem>>, vector<32x16xbf16>,
    %192 = vector.extract_strided_slice %154 {offsets = [0, 96], sizes = [32, 16], strides = [1, 1]} : vector<32x128xbf16> to vector<32x16xbf16>
    %193 = vector.extract_strided_slice %154 {offsets = [0, 112], sizes = [32, 16], strides = [1, 1]} : vector<32x128xbf16> to vector<32x16xbf16>
    %194 = tpu.transpose %192, [1, 0] : vector<32x16xbf16> -> vector<16x32xbf16>
    %195 = vector.extract_strided_slice %154 {offsets = [0, 32], sizes = [32, 16], strides = [1, 1]} : vector<32x128xbf16> to vector<32x16xbf16>
    %cst_67 = arith.constant dense<0.000000e+00> : vector<32x32xf32>
    %196 = tpu.matmul %195, %194, %cst_67 {dimension_numbers = #tpu.dot_dimension_numbers<[1], [0], [0], [1], [0, 0, 1, 1], [], []>} : vector<32x16xbf16>, vector<16x32xbf16>, vector<32x32xf32> -> vector<32x32xf32>
    %197 = arith.addf %196, %11 : vector<32x32xf32>
    %cst_68 = arith.constant dense<0xFF800000> : vector<32xf32>
    %198 = vector.multi_reduction <maximumf>, %197, %cst_68 [1] : vector<32x32xf32> to vector<32xf32>
    %199 = vector.shape_cast %198 : vector<32xf32> to vector<32x1xf32>
    %200 = vector.broadcast %199 : vector<32x1xf32> to vector<32x32xf32>
    %201 = arith.subf %197, %200 : vector<32x32xf32>
    %202 = math.exp %201 : vector<32x32xf32>
    %cst_69 = arith.constant dense<0.000000e+00> : vector<32xf32>
    %203 = vector.multi_reduction <add>, %202, %cst_69 [1] : vector<32x32xf32> to vector<32xf32>
    %204 = vector.shape_cast %203 : vector<32xf32> to vector<32x1xf32>
    %205 = arith.truncf %202 : vector<32x32xf32> to vector<32x32xbf16>
    %cst_70 = arith.constant dense<0.000000e+00> : vector<32x16xf32>
    %206 = tpu.matmul %205, %193, %cst_70 {dimension_numbers = #tpu.dot_dimension_numbers<[1], [0], [0], [1], [0, 0, 1, 1], [], []>} : vector<32x32xbf16>, vector<32x16xbf16>, vector<32x16xf32> -> vector<32x16xf32>
    %207 = tpu.reciprocal %204 {approx = true} : vector<32x1xf32> -> vector<32x1xf32>
    %208 = vector.broadcast %207 : vector<32x1xf32> to vector<32x16xf32>
    %209 = arith.mulf %206, %208 : vector<32x16xf32>
    %210 = arith.truncf %209 : vector<32x16xf32> to vector<32x16xbf16>
    %c0_71 = arith.constant 0 : index
    %c32_72 = arith.constant 32 : index
    %211 = vector.load %arg7[%c0_71, %c32_72] : memref<32x64xbf16, #tpu.memory_space<vmem>>, vector<32x16xbf16>
    tpu.vector_store %arg7[%c0_71, %c32_72], %210 {strides = array<i32>} : memref<32x64xbf16, #tpu.memory_space<vmem>>, vector<32x16xbf16>,
    %212 = vector.extract_strided_slice %154 {offsets = [0, 48], sizes = [32, 16], strides = [1, 1]} : vector<32x128xbf16> to vector<32x16xbf16>
    %cst_73 = arith.constant dense<0.000000e+00> : vector<32x32xf32>
    %213 = tpu.matmul %212, %194, %cst_73 {dimension_numbers = #tpu.dot_dimension_numbers<[1], [0], [0], [1], [0, 0, 1, 1], [], []>} : vector<32x16xbf16>, vector<16x32xbf16>, vector<32x32xf32> -> vector<32x32xf32>
    %214 = arith.addf %213, %11 : vector<32x32xf32>
    %cst_74 = arith.constant dense<0xFF800000> : vector<32xf32>
    %215 = vector.multi_reduction <maximumf>, %214, %cst_74 [1] : vector<32x32xf32> to vector<32xf32>
    %216 = vector.shape_cast %215 : vector<32xf32> to vector<32x1xf32>
    %217 = vector.broadcast %216 : vector<32x1xf32> to vector<32x32xf32>
    %218 = arith.subf %214, %217 : vector<32x32xf32>
    %219 = math.exp %218 : vector<32x32xf32>
    %cst_75 = arith.constant dense<0.000000e+00> : vector<32xf32>
    %220 = vector.multi_reduction <add>, %219, %cst_75 [1] : vector<32x32xf32> to vector<32xf32>
    %221 = vector.shape_cast %220 : vector<32xf32> to vector<32x1xf32>
    %222 = arith.truncf %219 : vector<32x32xf32> to vector<32x32xbf16>
    %cst_76 = arith.constant dense<0.000000e+00> : vector<32x16xf32>
    %223 = tpu.matmul %222, %193, %cst_76 {dimension_numbers = #tpu.dot_dimension_numbers<[1], [0], [0], [1], [0, 0, 1, 1], [], []>} : vector<32x32xbf16>, vector<32x16xbf16>, vector<32x16xf32> -> vector<32x16xf32>
    %224 = tpu.reciprocal %221 {approx = true} : vector<32x1xf32> -> vector<32x1xf32>
    %225 = vector.broadcast %224 : vector<32x1xf32> to vector<32x16xf32>
    %226 = arith.mulf %223, %225 : vector<32x16xf32>
    %227 = arith.truncf %226 : vector<32x16xf32> to vector<32x16xbf16>
    %c0_77 = arith.constant 0 : index
    %c48_78 = arith.constant 48 : index
    %228 = vector.load %arg7[%c0_77, %c48_78] : memref<32x64xbf16, #tpu.memory_space<vmem>>, vector<32x16xbf16>
    tpu.vector_store %arg7[%c0_77, %c48_78], %227 {strides = array<i32>} : memref<32x64xbf16, #tpu.memory_space<vmem>>, vector<32x16xbf16>,
    %c0_79 = arith.constant 0 : index
    %c0_80 = arith.constant 0 : index
    %229 = vector.load %arg7[%c0_79, %c0_80] : memref<32x64xbf16, #tpu.memory_space<vmem>>, vector<32x64xbf16>
    %c1_81 = arith.constant 1 : index
    %c0_82 = arith.constant 0 : index
    %c0_83 = arith.constant 0 : index
    %230 = vector.load %arg3[%c1_81, %c0_82, %c0_83] : memref<2x64x64xbf16, #tpu.memory_space<vmem>>, vector<1x64x64xbf16>
    %231 = vector.shape_cast %230 : vector<1x64x64xbf16> to vector<64x64xbf16>
    %cst_84 = arith.constant dense<0.000000e+00> : vector<32x64xf32>
    %232 = tpu.matmul %229, %231, %cst_84 {dimension_numbers = #tpu.dot_dimension_numbers<[1], [0], [0], [1], [0, 0, 1, 1], [], []>} : vector<32x64xbf16>, vector<64x64xbf16>, vector<32x64xf32> -> vector<32x64xf32>
    %233 = arith.truncf %232 : vector<32x64xf32> to vector<32x64xbf16>
    %234 = arith.addf %138, %233 : vector<32x64xbf16>
    %235 = arith.extf %234 : vector<32x64xbf16> to vector<32x64xf32>
    %236 = arith.mulf %235, %235 : vector<32x64xf32>
    %cst_85 = arith.constant dense<0.000000e+00> : vector<32xf32>
    %237 = vector.multi_reduction <add>, %236, %cst_85 [1] : vector<32x64xf32> to vector<32xf32>
    %238 = vector.shape_cast %237 : vector<32xf32> to vector<32x1xf32>
    %cst_86 = arith.constant 6.400000e+01 : f32
    %239 = vector.broadcast %cst_86 : f32 to vector<32x1xf32>
    %240 = arith.divf %238, %239 : vector<32x1xf32>
    %cst_87 = arith.constant 9.99999974E-6 : f32
    %241 = vector.broadcast %cst_87 : f32 to vector<32x1xf32>
    %242 = arith.addf %240, %241 : vector<32x1xf32>
    %243 = math.rsqrt %242 : vector<32x1xf32>
    %244 = vector.broadcast %243 : vector<32x1xf32> to vector<32x64xf32>
    %245 = arith.mulf %235, %244 : vector<32x64xf32>
    %246 = arith.truncf %245 : vector<32x64xf32> to vector<32x64xbf16>
    %c1_88 = arith.constant 1 : index
    %c0_89 = arith.constant 0 : index
    %c0_90 = arith.constant 0 : index
    %247 = vector.load %arg4[%c1_88, %c0_89, %c0_90] : memref<2x64x512xbf16, #tpu.memory_space<vmem>>, vector<1x64x512xbf16>
    %248 = vector.shape_cast %247 : vector<1x64x512xbf16> to vector<64x512xbf16>
    %cst_91 = arith.constant dense<0.000000e+00> : vector<32x512xf32>
    %249 = tpu.matmul %246, %248, %cst_91 {dimension_numbers = #tpu.dot_dimension_numbers<[1], [0], [0], [1], [0, 0, 1, 1], [], []>} : vector<32x64xbf16>, vector<64x512xbf16>, vector<32x512xf32> -> vector<32x512xf32>
    %250 = vector.extract_strided_slice %249 {offsets = [0, 0], sizes = [32, 256], strides = [1, 1]} : vector<32x512xf32> to vector<32x256xf32>
    %251 = vector.extract_strided_slice %249 {offsets = [0, 256], sizes = [32, 256], strides = [1, 1]} : vector<32x512xf32> to vector<32x256xf32>
    %252 = arith.negf %250 : vector<32x256xf32>
    %253 = math.exp %252 : vector<32x256xf32>
    %cst_92 = arith.constant 1.000000e+00 : f32
    %254 = vector.broadcast %cst_92 : f32 to vector<32x256xf32>
    %255 = arith.addf %254, %253 : vector<32x256xf32>
    %256 = arith.divf %254, %255 : vector<32x256xf32>
    %257 = arith.mulf %250, %256 : vector<32x256xf32>
    %258 = arith.mulf %257, %251 : vector<32x256xf32>
    %259 = arith.truncf %258 : vector<32x256xf32> to vector<32x256xbf16>
    %c1_93 = arith.constant 1 : index
    %c0_94 = arith.constant 0 : index
    %c0_95 = arith.constant 0 : index
    %260 = vector.load %arg5[%c1_93, %c0_94, %c0_95] : memref<2x256x64xbf16, #tpu.memory_space<vmem>>, vector<1x256x64xbf16>
    %261 = vector.shape_cast %260 : vector<1x256x64xbf16> to vector<256x64xbf16>
    %cst_96 = arith.constant dense<0.000000e+00> : vector<32x64xf32>
    %262 = tpu.matmul %259, %261, %cst_96 {dimension_numbers = #tpu.dot_dimension_numbers<[1], [0], [0], [1], [0, 0, 1, 1], [], []>} : vector<32x256xbf16>, vector<256x64xbf16>, vector<32x64xf32> -> vector<32x64xf32>
    %263 = arith.truncf %262 : vector<32x64xf32> to vector<32x64xbf16>
    %264 = arith.addf %234, %263 : vector<32x64xbf16>
    %c0_97 = arith.constant 0 : index
    %c0_98 = arith.constant 0 : index
    %265 = vector.load %arg6[%c0_97, %c0_98] : memref<32x64xbf16, #tpu.memory_space<vmem>>, vector<32x64xbf16>
    tpu.vector_store %arg6[%c0_97, %c0_98], %264 {strides = array<i32>} : memref<32x64xbf16, #tpu.memory_space<vmem>>, vector<32x64xbf16>,
    return
  }
  func.func @transform_0(%arg0: i32) -> (i32, i32) {
    %c0_i32 = arith.constant 0 : i32
    %c0_i32_0 = arith.constant 0 : i32
    %c0_i32_1 = arith.constant 0 : i32
    return %c0_i32, %c0_i32_0 : i32, i32
  }
  func.func @transform_1(%arg0: i32) -> (i32, i32, i32) {
    %c0_i32 = arith.constant 0 : i32
    %c0_i32_0 = arith.constant 0 : i32
    %c0_i32_1 = arith.constant 0 : i32
    %c0_i32_2 = arith.constant 0 : i32
    return %c0_i32, %c0_i32_0, %c0_i32_1 : i32, i32, i32
  }
  func.func @transform_2(%arg0: i32) -> (i32, i32, i32) {
    %c0_i32 = arith.constant 0 : i32
    %c0_i32_0 = arith.constant 0 : i32
    %c0_i32_1 = arith.constant 0 : i32
    %c0_i32_2 = arith.constant 0 : i32
    return %c0_i32, %c0_i32_0, %c0_i32_1 : i32, i32, i32
  }
  func.func @transform_3(%arg0: i32) -> (i32, i32, i32) {
    %c0_i32 = arith.constant 0 : i32
    %c0_i32_0 = arith.constant 0 : i32
    %c0_i32_1 = arith.constant 0 : i32
    %c0_i32_2 = arith.constant 0 : i32
    return %c0_i32, %c0_i32_0, %c0_i32_1 : i32, i32, i32
  }
  func.func @transform_4(%arg0: i32) -> (i32, i32, i32) {
    %c0_i32 = arith.constant 0 : i32
    %c0_i32_0 = arith.constant 0 : i32
    %c0_i32_1 = arith.constant 0 : i32
    %c0_i32_2 = arith.constant 0 : i32
    return %c0_i32, %c0_i32_0, %c0_i32_1 : i32, i32, i32
  }
  func.func @transform_5(%arg0: i32) -> (i32, i32) {
    %c0_i32 = arith.constant 0 : i32
    %c0_i32_0 = arith.constant 0 : i32
    %c0_i32_1 = arith.constant 0 : i32
    return %c0_i32, %c0_i32_0 : i32, i32
  }
}

</mosaic_0001>

<llo_original>
// kernel: step1_text_encoder_forward.1
$region0: #{step1_text_encoder_forward.1}
  #allocation0 [shape = 'u32[]', space=smem, size = 0x4, offset = 0x4, fixed_abs, tag = 'smem constant byte address 0x4 - core index']
  #allocation1 [shape = 'u32[144,128]{1,0:T(1,128)}', space=vmem, size = 0x12000, scoped, tag = 'internal scratch']
  #allocation2 [shape = 'bf16[32,64]{1,0:T(16,128)(2,1)}', space=vmem, size = 0x2000, scoped, tag = 'scratch operand']
  %s0 = inlined_call_operand.vmem [shape: bf16[32,64], index: 0, kind: input, shape index: {}]
  %s1 = inlined_call_operand.vmem [shape: bf16[2,64,128], index: 1, kind: input, shape index: {}]
  %s2 = inlined_call_operand.vmem [shape: bf16[2,64,64], index: 2, kind: input, shape index: {}]
  %s3 = inlined_call_operand.vmem [shape: bf16[2,64,512], index: 3, kind: input, shape index: {}]
  %s4 = inlined_call_operand.vmem [shape: bf16[2,256,64], index: 4, kind: input, shape index: {}]
  %s5 = inlined_call_operand.hbm [shape: bf16[32,64], index: 5, kind: output, shape index: {}]
  %s6 = sld [smem:[#allocation0]]
  $region30: #{step1_text_encoder_forward.1} parent=0
    _
  %s8 = ssub.s32 1, %s6
  %s9 = scalar_select 0, %s8, %s6
  $region1: #{step1_text_encoder_forward.1} parent=0
    #allocation3 [shape = 'u8[8192]{0}', space=vmem, size = 0x2000, scoped, tag = 'output window, operand 0, single buffered']
    #allocation4 [shape = 's32[1]{0}', space=sflag, size = 0x4, scoped, tag = 'scoped memory for step1_text_encoder_forward.1']
    %10 = vsyncpa [#allocation4], 0
    // Predicated region
    $region2: #{step1_text_encoder_forward.1} parent=1 // pred_check
      _
    $region3: #{step1_text_encoder_forward.1} parent=1 // pred_check_branch
      %12 = sbr.rel (0) target = $region5
    $region4: #{step1_text_encoder_forward.1} parent=1 // pred_region
      _
    $region5: #{step1_text_encoder_forward.1} parent=1 // pred_fallthru
      _
    // Predicated region
    $region6: #{step1_text_encoder_forward.1} parent=1 // pred_check
      _
    $region7: #{step1_text_encoder_forward.1} parent=1 // pred_check_branch
      %14 = sbr.rel (0) target = $region9
    $region8: #{step1_text_encoder_forward.1} parent=1 // pred_region
      _
    $region9: #{step1_text_encoder_forward.1} parent=1 // pred_fallthru
      _
    // Predicated region
    $region10: #{step1_text_encoder_forward.1} parent=1 // pred_check
      _
    $region11: #{step1_text_encoder_forward.1} parent=1 // pred_check_branch
      %16 = sbr.rel (0) target = $region13
    $region12: #{step1_text_encoder_forward.1} parent=1 // pred_region
      _
    $region13: #{step1_text_encoder_forward.1} parent=1 // pred_fallthru
      _
    // Predicated region
    $region14: #{step1_text_encoder_forward.1} parent=1 // pred_check
      _
    $region15: #{step1_text_encoder_forward.1} parent=1 // pred_check_branch
      %18 = sbr.rel (0) target = $region17
    $region16: #{step1_text_encoder_forward.1} parent=1 // pred_region
      _
    $region17: #{step1_text_encoder_forward.1} parent=1 // pred_fallthru
      _
    // Predicated region
    $region18: #{step1_text_encoder_forward.1} parent=1 // pred_check
      _
    $region19: #{step1_text_encoder_forward.1} parent=1 // pred_check_branch
      %20 = sbr.rel (0) target = $region21
    $region20: #{step1_text_encoder_forward.1} parent=1 // pred_region
      _
    $region21: #{step1_text_encoder_forward.1} parent=1 // pred_fallthru
      _
    %v22 = vlaneseq
    %v23 = vshrl.u32 %v22, 7
    %v24 = vadd.s32 %v23, 8
    %v25 = vadd.s32 %v23, 16
    %v26 = vadd.s32 %v23, 24
    %v27 = vlaneseq
    %v28 = vand.u32 %v27, 127
    %v29 = vshra.s32 %v23, 4
    %v30 = vshra.s32 %v24, 4
    %v31 = vshra.s32 %v25, 4
    %v32 = vshra.s32 %v26, 4
    %v33 = vshra.s32 %v28, 4
    %vm34 = vcmp.eq.s32.totalorder %v29, %v33
    %vm35 = vcmp.eq.s32.totalorder %v30, %v33
    %vm36 = vcmp.eq.s32.totalorder %v31, %v33
    %vm37 = vcmp.eq.s32.totalorder %v32, %v33
    %vm38 = vcmp.le.s32.totalorder %v28, %v23
    %vm39 = vcmp.le.s32.totalorder %v28, %v24
    %vm40 = vcmp.le.s32.totalorder %v28, %v25
    %vm41 = vcmp.le.s32.totalorder %v28, %v26
    %vm42 = vmand %vm34, %vm38
    %vm43 = vmand %vm35, %vm39
    %vm44 = vmand %vm36, %vm40
    %vm45 = vmand %vm37, %vm41
    %v46 = vsel %vm42, 0.0, -1e+30
    %v47 = vsel %vm43, 0.0, -1e+30
    %v48 = vsel %vm44, 0.0, -1e+30
    %v49 = vsel %vm45, 0.0, -1e+30
    %v50 = vld [vmem:[%s0] sm:$0xf]
    %v51 = vld [vmem:[%s0 + $0x4] sm:$0xf]
    %v52 = vld [vmem:[%s0 + $0x8] sm:$0xf]
    %v53 = vld [vmem:[%s0 + $0xc] sm:$0xf]
    %v54 = vunpack.c.l.bf16 %v50
    %v55 = vunpack.c.l.bf16 %v51
    %v56 = vunpack.c.l.bf16 %v52
    %v57 = vunpack.c.l.bf16 %v53
    %v58 = vmul.f32 %v54, %v54
    %v59 = vmul.f32 %v55, %v55
    %v60 = vmul.f32 %v56, %v56
    %v61 = vmul.f32 %v57, %v57
    %vm62 = vcmask 523264
    %v63 = vsel %vm62, %v58, 0.0
    %64 = vadd.xlane.f32.xlu0 %v63
    %v65 = vpop.xlane.xlu0 %64
    %v66 = vsel %vm62, %v59, 0.0
    %67 = vadd.xlane.f32.xlu0 %v66
    %v68 = vpop.xlane.xlu0 %67
    %v69 = vsel %vm62, %v60, 0.0
    %70 = vadd.xlane.f32.xlu0 %v69
    %v71 = vpop.xlane.xlu0 %70
    %v72 = vsel %vm62, %v61, 0.0
    %73 = vadd.xlane.f32.xlu0 %v72
    %v74 = vpop.xlane.xlu0 %73
    %v75 = vrcp.pop 64.0
    %v76 = vmul.f32 %v65, %v75
    %v77 = vmul.f32 %v68, %v75
    %v78 = vmul.f32 %v71, %v75
    %v79 = vmul.f32 %v74, %v75
    %v80 = vadd.f32 %v76, 1e-05
    %v81 = vadd.f32 %v77, 1e-05
    %v82 = vadd.f32 %v78, 1e-05
    %v83 = vadd.f32 %v79, 1e-05
    %v84 = vrsqrt.pop %v80
    %v85 = vrsqrt.pop %v81
    %v86 = vrsqrt.pop %v82
    %v87 = vrsqrt.pop %v83
    %v88 = vmul.f32 %v54, %v84
    %v89 = vmul.f32 %v55, %v85
    %v90 = vmul.f32 %v56, %v86
    %v91 = vmul.f32 %v57, %v87
    %v92 = vpack.c.bf16 %v89, %v88
    %v93 = vpack.c.bf16 %v91, %v90
    %v94 = vld [vmem:[%s1] sm:$0xf]
    %v95 = vld [vmem:[%s1 + $0x4] sm:$0xf]
    %v96 = vld [vmem:[%s1 + $0x8] sm:$0xf]
    %v97 = vld [vmem:[%s1 + $0xc] sm:$0xf]
    %v98 = vld [vmem:[%s1 + $0x10] sm:$0xf]
    %v99 = vld [vmem:[%s1 + $0x14] sm:$0xf]
    %v100 = vld [vmem:[%s1 + $0x18] sm:$0xf]
    %v101 = vld [vmem:[%s1 + $0x1c] sm:$0xf]
    %v110 = vunpack.c.l.b16 %v94
    %v111 = vunpack.c.l.b16 %v95
    %v112 = vunpack.c.l.b16 %v96
    %v113 = vunpack.c.l.b16 %v97
    %v114 = vunpack.c.l.b16 %v98
    %v115 = vunpack.c.l.b16 %v99
    %v116 = vunpack.c.l.b16 %v100
    %v117 = vunpack.c.l.b16 %v101
    %v118 = vpack.c.b16 %v111, %v110
    %v119 = vpack.c.b16 %v113, %v112
    %v120 = vpack.c.b16 %v115, %v114
    %v121 = vpack.c.b16 %v117, %v116
    %v127 = vsel %vm62, %v92, 0
    %v130 = vsel %vm62, %v93, 0
    %132 = vmatprep.subr.bf16.mxu0 0
    %133 = vmatpush1.bf16.msra.mxu0 %v118
    %134 = vmatprep.subr.bf16.mxu0 0
    %135 = vmatpush1.bf16.msra.mxu0 %v119
    %136 = vmatprep.subr.bf16.mxu0 0
    %137 = vmatpush1.bf16.msra.mxu0 %v120
    %138 = vmatprep.subr.bf16.mxu0 0
    %139 = vmatpush1.bf16.msra.mxu0 %v121
    %140 = vmatprep.subr.bf16.mxu0 0
    %141 = vmatpush1.bf16.msra.mxu0 0
    %142 = vmatprep.subr.bf16.mxu0 0
    %143 = vmatpush1.bf16.msra.mxu0 0
    %144 = vmatprep.subr.bf16.mxu0 0
    %145 = vmatpush1.bf16.msra.mxu0 0
    %146 = vmatprep.subr.bf16.mxu0 0
    %147 = vmatpush1.bf16.msra.mxu0 0
    %148 = vmatprep.subr.bf16.mxu0 0
    %149 = vmatpush1.bf16.msra.mxu0 0
    %150 = vmatprep.subr.bf16.mxu0 0
    %151 = vmatpush1.bf16.msra.mxu0 0
    %152 = vmatprep.subr.bf16.mxu0 0
    %153 = vmatpush1.bf16.msra.mxu0 0
    %154 = vmatprep.subr.bf16.mxu0 0
    %155 = vmatpush1.bf16.msra.mxu0 0
    %156 = vmatprep.subr.bf16.mxu0 0
    %157 = vmatpush1.bf16.msra.mxu0 0
    %158 = vmatprep.subr.bf16.mxu0 0
    %159 = vmatpush1.bf16.msra.mxu0 0
    %160 = vmatprep.subr.bf16.mxu0 0
    %161 = vmatpush1.bf16.msra.mxu0 0
    %162 = vmatprep.subr.bf16.mxu0 0
    %163 = vmatpush1.bf16.msra.mxu0 0
    %164 = vmatprep.mubr.bf16.mxu0 0
    %165 = vmatmul.mubr.bf16.gmra.mrb[0].mxu0 %v127
    %v166 = vpop.f32.mrb[0].mxu0
    %v167 = vadd.f32 0.0, %v166
    %v168 = vpop.f32.mrb[0].mxu0
    %v169 = vpop.f32.mrb[0].mxu0
    %v170 = vadd.f32 0.0, %v169
    %v171 = vpop.f32.mrb[0].mxu0
    %172 = vmatprep.mubr.bf16.mxu0 0
    %173 = vmatmul.mubr.bf16.gmra.mrb[0].mxu0 %v130
    %v174 = vpop.f32.mrb[0].mxu0
    %v175 = vadd.f32 0.0, %v174
    %v176 = vpop.f32.mrb[0].mxu0
    %v177 = vpop.f32.mrb[0].mxu0
    %v178 = vadd.f32 0.0, %v177
    %v179 = vpop.f32.mrb[0].mxu0
    %180 = vdwg.mxu0
    %v181 = vpack.c.bf16 %v170, %v167
    %v182 = vpack.c.bf16 %v178, %v175
    %185 = vrot.lane.b32.xlu0 %v181, 64
    %v186 = vpop.permute.xlu0 %185
    %187 = vrot.lane.b32.xlu0 %v182, 64
    %v188 = vpop.permute.xlu0 %187
    %vm189 = vcmask 130048
    %v191 = vsel %vm189, %v181, 0
    %v194 = vsel %vm189, %v182, 0
    %v197 = vsel %vm189, %v186, 0
    %v200 = vsel %vm189, %v188, 0
    %202 = vmatprep.subr.bf16.mxu0 0
    %203 = vmatpush1.bf16.xpose.msra.mxu0 %v197
    %204 = vmatprep.subr.bf16.mxu0 0
    %205 = vmatpush1.bf16.xpose.msra.mxu0 %v200
    %206 = vmatprep.subr.bf16.mxu0 0
    %207 = vmatpush1.bf16.xpose.msra.mxu0 0
    %208 = vmatprep.subr.bf16.mxu0 0
    %209 = vmatpush1.bf16.xpose.msra.mxu0 0
    %210 = vmatprep.subr.bf16.mxu0 0
    %211 = vmatpush1.bf16.xpose.msra.mxu0 0
    %212 = vmatprep.subr.bf16.mxu0 0
    %213 = vmatpush1.bf16.xpose.msra.mxu0 0
    %214 = vmatprep.subr.bf16.mxu0 0
    %215 = vmatpush1.bf16.xpose.msra.mxu0 0
    %216 = vmatprep.subr.bf16.mxu0 0
    %217 = vmatpush1.bf16.xpose.msra.mxu0 0
    %218 = vmatprep.subr.bf16.mxu0 0
    %219 = vmatpush1.bf16.xpose.msra.mxu0 0
    %220 = vmatprep.subr.bf16.mxu0 0
    %221 = vmatpush1.bf16.xpose.msra.mxu0 0
    %222 = vmatprep.subr.bf16.mxu0 0
    %223 = vmatpush1.bf16.xpose.msra.mxu0 0
    %224 = vmatprep.subr.bf16.mxu0 0
    %225 = vmatpush1.bf16.xpose.msra.mxu0 0
    %226 = vmatprep.subr.bf16.mxu0 0
    %227 = vmatpush1.bf16.xpose.msra.mxu0 0
    %228 = vmatprep.subr.bf16.mxu0 0
    %229 = vmatpush1.bf16.xpose.msra.mxu0 0
    %230 = vmatprep.subr.bf16.mxu0 0
    %231 = vmatpush1.bf16.xpose.msra.mxu0 0
    %232 = vmatprep.subr.bf16.mxu0 0
    %233 = vmatpush1.bf16.xpose.msra.mxu0 0
    %234 = vmatprep.mubr.bf16.mxu0 0
    %235 = vmatmul.mubr.bf16.gmra.mrb[0].mxu0 %v191
    %v236 = vpop.f32.mrb[0].mxu0
    %v237 = vadd.f32 %v46, %v236
    %v238 = vpop.f32.mrb[0].mxu0
    %v239 = vpop.f32.mrb[0].mxu0
    %v240 = vadd.f32 %v47, %v239
    %v241 = vpop.f32.mrb[0].mxu0
    %242 = vmatprep.mubr.bf16.mxu0 0
    %243 = vmatmul.mubr.bf16.gmra.mrb[0].mxu0 %v194
    %v244 = vpop.f32.mrb[0].mxu0
    %v245 = vadd.f32 %v48, %v244
    %v246 = vpop.f32.mrb[0].mxu0
    %v247 = vpop.f32.mrb[0].mxu0
    %v248 = vadd.f32 %v49, %v247
    %v249 = vpop.f32.mrb[0].mxu0
    %250 = vdwg.mxu0
    %vm251 = vcmask 261120
    %v252 = vsel %vm251, %v237, -inf
    %253 = vmax.xlane.f32.xlu0 %v252
    %v254 = vpop.xlane.xlu0 %253
    %v255 = vsel %vm251, %v240, -inf
    %256 = vmax.xlane.f32.xlu0 %v255
    %v257 = vpop.xlane.xlu0 %256
    %v258 = vsel %vm251, %v245, -inf
    %259 = vmax.xlane.f32.xlu0 %v258
    %v260 = vpop.xlane.xlu0 %259
    %v261 = vsel %vm251, %v248, -inf
    %262 = vmax.xlane.f32.xlu0 %v261
    %v263 = vpop.xlane.xlu0 %262
    %v264 = vsub.f32 %v237, %v254
    %v265 = vsub.f32 %v240, %v257
    %v266 = vsub.f32 %v245, %v260
    %v267 = vsub.f32 %v248, %v263
    %v268 = vmul.f32 %v264, 1.442695
    %v269 = vpow.pop %v268
    %v270 = vmul.f32 %v265, 1.442695
    %v271 = vpow.pop %v270
    %v272 = vmul.f32 %v266, 1.442695
    %v273 = vpow.pop %v272
    %v274 = vmul.f32 %v267, 1.442695
    %v275 = vpow.pop %v274
    %v276 = vsel %vm251, %v269, 0.0
    %277 = vadd.xlane.f32.xlu0 %v276
    %v278 = vpop.xlane.xlu0 %277
    %v279 = vsel %vm251, %v271, 0.0
    %280 = vadd.xlane.f32.xlu0 %v279
    %v281 = vpop.xlane.xlu0 %280
    %v282 = vsel %vm251, %v273, 0.0
    %283 = vadd.xlane.f32.xlu0 %v282
    %v284 = vpop.xlane.xlu0 %283
    %v285 = vsel %vm251, %v275, 0.0
    %286 = vadd.xlane.f32.xlu0 %v285
    %v287 = vpop.xlane.xlu0 %286
    %v288 = vpack.c.bf16 %v271, %v269
    %v289 = vpack.c.bf16 %v275, %v273
    %290 = vrot.lane.b32.xlu0 %v181, 48
    %v291 = vpop.permute.xlu0 %290
    %292 = vrot.lane.b32.xlu0 %v182, 48
    %v293 = vpop.permute.xlu0 %292
    %v297 = vsel %vm251, %v288, 0
    %v300 = vsel %vm251, %v289, 0
    %302 = vmatprep.subr.bf16.mxu0 0
    %303 = vmatpush1.bf16.msra.mxu0 %v291
    %304 = vmatprep.subr.bf16.mxu0 0
    %305 = vmatpush1.bf16.msra.mxu0 %v293
    %306 = vmatprep.subr.bf16.mxu0 0
    %307 = vmatpush1.bf16.msra.mxu0 0
    %308 = vmatprep.subr.bf16.mxu0 0
    %309 = vmatpush1.bf16.msra.mxu0 0
    %310 = vmatprep.subr.bf16.mxu0 0
    %311 = vmatpush1.bf16.msra.mxu0 0
    %312 = vmatprep.subr.bf16.mxu0 0
    %313 = vmatpush1.bf16.msra.mxu0 0
    %314 = vmatprep.subr.bf16.mxu0 0
    %315 = vmatpush1.bf16.msra.mxu0 0
    %316 = vmatprep.subr.bf16.mxu0 0
    %317 = vmatpush1.bf16.msra.mxu0 0
    %318 = vmatprep.subr.bf16.mxu0 0
    %319 = vmatpush1.bf16.msra.mxu0 0
    %320 = vmatprep.subr.bf16.mxu0 0
    %321 = vmatpush1.bf16.msra.mxu0 0
    %322 = vmatprep.subr.bf16.mxu0 0
    %323 = vmatpush1.bf16.msra.mxu0 0
    %324 = vmatprep.subr.bf16.mxu0 0
    %325 = vmatpush1.bf16.msra.mxu0 0
    %326 = vmatprep.subr.bf16.mxu0 0
    %327 = vmatpush1.bf16.msra.mxu0 0
    %328 = vmatprep.subr.bf16.mxu0 0
    %329 = vmatpush1.bf16.msra.mxu0 0
    %330 = vmatprep.subr.bf16.mxu0 0
    %331 = vmatpush1.bf16.msra.mxu0 0
    %332 = vmatprep.subr.bf16.mxu0 0
    %333 = vmatpush1.bf16.msra.mxu0 0
    %334 = vmatprep.mubr.bf16.mxu0 0
    %335 = vmatmul.mubr.bf16.gmra.mrb[0].mxu0 %v297
    %v336 = vpop.f32.mrb[0].mxu0
    %v337 = vadd.f32 0.0, %v336
    %v338 = vpop.f32.mrb[0].mxu0
    %v339 = vpop.f32.mrb[0].mxu0
    %v340 = vadd.f32 0.0, %v339
    %v341 = vpop.f32.mrb[0].mxu0
    %342 = vmatprep.mubr.bf16.mxu0 0
    %343 = vmatmul.mubr.bf16.gmra.mrb[0].mxu0 %v300
    %v344 = vpop.f32.mrb[0].mxu0
    %v345 = vadd.f32 0.0, %v344
    %v346 = vpop.f32.mrb[0].mxu0
    %v347 = vpop.f32.mrb[0].mxu0
    %v348 = vadd.f32 0.0, %v347
    %v349 = vpop.f32.mrb[0].mxu0
    %350 = vdwg.mxu0
    %v351 = vrcp.pop %v278
    %v352 = vrcp.pop %v281
    %v353 = vrcp.pop %v284
    %v354 = vrcp.pop %v287
    %v355 = vmul.f32 %v337, %v351
    %v356 = vmul.f32 %v340, %v352
    %v357 = vmul.f32 %v345, %v353
    %v358 = vmul.f32 %v348, %v354
    %v359 = vpack.c.bf16 %v356, %v355
    %v360 = vpack.c.bf16 %v358, %v357
    %361 = vst.msk [vmem:[#allocation2] sm:$0xff] %vm189, %v359
    %362 = vst.msk [vmem:[#allocation2 + $0x8] sm:$0xff] %vm189, %v360
    %363 = vrot.lane.b32.xlu0 %v181, 112
    %v364 = vpop.permute.xlu0 %363
    %365 = vrot.lane.b32.xlu0 %v182, 112
    %v366 = vpop.permute.xlu0 %365
    %v368 = vsel %vm189, %v364, 0
    %v371 = vsel %vm189, %v366, 0
    %373 = vmatprep.subr.bf16.mxu0 0
    %374 = vmatpush1.bf16.xpose.msra.mxu0 %v197
    %375 = vmatprep.subr.bf16.mxu0 0
    %376 = vmatpush1.bf16.xpose.msra.mxu0 %v200
    %377 = vmatprep.subr.bf16.mxu0 0
    %378 = vmatpush1.bf16.xpose.msra.mxu0 0
    %379 = vmatprep.subr.bf16.mxu0 0
    %380 = vmatpush1.bf16.xpose.msra.mxu0 0
    %381 = vmatprep.subr.bf16.mxu0 0
    %382 = vmatpush1.bf16.xpose.msra.mxu0 0
    %383 = vmatprep.subr.bf16.mxu0 0
    %384 = vmatpush1.bf16.xpose.msra.mxu0 0
    %385 = vmatprep.subr.bf16.mxu0 0
    %386 = vmatpush1.bf16.xpose.msra.mxu0 0
    %387 = vmatprep.subr.bf16.mxu0 0
    %388 = vmatpush1.bf16.xpose.msra.mxu0 0
    %389 = vmatprep.subr.bf16.mxu0 0
    %390 = vmatpush1.bf16.xpose.msra.mxu0 0
    %391 = vmatprep.subr.bf16.mxu0 0
    %392 = vmatpush1.bf16.xpose.msra.mxu0 0
    %393 = vmatprep.subr.bf16.mxu0 0
    %394 = vmatpush1.bf16.xpose.msra.mxu0 0
    %395 = vmatprep.subr.bf16.mxu0 0
    %396 = vmatpush1.bf16.xpose.msra.mxu0 0
    %397 = vmatprep.subr.bf16.mxu0 0
    %398 = vmatpush1.bf16.xpose.msra.mxu0 0
    %399 = vmatprep.subr.bf16.mxu0 0
    %400 = vmatpush1.bf16.xpose.msra.mxu0 0
    %401 = vmatprep.subr.bf16.mxu0 0
    %402 = vmatpush1.bf16.xpose.msra.mxu0 0
    %403 = vmatprep.subr.bf16.mxu0 0
    %404 = vmatpush1.bf16.xpose.msra.mxu0 0
    %405 = vmatprep.mubr.bf16.mxu0 0
    %406 = vmatmul.mubr.bf16.gmra.mrb[0].mxu0 %v368
    %v407 = vpop.f32.mrb[0].mxu0
    %v408 = vadd.f32 %v46, %v407
    %v409 = vpop.f32.mrb[0].mxu0
    %v410 = vpop.f32.mrb[0].mxu0
    %v411 = vadd.f32 %v47, %v410
    %v412 = vpop.f32.mrb[0].mxu0
    %413 = vmatprep.mubr.bf16.mxu0 0
    %414 = vmatmul.mubr.bf16.gmra.mrb[0].mxu0 %v371
    %v415 = vpop.f32.mrb[0].mxu0
    %v416 = vadd.f32 %v48, %v415
    %v417 = vpop.f32.mrb[0].mxu0
    %v418 = vpop.f32.mrb[0].mxu0
    %v419 = vadd.f32 %v49, %v418
    %v420 = vpop.f32.mrb[0].mxu0
    %421 = vdwg.mxu0
    %v422 = vsel %vm251, %v408, -inf
    %423 = vmax.xlane.f32.xlu0 %v422
    %v424 = vpop.xlane.xlu0 %423
    %v425 = vsel %vm251, %v411, -inf
    %426 = vmax.xlane.f32.xlu0 %v425
    %v427 = vpop.xlane.xlu0 %426
    %v428 = vsel %vm251, %v416, -inf
    %429 = vmax.xlane.f32.xlu0 %v428
    %v430 = vpop.xlane.xlu0 %429
    %v431 = vsel %vm251, %v419, -inf
    %432 = vmax.xlane.f32.xlu0 %v431
    %v433 = vpop.xlane.xlu0 %432
    %v434 = vsub.f32 %v408, %v424
    %v435 = vsub.f32 %v411, %v427
    %v436 = vsub.f32 %v416, %v430
    %v437 = vsub.f32 %v419, %v433
    %v438 = vmul.f32 %v434, 1.442695
    %v439 = vpow.pop %v438
    %v440 = vmul.f32 %v435, 1.442695
    %v441 = vpow.pop %v440
    %v442 = vmul.f32 %v436, 1.442695
    %v443 = vpow.pop %v442
    %v444 = vmul.f32 %v437, 1.442695
    %v445 = vpow.pop %v444
    %v446 = vsel %vm251, %v439, 0.0
    %447 = vadd.xlane.f32.xlu0 %v446
    %v448 = vpop.xlane.xlu0 %447
    %v449 = vsel %vm251, %v441, 0.0
    %450 = vadd.xlane.f32.xlu0 %v449
    %v451 = vpop.xlane.xlu0 %450
    %v452 = vsel %vm251, %v443, 0.0
    %453 = vadd.xlane.f32.xlu0 %v452
    %v454 = vpop.xlane.xlu0 %453
    %v455 = vsel %vm251, %v445, 0.0
    %456 = vadd.xlane.f32.xlu0 %v455
    %v457 = vpop.xlane.xlu0 %456
    %v458 = vpack.c.bf16 %v441, %v439
    %v459 = vpack.c.bf16 %v445, %v443
    %v461 = vsel %vm251, %v458, 0
    %v464 = vsel %vm251, %v459, 0
    %466 = vmatprep.subr.bf16.mxu0 0
    %467 = vmatpush1.bf16.msra.mxu0 %v291
    %468 = vmatprep.subr.bf16.mxu0 0
    %469 = vmatpush1.bf16.msra.mxu0 %v293
    %470 = vmatprep.subr.bf16.mxu0 0
    %471 = vmatpush1.bf16.msra.mxu0 0
    %472 = vmatprep.subr.bf16.mxu0 0
    %473 = vmatpush1.bf16.msra.mxu0 0
    %474 = vmatprep.subr.bf16.mxu0 0
    %475 = vmatpush1.bf16.msra.mxu0 0
    %476 = vmatprep.subr.bf16.mxu0 0
    %477 = vmatpush1.bf16.msra.mxu0 0
    %478 = vmatprep.subr.bf16.mxu0 0
    %479 = vmatpush1.bf16.msra.mxu0 0
    %480 = vmatprep.subr.bf16.mxu0 0
    %481 = vmatpush1.bf16.msra.mxu0 0
    %482 = vmatprep.subr.bf16.mxu0 0
    %483 = vmatpush1.bf16.msra.mxu0 0
    %484 = vmatprep.subr.bf16.mxu0 0
    %485 = vmatpush1.bf16.msra.mxu0 0
    %486 = vmatprep.subr.bf16.mxu0 0
    %487 = vmatpush1.bf16.msra.mxu0 0
    %488 = vmatprep.subr.bf16.mxu0 0
    %489 = vmatpush1.bf16.msra.mxu0 0
    %490 = vmatprep.subr.bf16.mxu0 0
    %491 = vmatpush1.bf16.msra.mxu0 0
    %492 = vmatprep.subr.bf16.mxu0 0
    %493 = vmatpush1.bf16.msra.mxu0 0
    %494 = vmatprep.subr.bf16.mxu0 0
    %495 = vmatpush1.bf16.msra.mxu0 0
    %496 = vmatprep.subr.bf16.mxu0 0
    %497 = vmatpush1.bf16.msra.mxu0 0
    %498 = vmatprep.mubr.bf16.mxu0 0
    %499 = vmatmul.mubr.bf16.gmra.mrb[0].mxu0 %v461
    %v500 = vpop.f32.mrb[0].mxu0
    %v501 = vadd.f32 0.0, %v500
    %v502 = vpop.f32.mrb[0].mxu0
    %v503 = vpop.f32.mrb[0].mxu0
    %v504 = vadd.f32 0.0, %v503
    %v505 = vpop.f32.mrb[0].mxu0
    %506 = vmatprep.mubr.bf16.mxu0 0
    %507 = vmatmul.mubr.bf16.gmra.mrb[0].mxu0 %v464
    %v508 = vpop.f32.mrb[0].mxu0
    %v509 = vadd.f32 0.0, %v508
    %v510 = vpop.f32.mrb[0].mxu0
    %v511 = vpop.f32.mrb[0].mxu0
    %v512 = vadd.f32 0.0, %v511
    %v513 = vpop.f32.mrb[0].mxu0
    %514 = vdwg.mxu0
    %v515 = vrcp.pop %v448
    %v516 = vrcp.pop %v451
    %v517 = vrcp.pop %v454
    %v518 = vrcp.pop %v457
    %v519 = vmul.f32 %v501, %v515
    %v520 = vmul.f32 %v504, %v516
    %v521 = vmul.f32 %v509, %v517
    %v522 = vmul.f32 %v512, %v518
    %v523 = vpack.c.bf16 %v520, %v519
    %v524 = vpack.c.bf16 %v522, %v521
    %527 = vrot.lane.b32.xlu0 %v523, 16
    %v528 = vpop.permute.xlu0 %527
    %529 = vrot.lane.b32.xlu0 %v524, 16
    %v530 = vpop.permute.xlu0 %529
    %vm533 = vcmask 261248
    %534 = vst.msk [vmem:[#allocation2] sm:$0xff] %vm533, %v528
    %535 = vst.msk [vmem:[#allocation2 + $0x8] sm:$0xff] %vm533, %v530
    %536 = vrot.lane.b32.xlu0 %v181, 96
    %v537 = vpop.permute.xlu0 %536
    %538 = vrot.lane.b32.xlu0 %v182, 96
    %v539 = vpop.permute.xlu0 %538
    %540 = vrot.lane.b32.xlu0 %v181, 32
    %v541 = vpop.permute.xlu0 %540
    %542 = vrot.lane.b32.xlu0 %v182, 32
    %v543 = vpop.permute.xlu0 %542
    %v545 = vsel %vm189, %v537, 0
    %v548 = vsel %vm189, %v539, 0
    %v551 = vsel %vm189, %v541, 0
    %v554 = vsel %vm189, %v543, 0
    %556 = vmatprep.subr.bf16.mxu0 0
    %557 = vmatpush1.bf16.xpose.msra.mxu0 %v551
    %558 = vmatprep.subr.bf16.mxu0 0
    %559 = vmatpush1.bf16.xpose.msra.mxu0 %v554
    %560 = vmatprep.subr.bf16.mxu0 0
    %561 = vmatpush1.bf16.xpose.msra.mxu0 0
    %562 = vmatprep.subr.bf16.mxu0 0
    %563 = vmatpush1.bf16.xpose.msra.mxu0 0
    %564 = vmatprep.subr.bf16.mxu0 0
    %565 = vmatpush1.bf16.xpose.msra.mxu0 0
    %566 = vmatprep.subr.bf16.mxu0 0
    %567 = vmatpush1.bf16.xpose.msra.mxu0 0
    %568 = vmatprep.subr.bf16.mxu0 0
    %569 = vmatpush1.bf16.xpose.msra.mxu0 0
    %570 = vmatprep.subr.bf16.mxu0 0
    %571 = vmatpush1.bf16.xpose.msra.mxu0 0
    %572 = vmatprep.subr.bf16.mxu0 0
    %573 = vmatpush1.bf16.xpose.msra.mxu0 0
    %574 = vmatprep.subr.bf16.mxu0 0
    %575 = vmatpush1.bf16.xpose.msra.mxu0 0
    %576 = vmatprep.subr.bf16.mxu0 0
    %577 = vmatpush1.bf16.xpose.msra.mxu0 0
    %578 = vmatprep.subr.bf16.mxu0 0
    %579 = vmatpush1.bf16.xpose.msra.mxu0 0
    %580 = vmatprep.subr.bf16.mxu0 0
    %581 = vmatpush1.bf16.xpose.msra.mxu0 0
    %582 = vmatprep.subr.bf16.mxu0 0
    %583 = vmatpush1.bf16.xpose.msra.mxu0 0
    %584 = vmatprep.subr.bf16.mxu0 0
    %585 = vmatpush1.bf16.xpose.msra.mxu0 0
    %586 = vmatprep.subr.bf16.mxu0 0
    %587 = vmatpush1.bf16.xpose.msra.mxu0 0
    %588 = vmatprep.mubr.bf16.mxu0 0
    %589 = vmatmul.mubr.bf16.gmra.mrb[0].mxu0 %v545
    %v590 = vpop.f32.mrb[0].mxu0
    %v591 = vadd.f32 %v46, %v590
    %v592 = vpop.f32.mrb[0].mxu0
    %v593 = vpop.f32.mrb[0].mxu0
    %v594 = vadd.f32 %v47, %v593
    %v595 = vpop.f32.mrb[0].mxu0
    %596 = vmatprep.mubr.bf16.mxu0 0
    %597 = vmatmul.mubr.bf16.gmra.mrb[0].mxu0 %v548
    %v598 = vpop.f32.mrb[0].mxu0
    %v599 = vadd.f32 %v48, %v598
    %v600 = vpop.f32.mrb[0].mxu0
    %v601 = vpop.f32.mrb[0].mxu0
    %v602 = vadd.f32 %v49, %v601
    %v603 = vpop.f32.mrb[0].mxu0
    %604 = vdwg.mxu0
    %v605 = vsel %vm251, %v591, -inf
    %606 = vmax.xlane.f32.xlu0 %v605
    %v607 = vpop.xlane.xlu0 %606
    %v608 = vsel %vm251, %v594, -inf
    %609 = vmax.xlane.f32.xlu0 %v608
    %v610 = vpop.xlane.xlu0 %609
    %v611 = vsel %vm251, %v599, -inf
    %612 = vmax.xlane.f32.xlu0 %v611
    %v613 = vpop.xlane.xlu0 %612
    %v614 = vsel %vm251, %v602, -inf
    %615 = vmax.xlane.f32.xlu0 %v614
    %v616 = vpop.xlane.xlu0 %615
    %v617 = vsub.f32 %v591, %v607
    %v618 = vsub.f32 %v594, %v610
    %v619 = vsub.f32 %v599, %v613
    %v620 = vsub.f32 %v602, %v616
    %v621 = vmul.f32 %v617, 1.442695
    %v622 = vpow.pop %v621
    %v623 = vmul.f32 %v618, 1.442695
    %v624 = vpow.pop %v623
    %v625 = vmul.f32 %v619, 1.442695
    %v626 = vpow.pop %v625
    %v627 = vmul.f32 %v620, 1.442695
    %v628 = vpow.pop %v627
    %v629 = vsel %vm251, %v622, 0.0
    %630 = vadd.xlane.f32.xlu0 %v629
    %v631 = vpop.xlane.xlu0 %630
    %v632 = vsel %vm251, %v624, 0.0
    %633 = vadd.xlane.f32.xlu0 %v632
    %v634 = vpop.xlane.xlu0 %633
    %v635 = vsel %vm251, %v626, 0.0
    %636 = vadd.xlane.f32.xlu0 %v635
    %v637 = vpop.xlane.xlu0 %636
    %v638 = vsel %vm251, %v628, 0.0
    %639 = vadd.xlane.f32.xlu0 %v638
    %v640 = vpop.xlane.xlu0 %639
    %v641 = vpack.c.bf16 %v624, %v622
    %v642 = vpack.c.bf16 %v628, %v626
    %643 = vrot.lane.b32.xlu0 %v181, 16
    %v644 = vpop.permute.xlu0 %643
    %645 = vrot.lane.b32.xlu0 %v182, 16
    %v646 = vpop.permute.xlu0 %645
    %v650 = vsel %vm251, %v641, 0
    %v653 = vsel %vm251, %v642, 0
    %655 = vmatprep.subr.bf16.mxu0 0
    %656 = vmatpush1.bf16.msra.mxu0 %v644
    %657 = vmatprep.subr.bf16.mxu0 0
    %658 = vmatpush1.bf16.msra.mxu0 %v646
    %659 = vmatprep.subr.bf16.mxu0 0
    %660 = vmatpush1.bf16.msra.mxu0 0
    %661 = vmatprep.subr.bf16.mxu0 0
    %662 = vmatpush1.bf16.msra.mxu0 0
    %663 = vmatprep.subr.bf16.mxu0 0
    %664 = vmatpush1.bf16.msra.mxu0 0
    %665 = vmatprep.subr.bf16.mxu0 0
    %666 = vmatpush1.bf16.msra.mxu0 0
    %667 = vmatprep.subr.bf16.mxu0 0
    %668 = vmatpush1.bf16.msra.mxu0 0
    %669 = vmatprep.subr.bf16.mxu0 0
    %670 = vmatpush1.bf16.msra.mxu0 0
    %671 = vmatprep.subr.bf16.mxu0 0
    %672 = vmatpush1.bf16.msra.mxu0 0
    %673 = vmatprep.subr.bf16.mxu0 0
    %674 = vmatpush1.bf16.msra.mxu0 0
    %675 = vmatprep.subr.bf16.mxu0 0
    %676 = vmatpush1.bf16.msra.mxu0 0
    %677 = vmatprep.subr.bf16.mxu0 0
    %678 = vmatpush1.bf16.msra.mxu0 0
    %679 = vmatprep.subr.bf16.mxu0 0
    %680 = vmatpush1.bf16.msra.mxu0 0
    %681 = vmatprep.subr.bf16.mxu0 0
    %682 = vmatpush1.bf16.msra.mxu0 0
    %683 = vmatprep.subr.bf16.mxu0 0
    %684 = vmatpush1.bf16.msra.mxu0 0
    %685 = vmatprep.subr.bf16.mxu0 0
    %686 = vmatpush1.bf16.msra.mxu0 0
    %687 = vmatprep.mubr.bf16.mxu0 0
    %688 = vmatmul.mubr.bf16.gmra.mrb[0].mxu0 %v650
    %v689 = vpop.f32.mrb[0].mxu0
    %v690 = vadd.f32 0.0, %v689
    %v691 = vpop.f32.mrb[0].mxu0
    %v692 = vpop.f32.mrb[0].mxu0
    %v693 = vadd.f32 0.0, %v692
    %v694 = vpop.f32.mrb[0].mxu0
    %695 = vmatprep.mubr.bf16.mxu0 0
    %696 = vmatmul.mubr.bf16.gmra.mrb[0].mxu0 %v653
    %v697 = vpop.f32.mrb[0].mxu0
    %v698 = vadd.f32 0.0, %v697
    %v699 = vpop.f32.mrb[0].mxu0
    %v700 = vpop.f32.mrb[0].mxu0
    %v701 = vadd.f32 0.0, %v700
    %v702 = vpop.f32.mrb[0].mxu0
    %703 = vdwg.mxu0
    %v704 = vrcp.pop %v631
    %v705 = vrcp.pop %v634
    %v706 = vrcp.pop %v637
    %v707 = vrcp.pop %v640
    %v708 = vmul.f32 %v690, %v704
    %v709 = vmul.f32 %v693, %v705
    %v710 = vmul.f32 %v698, %v706
    %v711 = vmul.f32 %v701, %v707
    %v712 = vpack.c.bf16 %v709, %v708
    %v713 = vpack.c.bf16 %v711, %v710
    %716 = vrot.lane.b32.xlu0 %v712, 32
    %v717 = vpop.permute.xlu0 %716
    %718 = vrot.lane.b32.xlu0 %v713, 32
    %v719 = vpop.permute.xlu0 %718
    %vm722 = vcmask 392448
    %723 = vst.msk [vmem:[#allocation2] sm:$0xff] %vm722, %v717
    %724 = vst.msk [vmem:[#allocation2 + $0x8] sm:$0xff] %vm722, %v719
    %725 = vrot.lane.b32.xlu0 %v181, 80
    %v726 = vpop.permute.xlu0 %725
    %727 = vrot.lane.b32.xlu0 %v182, 80
    %v728 = vpop.permute.xlu0 %727
    %v730 = vsel %vm189, %v726, 0
    %v733 = vsel %vm189, %v728, 0
    %735 = vmatprep.subr.bf16.mxu0 0
    %736 = vmatpush1.bf16.xpose.msra.mxu0 %v551
    %737 = vmatprep.subr.bf16.mxu0 0
    %738 = vmatpush1.bf16.xpose.msra.mxu0 %v554
    %739 = vmatprep.subr.bf16.mxu0 0
    %740 = vmatpush1.bf16.xpose.msra.mxu0 0
    %741 = vmatprep.subr.bf16.mxu0 0
    %742 = vmatpush1.bf16.xpose.msra.mxu0 0
    %743 = vmatprep.subr.bf16.mxu0 0
    %744 = vmatpush1.bf16.xpose.msra.mxu0 0
    %745 = vmatprep.subr.bf16.mxu0 0
    %746 = vmatpush1.bf16.xpose.msra.mxu0 0
    %747 = vmatprep.subr.bf16.mxu0 0
    %748 = vmatpush1.bf16.xpose.msra.mxu0 0
    %749 = vmatprep.subr.bf16.mxu0 0
    %750 = vmatpush1.bf16.xpose.msra.mxu0 0
    %751 = vmatprep.subr.bf16.mxu0 0
    %752 = vmatpush1.bf16.xpose.msra.mxu0 0
    %753 = vmatprep.subr.bf16.mxu0 0
    %754 = vmatpush1.bf16.xpose.msra.mxu0 0
    %755 = vmatprep.subr.bf16.mxu0 0
    %756 = vmatpush1.bf16.xpose.msra.mxu0 0
    %757 = vmatprep.subr.bf16.mxu0 0
    %758 = vmatpush1.bf16.xpose.msra.mxu0 0
    %759 = vmatprep.subr.bf16.mxu0 0
    %760 = vmatpush1.bf16.xpose.msra.mxu0 0
    %761 = vmatprep.subr.bf16.mxu0 0
    %762 = vmatpush1.bf16.xpose.msra.mxu0 0
    %763 = vmatprep.subr.bf16.mxu0 0
    %764 = vmatpush1.bf16.xpose.msra.mxu0 0
    %765 = vmatprep.subr.bf16.mxu0 0
    %766 = vmatpush1.bf16.xpose.msra.mxu0 0
    %767 = vmatprep.mubr.bf16.mxu0 0
    %768 = vmatmul.mubr.bf16.gmra.mrb[0].mxu0 %v730
    %v769 = vpop.f32.mrb[0].mxu0
    %v770 = vadd.f32 %v46, %v769
    %v771 = vpop.f32.mrb[0].mxu0
    %v772 = vpop.f32.mrb[0].mxu0
    %v773 = vadd.f32 %v47, %v772
    %v774 = vpop.f32.mrb[0].mxu0
    %775 = vmatprep.mubr.bf16.mxu0 0
    %776 = vmatmul.mubr.bf16.gmra.mrb[0].mxu0 %v733
    %v777 = vpop.f32.mrb[0].mxu0
    %v778 = vadd.f32 %v48, %v777
    %v779 = vpop.f32.mrb[0].mxu0
    %v780 = vpop.f32.mrb[0].mxu0
    %v781 = vadd.f32 %v49, %v780
    %v782 = vpop.f32.mrb[0].mxu0
    %783 = vdwg.mxu0
    %v784 = vsel %vm251, %v770, -inf
    %785 = vmax.xlane.f32.xlu0 %v784
    %v786 = vpop.xlane.xlu0 %785
    %v787 = vsel %vm251, %v773, -inf
    %788 = vmax.xlane.f32.xlu0 %v787
    %v789 = vpop.xlane.xlu0 %788
    %v790 = vsel %vm251, %v778, -inf
    %791 = vmax.xlane.f32.xlu0 %v790
    %v792 = vpop.xlane.xlu0 %791
    %v793 = vsel %vm251, %v781, -inf
    %794 = vmax.xlane.f32.xlu0 %v793
    %v795 = vpop.xlane.xlu0 %794
    %v796 = vsub.f32 %v770, %v786
    %v797 = vsub.f32 %v773, %v789
    %v798 = vsub.f32 %v778, %v792
    %v799 = vsub.f32 %v781, %v795
    %v800 = vmul.f32 %v796, 1.442695
    %v801 = vpow.pop %v800
    %v802 = vmul.f32 %v797, 1.442695
    %v803 = vpow.pop %v802
    %v804 = vmul.f32 %v798, 1.442695
    %v805 = vpow.pop %v804
    %v806 = vmul.f32 %v799, 1.442695
    %v807 = vpow.pop %v806
    %v808 = vsel %vm251, %v801, 0.0
    %809 = vadd.xlane.f32.xlu0 %v808
    %v810 = vpop.xlane.xlu0 %809
    %v811 = vsel %vm251, %v803, 0.0
    %812 = vadd.xlane.f32.xlu0 %v811
    %v813 = vpop.xlane.xlu0 %812
    %v814 = vsel %vm251, %v805, 0.0
    %815 = vadd.xlane.f32.xlu0 %v814
    %v816 = vpop.xlane.xlu0 %815
    %v817 = vsel %vm251, %v807, 0.0
    %818 = vadd.xlane.f32.xlu0 %v817
    %v819 = vpop.xlane.xlu0 %818
    %v820 = vpack.c.bf16 %v803, %v801
    %v821 = vpack.c.bf16 %v807, %v805
    %v823 = vsel %vm251, %v820, 0
    %v826 = vsel %vm251, %v821, 0
    %828 = vmatprep.subr.bf16.mxu0 0
    %829 = vmatpush1.bf16.msra.mxu0 %v644
    %830 = vmatprep.subr.bf16.mxu0 0
    %831 = vmatpush1.bf16.msra.mxu0 %v646
    %832 = vmatprep.subr.bf16.mxu0 0
    %833 = vmatpush1.bf16.msra.mxu0 0
    %834 = vmatprep.subr.bf16.mxu0 0
    %835 = vmatpush1.bf16.msra.mxu0 0
    %836 = vmatprep.subr.bf16.mxu0 0
    %837 = vmatpush1.bf16.msra.mxu0 0
    %838 = vmatprep.subr.bf16.mxu0 0
    %839 = vmatpush1.bf16.msra.mxu0 0
    %840 = vmatprep.subr.bf16.mxu0 0
    %841 = vmatpush1.bf16.msra.mxu0 0
    %842 = vmatprep.subr.bf16.mxu0 0
    %843 = vmatpush1.bf16.msra.mxu0 0
    %844 = vmatprep.subr.bf16.mxu0 0
    %845 = vmatpush1.bf16.msra.mxu0 0
    %846 = vmatprep.subr.bf16.mxu0 0
    %847 = vmatpush1.bf16.msra.mxu0 0
    %848 = vmatprep.subr.bf16.mxu0 0
    %849 = vmatpush1.bf16.msra.mxu0 0
    %850 = vmatprep.subr.bf16.mxu0 0
    %851 = vmatpush1.bf16.msra.mxu0 0
    %852 = vmatprep.subr.bf16.mxu0 0
    %853 = vmatpush1.bf16.msra.mxu0 0
    %854 = vmatprep.subr.bf16.mxu0 0
    %855 = vmatpush1.bf16.msra.mxu0 0
    %856 = vmatprep.subr.bf16.mxu0 0
    %857 = vmatpush1.bf16.msra.mxu0 0
    %858 = vmatprep.subr.bf16.mxu0 0
    %859 = vmatpush1.bf16.msra.mxu0 0
    %860 = vmatprep.mubr.bf16.mxu0 0
    %861 = vmatmul.mubr.bf16.gmra.mrb[0].mxu0 %v823
    %v862 = vpop.f32.mrb[0].mxu0
    %v863 = vadd.f32 0.0, %v862
    %v864 = vpop.f32.mrb[0].mxu0
    %v865 = vpop.f32.mrb[0].mxu0
    %v866 = vadd.f32 0.0, %v865
    %v867 = vpop.f32.mrb[0].mxu0
    %868 = vmatprep.mubr.bf16.mxu0 0
    %869 = vmatmul.mubr.bf16.gmra.mrb[0].mxu0 %v826
    %v870 = vpop.f32.mrb[0].mxu0
    %v871 = vadd.f32 0.0, %v870
    %v872 = vpop.f32.mrb[0].mxu0
    %v873 = vpop.f32.mrb[0].mxu0
    %v874 = vadd.f32 0.0, %v873
    %v875 = vpop.f32.mrb[0].mxu0
    %876 = vdwg.mxu0
    %v877 = vrcp.pop %v810
    %v878 = vrcp.pop %v813
    %v879 = vrcp.pop %v816
    %v880 = vrcp.pop %v819
    %v881 = vmul.f32 %v863, %v877
    %v882 = vmul.f32 %v866, %v878
    %v883 = vmul.f32 %v871, %v879
    %v884 = vmul.f32 %v874, %v880
    %v885 = vpack.c.bf16 %v882, %v881
    %v886 = vpack.c.bf16 %v884, %v883
    %889 = vrot.lane.b32.xlu0 %v885, 48
    %v890 = vpop.permute.xlu0 %889
    %891 = vrot.lane.b32.xlu0 %v886, 48
    %v892 = vpop.permute.xlu0 %891
    %vm895 = vcmask 523648
    %896 = vst.msk [vmem:[#allocation2] sm:$0xff] %vm895, %v890
    %897 = vst.msk [vmem:[#allocation2 + $0x8] sm:$0xff] %vm895, %v892
    %v898 = vld [vmem:[#allocation2] sm:$0xff]
    %v899 = vld [vmem:[#allocation2 + $0x8] sm:$0xff]
    %v900 = vld [vmem:[%s2] sm:$0xf]
    %v901 = vld [vmem:[%s2 + $0x4] sm:$0xf]
    %v902 = vld [vmem:[%s2 + $0x8] sm:$0xf]
    %v903 = vld [vmem:[%s2 + $0xc] sm:$0xf]
    %v904 = vld [vmem:[%s2 + $0x10] sm:$0xf]
    %v905 = vld [vmem:[%s2 + $0x14] sm:$0xf]
    %v906 = vld [vmem:[%s2 + $0x18] sm:$0xf]
    %v907 = vld [vmem:[%s2 + $0x1c] sm:$0xf]
    %v916 = vunpack.c.l.b16 %v900
    %v917 = vunpack.c.l.b16 %v901
    %v918 = vunpack.c.l.b16 %v902
    %v919 = vunpack.c.l.b16 %v903
    %v920 = vunpack.c.l.b16 %v904
    %v921 = vunpack.c.l.b16 %v905
    %v922 = vunpack.c.l.b16 %v906
    %v923 = vunpack.c.l.b16 %v907
    %v924 = vpack.c.b16 %v917, %v916
    %v925 = vpack.c.b16 %v919, %v918
    %v926 = vpack.c.b16 %v921, %v920
    %v927 = vpack.c.b16 %v923, %v922
    %v933 = vsel %vm62, %v898, 0
    %v936 = vsel %vm62, %v899, 0
    %938 = vmatprep.subr.bf16.mxu0 0
    %939 = vmatpush1.bf16.msra.mxu0 %v924
    %940 = vmatprep.subr.bf16.mxu0 0
    %941 = vmatpush1.bf16.msra.mxu0 %v925
    %942 = vmatprep.subr.bf16.mxu0 0
    %943 = vmatpush1.bf16.msra.mxu0 %v926
    %944 = vmatprep.subr.bf16.mxu0 0
    %945 = vmatpush1.bf16.msra.mxu0 %v927
    %946 = vmatprep.subr.bf16.mxu0 0
    %947 = vmatpush1.bf16.msra.mxu0 0
    %948 = vmatprep.subr.bf16.mxu0 0
    %949 = vmatpush1.bf16.msra.mxu0 0
    %950 = vmatprep.subr.bf16.mxu0 0
    %951 = vmatpush1.bf16.msra.mxu0 0
    %952 = vmatprep.subr.bf16.mxu0 0
    %953 = vmatpush1.bf16.msra.mxu0 0
    %954 = vmatprep.subr.bf16.mxu0 0
    %955 = vmatpush1.bf16.msra.mxu0 0
    %956 = vmatprep.subr.bf16.mxu0 0
    %957 = vmatpush1.bf16.msra.mxu0 0
    %958 = vmatprep.subr.bf16.mxu0 0
    %959 = vmatpush1.bf16.msra.mxu0 0
    %960 = vmatprep.subr.bf16.mxu0 0
    %961 = vmatpush1.bf16.msra.mxu0 0
    %962 = vmatprep.subr.bf16.mxu0 0
    %963 = vmatpush1.bf16.msra.mxu0 0
    %964 = vmatprep.subr.bf16.mxu0 0
    %965 = vmatpush1.bf16.msra.mxu0 0
    %966 = vmatprep.subr.bf16.mxu0 0
    %967 = vmatpush1.bf16.msra.mxu0 0
    %968 = vmatprep.subr.bf16.mxu0 0
    %969 = vmatpush1.bf16.msra.mxu0 0
    %970 = vmatprep.mubr.bf16.mxu0 0
    %971 = vmatmul.mubr.bf16.gmra.mrb[0].mxu0 %v933
    %v972 = vpop.f32.mrb[0].mxu0
    %v973 = vadd.f32 0.0, %v972
    %v974 = vpop.f32.mrb[0].mxu0
    %v975 = vpop.f32.mrb[0].mxu0
    %v976 = vadd.f32 0.0, %v975
    %v977 = vpop.f32.mrb[0].mxu0
    %978 = vmatprep.mubr.bf16.mxu0 0
    %979 = vmatmul.mubr.bf16.gmra.mrb[0].mxu0 %v936
    %v980 = vpop.f32.mrb[0].mxu0
    %v981 = vadd.f32 0.0, %v980
    %v982 = vpop.f32.mrb[0].mxu0
    %v983 = vpop.f32.mrb[0].mxu0
    %v984 = vadd.f32 0.0, %v983
    %v985 = vpop.f32.mrb[0].mxu0
    %986 = vdwg.mxu0
    %v987 = vpack.c.bf16 %v976, %v973
    %v988 = vpack.c.bf16 %v984, %v981
    %v991 = vunpack.c.l.b16 %v987
    %v992 = vunpack.c.h.b16 %v987
    %v993 = vunpack.c.l.b16 %v988
    %v994 = vunpack.c.h.b16 %v988
    %v995 = vpack.c.b16 %v991, %v991
    %v996 = vpack.c.b16 %v992, %v992
    %v997 = vpack.c.b16 %v993, %v993
    %v998 = vpack.c.b16 %v994, %v994
    %v1003 = vadd.bf16 %v50, %v995
    %v1004 = vadd.bf16 %v51, %v996
    %v1005 = vadd.bf16 %v52, %v997
    %v1006 = vadd.bf16 %v53, %v998
    %v1007 = vunpack.c.l.bf16 %v1003
    %v1008 = vunpack.c.l.bf16 %v1004
    %v1009 = vunpack.c.l.bf16 %v1005
    %v1010 = vunpack.c.l.bf16 %v1006
    %v1011 = vmul.f32 %v1007, %v1007
    %v1012 = vmul.f32 %v1008, %v1008
    %v1013 = vmul.f32 %v1009, %v1009
    %v1014 = vmul.f32 %v1010, %v1010
    %v1015 = vsel %vm62, %v1011, 0.0
    %1016 = vadd.xlane.f32.xlu0 %v1015
    %v1017 = vpop.xlane.xlu0 %1016
    %v1018 = vsel %vm62, %v1012, 0.0
    %1019 = vadd.xlane.f32.xlu0 %v1018
    %v1020 = vpop.xlane.xlu0 %1019
    %v1021 = vsel %vm62, %v1013, 0.0
    %1022 = vadd.xlane.f32.xlu0 %v1021
    %v1023 = vpop.xlane.xlu0 %1022
    %v1024 = vsel %vm62, %v1014, 0.0
    %1025 = vadd.xlane.f32.xlu0 %v1024
    %v1026 = vpop.xlane.xlu0 %1025
    %v1027 = vmul.f32 %v1017, %v75
    %v1028 = vmul.f32 %v1020, %v75
    %v1029 = vmul.f32 %v1023, %v75
    %v1030 = vmul.f32 %v1026, %v75
    %v1031 = vadd.f32 %v1027, 1e-05
    %v1032 = vadd.f32 %v1028, 1e-05
    %v1033 = vadd.f32 %v1029, 1e-05
    %v1034 = vadd.f32 %v1030, 1e-05
    %v1035 = vrsqrt.pop %v1031
    %v1036 = vrsqrt.pop %v1032
    %v1037 = vrsqrt.pop %v1033
    %v1038 = vrsqrt.pop %v1034
    %v1039 = vmul.f32 %v1007, %v1035
    %v1040 = vmul.f32 %v1008, %v1036
    %v1041 = vmul.f32 %v1009, %v1037
    %v1042 = vmul.f32 %v1010, %v1038
    %v1043 = vpack.c.bf16 %v1040, %v1039
    %v1044 = vpack.c.bf16 %v1042, %v1041
    %v1045 = vld [vmem:[%s3] sm:$0xff]
    %v1046 = vld [vmem:[%s3 + $0x8] sm:$0xff]
    %v1047 = vld [vmem:[%s3 + $0x10] sm:$0xff]
    %v1048 = vld [vmem:[%s3 + $0x18] sm:$0xff]
    %v1049 = vld [vmem:[%s3 + $0x20] sm:$0xff]
    %v1050 = vld [vmem:[%s3 + $0x28] sm:$0xff]
    %v1051 = vld [vmem:[%s3 + $0x30] sm:$0xff]
    %v1052 = vld [vmem:[%s3 + $0x38] sm:$0xff]
    %v1053 = vld [vmem:[%s3 + $0x40] sm:$0xff]
    %v1054 = vld [vmem:[%s3 + $0x48] sm:$0xff]
    %v1055 = vld [vmem:[%s3 + $0x50] sm:$0xff]
    %v1056 = vld [vmem:[%s3 + $0x58] sm:$0xff]
    %v1057 = vld [vmem:[%s3 + $0x60] sm:$0xff]
    %v1058 = vld [vmem:[%s3 + $0x68] sm:$0xff]
    %v1059 = vld [vmem:[%s3 + $0x70] sm:$0xff]
    %v1060 = vld [vmem:[%s3 + $0x78] sm:$0xff]
    %v1077 = vunpack.c.l.b16 %v1045
    %v1078 = vunpack.c.h.b16 %v1045
    %v1079 = vunpack.c.l.b16 %v1046
    %v1080 = vunpack.c.h.b16 %v1046
    %v1081 = vunpack.c.l.b16 %v1047
    %v1082 = vunpack.c.h.b16 %v1047
    %v1083 = vunpack.c.l.b16 %v1048
    %v1084 = vunpack.c.h.b16 %v1048
    %v1085 = vunpack.c.l.b16 %v1049
    %v1086 = vunpack.c.h.b16 %v1049
    %v1087 = vunpack.c.l.b16 %v1050
    %v1088 = vunpack.c.h.b16 %v1050
    %v1089 = vunpack.c.l.b16 %v1051
    %v1090 = vunpack.c.h.b16 %v1051
    %v1091 = vunpack.c.l.b16 %v1052
    %v1092 = vunpack.c.h.b16 %v1052
    %v1093 = vunpack.c.l.b16 %v1053
    %v1094 = vunpack.c.h.b16 %v1053
    %v1095 = vunpack.c.l.b16 %v1054
    %v1096 = vunpack.c.h.b16 %v1054
    %v1097 = vunpack.c.l.b16 %v1055
    %v1098 = vunpack.c.h.b16 %v1055
    %v1099 = vunpack.c.l.b16 %v1056
    %v1100 = vunpack.c.h.b16 %v1056
    %v1101 = vunpack.c.l.b16 %v1057
    %v1102 = vunpack.c.h.b16 %v1057
    %v1103 = vunpack.c.l.b16 %v1058
    %v1104 = vunpack.c.h.b16 %v1058
    %v1105 = vunpack.c.l.b16 %v1059
    %v1106 = vunpack.c.h.b16 %v1059
    %v1107 = vunpack.c.l.b16 %v1060
    %v1108 = vunpack.c.h.b16 %v1060
    %v1109 = vpack.c.b16 %v1081, %v1077
    %v1110 = vpack.c.b16 %v1082, %v1078
    %v1111 = vpack.c.b16 %v1083, %v1079
    %v1112 = vpack.c.b16 %v1084, %v1080
    %v1113 = vpack.c.b16 %v1089, %v1085
    %v1114 = vpack.c.b16 %v1090, %v1086
    %v1115 = vpack.c.b16 %v1091, %v1087
    %v1116 = vpack.c.b16 %v1092, %v1088
    %v1117 = vpack.c.b16 %v1097, %v1093
    %v1118 = vpack.c.b16 %v1098, %v1094
    %v1119 = vpack.c.b16 %v1099, %v1095
    %v1120 = vpack.c.b16 %v1100, %v1096
    %v1121 = vpack.c.b16 %v1105, %v1101
    %v1122 = vpack.c.b16 %v1106, %v1102
    %v1123 = vpack.c.b16 %v1107, %v1103
    %v1124 = vpack.c.b16 %v1108, %v1104
    %v1142 = vsel %vm62, %v1043, 0
    %v1145 = vsel %vm62, %v1044, 0
    %1147 = vmatprep.subr.bf16.mxu0 %v1110
    %1148 = vmatpush1.bf16.msra.mxu0 %v1109
    %1149 = vmatprep.subr.bf16.mxu0 %v1114
    %1150 = vmatpush1.bf16.msra.mxu0 %v1113
    %1151 = vmatprep.subr.bf16.mxu0 %v1118
    %1152 = vmatpush1.bf16.msra.mxu0 %v1117
    %1153 = vmatprep.subr.bf16.mxu0 %v1122
    %1154 = vmatpush1.bf16.msra.mxu0 %v1121
    %1155 = vmatprep.subr.bf16.mxu0 0
    %1156 = vmatpush1.bf16.msra.mxu0 0
    %1157 = vmatprep.subr.bf16.mxu0 0
    %1158 = vmatpush1.bf16.msra.mxu0 0
    %1159 = vmatprep.subr.bf16.mxu0 0
    %1160 = vmatpush1.bf16.msra.mxu0 0
    %1161 = vmatprep.subr.bf16.mxu0 0
    %1162 = vmatpush1.bf16.msra.mxu0 0
    %1163 = vmatprep.subr.bf16.mxu0 0
    %1164 = vmatpush1.bf16.msra.mxu0 0
    %1165 = vmatprep.subr.bf16.mxu0 0
    %1166 = vmatpush1.bf16.msra.mxu0 0
    %1167 = vmatprep.subr.bf16.mxu0 0
    %1168 = vmatpush1.bf16.msra.mxu0 0
    %1169 = vmatprep.subr.bf16.mxu0 0
    %1170 = vmatpush1.bf16.msra.mxu0 0
    %1171 = vmatprep.subr.bf16.mxu0 0
    %1172 = vmatpush1.bf16.msra.mxu0 0
    %1173 = vmatprep.subr.bf16.mxu0 0
    %1174 = vmatpush1.bf16.msra.mxu0 0
    %1175 = vmatprep.subr.bf16.mxu0 0
    %1176 = vmatpush1.bf16.msra.mxu0 0
    %1177 = vmatprep.subr.bf16.mxu0 0
    %1178 = vmatpush1.bf16.msra.mxu0 0
    %1179 = vmatprep.mubr.bf16.mxu0 0
    %1180 = vmatmul.mubr.bf16.gmra.mrb[0].mxu0 %v1142
    %v1181 = vpop.f32.mrb[0].mxu0
    %v1182 = vadd.f32 0.0, %v1181
    %v1183 = vpop.f32.mrb[0].mxu0
    %v1184 = vadd.f32 0.0, %v1183
    %v1185 = vpop.f32.mrb[0].mxu0
    %v1186 = vadd.f32 0.0, %v1185
    %v1187 = vpop.f32.mrb[0].mxu0
    %v1188 = vadd.f32 0.0, %v1187
    %1189 = vmatprep.mubr.bf16.mxu0 0
    %1190 = vmatmul.mubr.bf16.gmra.mrb[0].mxu0 %v1145
    %v1191 = vpop.f32.mrb[0].mxu0
    %v1192 = vadd.f32 0.0, %v1191
    %v1193 = vpop.f32.mrb[0].mxu0
    %v1194 = vadd.f32 0.0, %v1193
    %v1195 = vpop.f32.mrb[0].mxu0
    %v1196 = vadd.f32 0.0, %v1195
    %v1197 = vpop.f32.mrb[0].mxu0
    %v1198 = vadd.f32 0.0, %v1197
    %1199 = vdwg.mxu0
    %1200 = vmatprep.subr.bf16.mxu0 %v1112
    %1201 = vmatpush1.bf16.msra.mxu0 %v1111
    %1202 = vmatprep.subr.bf16.mxu0 %v1116
    %1203 = vmatpush1.bf16.msra.mxu0 %v1115
    %1204 = vmatprep.subr.bf16.mxu0 %v1120
    %1205 = vmatpush1.bf16.msra.mxu0 %v1119
    %1206 = vmatprep.subr.bf16.mxu0 %v1124
    %1207 = vmatpush1.bf16.msra.mxu0 %v1123
    %1208 = vmatprep.subr.bf16.mxu0 0
    %1209 = vmatpush1.bf16.msra.mxu0 0
    %1210 = vmatprep.subr.bf16.mxu0 0
    %1211 = vmatpush1.bf16.msra.mxu0 0
    %1212 = vmatprep.subr.bf16.mxu0 0
    %1213 = vmatpush1.bf16.msra.mxu0 0
    %1214 = vmatprep.subr.bf16.mxu0 0
    %1215 = vmatpush1.bf16.msra.mxu0 0
    %1216 = vmatprep.subr.bf16.mxu0 0
    %1217 = vmatpush1.bf16.msra.mxu0 0
    %1218 = vmatprep.subr.bf16.mxu0 0
    %1219 = vmatpush1.bf16.msra.mxu0 0
    %1220 = vmatprep.subr.bf16.mxu0 0
    %1221 = vmatpush1.bf16.msra.mxu0 0
    %1222 = vmatprep.subr.bf16.mxu0 0
    %1223 = vmatpush1.bf16.msra.mxu0 0
    %1224 = vmatprep.subr.bf16.mxu0 0
    %1225 = vmatpush1.bf16.msra.mxu0 0
    %1226 = vmatprep.subr.bf16.mxu0 0
    %1227 = vmatpush1.bf16.msra.mxu0 0
    %1228 = vmatprep.subr.bf16.mxu0 0
    %1229 = vmatpush1.bf16.msra.mxu0 0
    %1230 = vmatprep.subr.bf16.mxu0 0
    %1231 = vmatpush1.bf16.msra.mxu0 0
    %1232 = vmatprep.mubr.bf16.mxu0 0
    %1233 = vmatmul.mubr.bf16.gmra.mrb[0].mxu0 %v1142
    %v1234 = vpop.f32.mrb[0].mxu0
    %v1235 = vadd.f32 0.0, %v1234
    %v1236 = vpop.f32.mrb[0].mxu0
    %v1237 = vadd.f32 0.0, %v1236
    %v1238 = vpop.f32.mrb[0].mxu0
    %v1239 = vadd.f32 0.0, %v1238
    %v1240 = vpop.f32.mrb[0].mxu0
    %v1241 = vadd.f32 0.0, %v1240
    %1242 = vmatprep.mubr.bf16.mxu0 0
    %1243 = vmatmul.mubr.bf16.gmra.mrb[0].mxu0 %v1145
    %v1244 = vpop.f32.mrb[0].mxu0
    %v1245 = vadd.f32 0.0, %v1244
    %v1246 = vpop.f32.mrb[0].mxu0
    %v1247 = vadd.f32 0.0, %v1246
    %v1248 = vpop.f32.mrb[0].mxu0
    %v1249 = vadd.f32 0.0, %v1248
    %v1250 = vpop.f32.mrb[0].mxu0
    %v1251 = vadd.f32 0.0, %v1250
    %1252 = vdwg.mxu0
    %v1253 = vxor.u32 %v1182, 2147483648
    %v1254 = vxor.u32 %v1184, 2147483648
    %v1255 = vxor.u32 %v1186, 2147483648
    %v1256 = vxor.u32 %v1188, 2147483648
    %v1257 = vxor.u32 %v1192, 2147483648
    %v1258 = vxor.u32 %v1194, 2147483648
    %v1259 = vxor.u32 %v1196, 2147483648
    %v1260 = vxor.u32 %v1198, 2147483648
    %v1261 = vmul.f32 %v1253, 1.442695
    %v1262 = vpow.pop %v1261
    %v1263 = vmul.f32 %v1254, 1.442695
    %v1264 = vpow.pop %v1263
    %v1265 = vmul.f32 %v1255, 1.442695
    %v1266 = vpow.pop %v1265
    %v1267 = vmul.f32 %v1256, 1.442695
    %v1268 = vpow.pop %v1267
    %v1269 = vmul.f32 %v1257, 1.442695
    %v1270 = vpow.pop %v1269
    %v1271 = vmul.f32 %v1258, 1.442695
    %v1272 = vpow.pop %v1271
    %v1273 = vmul.f32 %v1259, 1.442695
    %v1274 = vpow.pop %v1273
    %v1275 = vmul.f32 %v1260, 1.442695
    %v1276 = vpow.pop %v1275
    %v1277 = vadd.f32 %v1262, 1.0
    %v1278 = vadd.f32 %v1264, 1.0
    %v1279 = vadd.f32 %v1266, 1.0
    %v1280 = vadd.f32 %v1268, 1.0
    %v1281 = vadd.f32 %v1270, 1.0
    %v1282 = vadd.f32 %v1272, 1.0
    %v1283 = vadd.f32 %v1274, 1.0
    %v1284 = vadd.f32 %v1276, 1.0
    %v1285 = vrcp.pop %v1277
    %v1286 = vmul.f32 1.0, %v1285
    %v1287 = vrcp.pop %v1278
    %v1288 = vmul.f32 1.0, %v1287
    %v1289 = vrcp.pop %v1279
    %v1290 = vmul.f32 1.0, %v1289
    %v1291 = vrcp.pop %v1280
    %v1292 = vmul.f32 1.0, %v1291
    %v1293 = vrcp.pop %v1281
    %v1294 = vmul.f32 1.0, %v1293
    %v1295 = vrcp.pop %v1282
    %v1296 = vmul.f32 1.0, %v1295
    %v1297 = vrcp.pop %v1283
    %v1298 = vmul.f32 1.0, %v1297
    %v1299 = vrcp.pop %v1284
    %v1300 = vmul.f32 1.0, %v1299
    %v1301 = vmul.f32 %v1182, %v1286
    %v1302 = vmul.f32 %v1184, %v1288
    %v1303 = vmul.f32 %v1186, %v1290
    %v1304 = vmul.f32 %v1188, %v1292
    %v1305 = vmul.f32 %v1192, %v1294
    %v1306 = vmul.f32 %v1194, %v1296
    %v1307 = vmul.f32 %v1196, %v1298
    %v1308 = vmul.f32 %v1198, %v1300
    %v1309 = vmul.f32 %v1301, %v1235
    %v1310 = vmul.f32 %v1302, %v1237
    %v1311 = vmul.f32 %v1303, %v1239
    %v1312 = vmul.f32 %v1304, %v1241
    %v1313 = vmul.f32 %v1305, %v1245
    %v1314 = vmul.f32 %v1306, %v1247
    %v1315 = vmul.f32 %v1307, %v1249
    %v1316 = vmul.f32 %v1308, %v1251
    %v1317 = vpack.c.bf16 %v1311, %v1309
    %v1318 = vpack.c.bf16 %v1312, %v1310
    %v1319 = vpack.c.bf16 %v1315, %v1313
    %v1320 = vpack.c.bf16 %v1316, %v1314
    %v1321 = vld [vmem:[%s4] sm:$0xf]
    %v1322 = vld [vmem:[%s4 + $0x4] sm:$0xf]
    %v1323 = vld [vmem:[%s4 + $0x8] sm:$0xf]
    %v1324 = vld [vmem:[%s4 + $0xc] sm:$0xf]
    %v1325 = vld [vmem:[%s4 + $0x10] sm:$0xf]
    %v1326 = vld [vmem:[%s4 + $0x14] sm:$0xf]
    %v1327 = vld [vmem:[%s4 + $0x18] sm:$0xf]
    %v1328 = vld [vmem:[%s4 + $0x1c] sm:$0xf]
    %v1329 = vld [vmem:[%s4 + $0x20] sm:$0xf]
    %v1330 = vld [vmem:[%s4 + $0x24] sm:$0xf]
    %v1331 = vld [vmem:[%s4 + $0x28] sm:$0xf]
    %v1332 = vld [vmem:[%s4 + $0x2c] sm:$0xf]
    %v1333 = vld [vmem:[%s4 + $0x30] sm:$0xf]
    %v1334 = vld [vmem:[%s4 + $0x34] sm:$0xf]
    %v1335 = vld [vmem:[%s4 + $0x38] sm:$0xf]
    %v1336 = vld [vmem:[%s4 + $0x3c] sm:$0xf]
    %v1337 = vld [vmem:[%s4 + $0x40] sm:$0xf]
    %v1338 = vld [vmem:[%s4 + $0x44] sm:$0xf]
    %v1339 = vld [vmem:[%s4 + $0x48] sm:$0xf]
    %v1340 = vld [vmem:[%s4 + $0x4c] sm:$0xf]
    %v1341 = vld [vmem:[%s4 + $0x50] sm:$0xf]
    %v1342 = vld [vmem:[%s4 + $0x54] sm:$0xf]
    %v1343 = vld [vmem:[%s4 + $0x58] sm:$0xf]
    %v1344 = vld [vmem:[%s4 + $0x5c] sm:$0xf]
    %v1345 = vld [vmem:[%s4 + $0x60] sm:$0xf]
    %v1346 = vld [vmem:[%s4 + $0x64] sm:$0xf]
    %v1347 = vld [vmem:[%s4 + $0x68] sm:$0xf]
    %v1348 = vld [vmem:[%s4 + $0x6c] sm:$0xf]
    %v1349 = vld [vmem:[%s4 + $0x70] sm:$0xf]
    %v1350 = vld [vmem:[%s4 + $0x74] sm:$0xf]
    %v1351 = vld [vmem:[%s4 + $0x78] sm:$0xf]
    %v1352 = vld [vmem:[%s4 + $0x7c] sm:$0xf]
    %v1385 = vunpack.c.l.b16 %v1321
    %v1386 = vunpack.c.l.b16 %v1322
    %v1387 = vunpack.c.l.b16 %v1323
    %v1388 = vunpack.c.l.b16 %v1324
    %v1389 = vunpack.c.l.b16 %v1325
    %v1390 = vunpack.c.l.b16 %v1326
    %v1391 = vunpack.c.l.b16 %v1327
    %v1392 = vunpack.c.l.b16 %v1328
    %v1393 = vunpack.c.l.b16 %v1329
    %v1394 = vunpack.c.l.b16 %v1330
    %v1395 = vunpack.c.l.b16 %v1331
    %v1396 = vunpack.c.l.b16 %v1332
    %v1397 = vunpack.c.l.b16 %v1333
    %v1398 = vunpack.c.l.b16 %v1334
    %v1399 = vunpack.c.l.b16 %v1335
    %v1400 = vunpack.c.l.b16 %v1336
    %v1401 = vunpack.c.l.b16 %v1337
    %v1402 = vunpack.c.l.b16 %v1338
    %v1403 = vunpack.c.l.b16 %v1339
    %v1404 = vunpack.c.l.b16 %v1340
    %v1405 = vunpack.c.l.b16 %v1341
    %v1406 = vunpack.c.l.b16 %v1342
    %v1407 = vunpack.c.l.b16 %v1343
    %v1408 = vunpack.c.l.b16 %v1344
    %v1409 = vunpack.c.l.b16 %v1345
    %v1410 = vunpack.c.l.b16 %v1346
    %v1411 = vunpack.c.l.b16 %v1347
    %v1412 = vunpack.c.l.b16 %v1348
    %v1413 = vunpack.c.l.b16 %v1349
    %v1414 = vunpack.c.l.b16 %v1350
    %v1415 = vunpack.c.l.b16 %v1351
    %v1416 = vunpack.c.l.b16 %v1352
    %v1417 = vpack.c.b16 %v1386, %v1385
    %v1418 = vpack.c.b16 %v1388, %v1387
    %v1419 = vpack.c.b16 %v1390, %v1389
    %v1420 = vpack.c.b16 %v1392, %v1391
    %v1421 = vpack.c.b16 %v1394, %v1393
    %v1422 = vpack.c.b16 %v1396, %v1395
    %v1423 = vpack.c.b16 %v1398, %v1397
    %v1424 = vpack.c.b16 %v1400, %v1399
    %v1425 = vpack.c.b16 %v1402, %v1401
    %v1426 = vpack.c.b16 %v1404, %v1403
    %v1427 = vpack.c.b16 %v1406, %v1405
    %v1428 = vpack.c.b16 %v1408, %v1407
    %v1429 = vpack.c.b16 %v1410, %v1409
    %v1430 = vpack.c.b16 %v1412, %v1411
    %v1431 = vpack.c.b16 %v1414, %v1413
    %v1432 = vpack.c.b16 %v1416, %v1415
    %1449 = vmatprep.subr.bf16.mxu0 0
    %1450 = vmatpush1.bf16.msra.mxu0 %v1417
    %1451 = vmatprep.subr.bf16.mxu0 0
    %1452 = vmatpush1.bf16.msra.mxu0 %v1418
    %1453 = vmatprep.subr.bf16.mxu0 0
    %1454 = vmatpush1.bf16.msra.mxu0 %v1419
    %1455 = vmatprep.subr.bf16.mxu0 0
    %1456 = vmatpush1.bf16.msra.mxu0 %v1420
    %1457 = vmatprep.subr.bf16.mxu0 0
    %1458 = vmatpush1.bf16.msra.mxu0 %v1421
    %1459 = vmatprep.subr.bf16.mxu0 0
    %1460 = vmatpush1.bf16.msra.mxu0 %v1422
    %1461 = vmatprep.subr.bf16.mxu0 0
    %1462 = vmatpush1.bf16.msra.mxu0 %v1423
    %1463 = vmatprep.subr.bf16.mxu0 0
    %1464 = vmatpush1.bf16.msra.mxu0 %v1424
    %1465 = vmatprep.subr.bf16.mxu0 0
    %1466 = vmatpush1.bf16.msra.mxu0 %v1425
    %1467 = vmatprep.subr.bf16.mxu0 0
    %1468 = vmatpush1.bf16.msra.mxu0 %v1426
    %1469 = vmatprep.subr.bf16.mxu0 0
    %1470 = vmatpush1.bf16.msra.mxu0 %v1427
    %1471 = vmatprep.subr.bf16.mxu0 0
    %1472 = vmatpush1.bf16.msra.mxu0 %v1428
    %1473 = vmatprep.subr.bf16.mxu0 0
    %1474 = vmatpush1.bf16.msra.mxu0 %v1429
    %1475 = vmatprep.subr.bf16.mxu0 0
    %1476 = vmatpush1.bf16.msra.mxu0 %v1430
    %1477 = vmatprep.subr.bf16.mxu0 0
    %1478 = vmatpush1.bf16.msra.mxu0 %v1431
    %1479 = vmatprep.subr.bf16.mxu0 0
    %1480 = vmatpush1.bf16.msra.mxu0 %v1432
    %1481 = vmatprep.mubr.bf16.mxu0 %v1318
    %1482 = vmatmul.mubr.bf16.gmra.mrb[0].mxu0 %v1317
    %v1483 = vpop.f32.mrb[0].mxu0
    %v1484 = vadd.f32 0.0, %v1483
    %v1485 = vpop.f32.mrb[0].mxu0
    %v1486 = vpop.f32.mrb[0].mxu0
    %v1487 = vadd.f32 0.0, %v1486
    %v1488 = vpop.f32.mrb[0].mxu0
    %1489 = vmatprep.mubr.bf16.mxu0 %v1320
    %1490 = vmatmul.mubr.bf16.gmra.mrb[0].mxu0 %v1319
    %v1491 = vpop.f32.mrb[0].mxu0
    %v1492 = vadd.f32 0.0, %v1491
    %v1493 = vpop.f32.mrb[0].mxu0
    %v1494 = vpop.f32.mrb[0].mxu0
    %v1495 = vadd.f32 0.0, %v1494
    %v1496 = vpop.f32.mrb[0].mxu0
    %1497 = vdwg.mxu0
    %v1498 = vpack.c.bf16 %v1487, %v1484
    %v1499 = vpack.c.bf16 %v1495, %v1492
    %v1502 = vunpack.c.l.b16 %v1498
    %v1503 = vunpack.c.h.b16 %v1498
    %v1504 = vunpack.c.l.b16 %v1499
    %v1505 = vunpack.c.h.b16 %v1499
    %v1506 = vpack.c.b16 %v1502, %v1502
    %v1507 = vpack.c.b16 %v1503, %v1503
    %v1508 = vpack.c.b16 %v1504, %v1504
    %v1509 = vpack.c.b16 %v1505, %v1505
    %v1514 = vadd.bf16 %v1003, %v1506
    %v1515 = vadd.bf16 %v1004, %v1507
    %v1516 = vadd.bf16 %v1005, %v1508
    %v1517 = vadd.bf16 %v1006, %v1509
    %v1518 = vunpack.c.l.bf16 %v1514
    %v1519 = vunpack.c.l.bf16 %v1515
    %v1520 = vunpack.c.l.bf16 %v1516
    %v1521 = vunpack.c.l.bf16 %v1517
    %v1522 = vmul.f32 %v1518, %v1518
    %v1523 = vmul.f32 %v1519, %v1519
    %v1524 = vmul.f32 %v1520, %v1520
    %v1525 = vmul.f32 %v1521, %v1521
    %v1526 = vsel %vm62, %v1522, 0.0
    %1527 = vadd.xlane.f32.xlu0 %v1526
    %v1528 = vpop.xlane.xlu0 %1527
    %v1529 = vsel %vm62, %v1523, 0.0
    %1530 = vadd.xlane.f32.xlu0 %v1529
    %v1531 = vpop.xlane.xlu0 %1530
    %v1532 = vsel %vm62, %v1524, 0.0
    %1533 = vadd.xlane.f32.xlu0 %v1532
    %v1534 = vpop.xlane.xlu0 %1533
    %v1535 = vsel %vm62, %v1525, 0.0
    %1536 = vadd.xlane.f32.xlu0 %v1535
    %v1537 = vpop.xlane.xlu0 %1536
    %v1538 = vmul.f32 %v1528, %v75
    %v1539 = vmul.f32 %v1531, %v75
    %v1540 = vmul.f32 %v1534, %v75
    %v1541 = vmul.f32 %v1537, %v75
    %v1542 = vadd.f32 %v1538, 1e-05
    %v1543 = vadd.f32 %v1539, 1e-05
    %v1544 = vadd.f32 %v1540, 1e-05
    %v1545 = vadd.f32 %v1541, 1e-05
    %v1546 = vrsqrt.pop %v1542
    %v1547 = vrsqrt.pop %v1543
    %v1548 = vrsqrt.pop %v1544
    %v1549 = vrsqrt.pop %v1545
    %v1550 = vmul.f32 %v1518, %v1546
    %v1551 = vmul.f32 %v1519, %v1547
    %v1552 = vmul.f32 %v1520, %v1548
    %v1553 = vmul.f32 %v1521, %v1549
    %v1554 = vpack.c.bf16 %v1551, %v1550
    %v1555 = vpack.c.bf16 %v1553, %v1552
    %s1556 = scalar_lea.vmem %s1, 32
    %v1557 = vld [vmem:[%s1556] sm:$0xf]
    %v1558 = vld [vmem:[%s1556 + $0x4] sm:$0xf]
    %v1559 = vld [vmem:[%s1556 + $0x8] sm:$0xf]
    %v1560 = vld [vmem:[%s1556 + $0xc] sm:$0xf]
    %v1561 = vld [vmem:[%s1556 + $0x10] sm:$0xf]
    %v1562 = vld [vmem:[%s1556 + $0x14] sm:$0xf]
    %v1563 = vld [vmem:[%s1556 + $0x18] sm:$0xf]
    %v1564 = vld [vmem:[%s1556 + $0x1c] sm:$0xf]
    %v1573 = vunpack.c.l.b16 %v1557
    %v1574 = vunpack.c.l.b16 %v1558
    %v1575 = vunpack.c.l.b16 %v1559
    %v1576 = vunpack.c.l.b16 %v1560
    %v1577 = vunpack.c.l.b16 %v1561
    %v1578 = vunpack.c.l.b16 %v1562
    %v1579 = vunpack.c.l.b16 %v1563
    %v1580 = vunpack.c.l.b16 %v1564
    %v1581 = vpack.c.b16 %v1574, %v1573
    %v1582 = vpack.c.b16 %v1576, %v1575
    %v1583 = vpack.c.b16 %v1578, %v1577
    %v1584 = vpack.c.b16 %v1580, %v1579
    %v1590 = vsel %vm62, %v1554, 0
    %v1593 = vsel %vm62, %v1555, 0
    %1595 = vmatprep.subr.bf16.mxu0 0
    %1596 = vmatpush1.bf16.msra.mxu0 %v1581
    %1597 = vmatprep.subr.bf16.mxu0 0
    %1598 = vmatpush1.bf16.msra.mxu0 %v1582
    %1599 = vmatprep.subr.bf16.mxu0 0
    %1600 = vmatpush1.bf16.msra.mxu0 %v1583
    %1601 = vmatprep.subr.bf16.mxu0 0
    %1602 = vmatpush1.bf16.msra.mxu0 %v1584
    %1603 = vmatprep.subr.bf16.mxu0 0
    %1604 = vmatpush1.bf16.msra.mxu0 0
    %1605 = vmatprep.subr.bf16.mxu0 0
    %1606 = vmatpush1.bf16.msra.mxu0 0
    %1607 = vmatprep.subr.bf16.mxu0 0
    %1608 = vmatpush1.bf16.msra.mxu0 0
    %1609 = vmatprep.subr.bf16.mxu0 0
    %1610 = vmatpush1.bf16.msra.mxu0 0
    %1611 = vmatprep.subr.bf16.mxu0 0
    %1612 = vmatpush1.bf16.msra.mxu0 0
    %1613 = vmatprep.subr.bf16.mxu0 0
    %1614 = vmatpush1.bf16.msra.mxu0 0
    %1615 = vmatprep.subr.bf16.mxu0 0
    %1616 = vmatpush1.bf16.msra.mxu0 0
    %1617 = vmatprep.subr.bf16.mxu0 0
    %1618 = vmatpush1.bf16.msra.mxu0 0
    %1619 = vmatprep.subr.bf16.mxu0 0
    %1620 = vmatpush1.bf16.msra.mxu0 0
    %1621 = vmatprep.subr.bf16.mxu0 0
    %1622 = vmatpush1.bf16.msra.mxu0 0
    %1623 = vmatprep.subr.bf16.mxu0 0
    %1624 = vmatpush1.bf16.msra.mxu0 0
    %1625 = vmatprep.subr.bf16.mxu0 0
    %1626 = vmatpush1.bf16.msra.mxu0 0
    %1627 = vmatprep.mubr.bf16.mxu0 0
    %1628 = vmatmul.mubr.bf16.gmra.mrb[0].mxu0 %v1590
    %v1629 = vpop.f32.mrb[0].mxu0
    %v1630 = vadd.f32 0.0, %v1629
    %v1631 = vpop.f32.mrb[0].mxu0
    %v1632 = vpop.f32.mrb[0].mxu0
    %v1633 = vadd.f32 0.0, %v1632
    %v1634 = vpop.f32.mrb[0].mxu0
    %1635 = vmatprep.mubr.bf16.mxu0 0
    %1636 = vmatmul.mubr.bf16.gmra.mrb[0].mxu0 %v1593
    %v1637 = vpop.f32.mrb[0].mxu0
    %v1638 = vadd.f32 0.0, %v1637
    %v1639 = vpop.f32.mrb[0].mxu0
    %v1640 = vpop.f32.mrb[0].mxu0
    %v1641 = vadd.f32 0.0, %v1640
    %v1642 = vpop.f32.mrb[0].mxu0
    %1643 = vdwg.mxu0
    %v1644 = vpack.c.bf16 %v1633, %v1630
    %v1645 = vpack.c.bf16 %v1641, %v1638
    %1648 = vrot.lane.b32.xlu0 %v1644, 64
    %v1649 = vpop.permute.xlu0 %1648
    %1650 = vrot.lane.b32.xlu0 %v1645, 64
    %v1651 = vpop.permute.xlu0 %1650
    %v1653 = vsel %vm189, %v1644, 0
    %v1656 = vsel %vm189, %v1645, 0
    %v1659 = vsel %vm189, %v1649, 0
    %v1662 = vsel %vm189, %v1651, 0
    %1664 = vmatprep.subr.bf16.mxu0 0
    %1665 = vmatpush1.bf16.xpose.msra.mxu0 %v1659
    %1666 = vmatprep.subr.bf16.mxu0 0
    %1667 = vmatpush1.bf16.xpose.msra.mxu0 %v1662
    %1668 = vmatprep.subr.bf16.mxu0 0
    %1669 = vmatpush1.bf16.xpose.msra.mxu0 0
    %1670 = vmatprep.subr.bf16.mxu0 0
    %1671 = vmatpush1.bf16.xpose.msra.mxu0 0
    %1672 = vmatprep.subr.bf16.mxu0 0
    %1673 = vmatpush1.bf16.xpose.msra.mxu0 0
    %1674 = vmatprep.subr.bf16.mxu0 0
    %1675 = vmatpush1.bf16.xpose.msra.mxu0 0
    %1676 = vmatprep.subr.bf16.mxu0 0
    %1677 = vmatpush1.bf16.xpose.msra.mxu0 0
    %1678 = vmatprep.subr.bf16.mxu0 0
    %1679 = vmatpush1.bf16.xpose.msra.mxu0 0
    %1680 = vmatprep.subr.bf16.mxu0 0
    %1681 = vmatpush1.bf16.xpose.msra.mxu0 0
    %1682 = vmatprep.subr.bf16.mxu0 0
    %1683 = vmatpush1.bf16.xpose.msra.mxu0 0
    %1684 = vmatprep.subr.bf16.mxu0 0
    %1685 = vmatpush1.bf16.xpose.msra.mxu0 0
    %1686 = vmatprep.subr.bf16.mxu0 0
    %1687 = vmatpush1.bf16.xpose.msra.mxu0 0
    %1688 = vmatprep.subr.bf16.mxu0 0
    %1689 = vmatpush1.bf16.xpose.msra.mxu0 0
    %1690 = vmatprep.subr.bf16.mxu0 0
    %1691 = vmatpush1.bf16.xpose.msra.mxu0 0
    %1692 = vmatprep.subr.bf16.mxu0 0
    %1693 = vmatpush1.bf16.xpose.msra.mxu0 0
    %1694 = vmatprep.subr.bf16.mxu0 0
    %1695 = vmatpush1.bf16.xpose.msra.mxu0 0
    %1696 = vmatprep.mubr.bf16.mxu0 0
    %1697 = vmatmul.mubr.bf16.gmra.mrb[0].mxu0 %v1653
    %v1698 = vpop.f32.mrb[0].mxu0
    %v1699 = vadd.f32 %v46, %v1698
    %v1700 = vpop.f32.mrb[0].mxu0
    %v1701 = vpop.f32.mrb[0].mxu0
    %v1702 = vadd.f32 %v47, %v1701
    %v1703 = vpop.f32.mrb[0].mxu0
    %1704 = vmatprep.mubr.bf16.mxu0 0
    %1705 = vmatmul.mubr.bf16.gmra.mrb[0].mxu0 %v1656
    %v1706 = vpop.f32.mrb[0].mxu0
    %v1707 = vadd.f32 %v48, %v1706
    %v1708 = vpop.f32.mrb[0].mxu0
    %v1709 = vpop.f32.mrb[0].mxu0
    %v1710 = vadd.f32 %v49, %v1709
    %v1711 = vpop.f32.mrb[0].mxu0
    %1712 = vdwg.mxu0
    %v1713 = vsel %vm251, %v1699, -inf
    %1714 = vmax.xlane.f32.xlu0 %v1713
    %v1715 = vpop.xlane.xlu0 %1714
    %v1716 = vsel %vm251, %v1702, -inf
    %1717 = vmax.xlane.f32.xlu0 %v1716
    %v1718 = vpop.xlane.xlu0 %1717
    %v1719 = vsel %vm251, %v1707, -inf
    %1720 = vmax.xlane.f32.xlu0 %v1719
    %v1721 = vpop.xlane.xlu0 %1720
    %v1722 = vsel %vm251, %v1710, -inf
    %1723 = vmax.xlane.f32.xlu0 %v1722
    %v1724 = vpop.xlane.xlu0 %1723
    %v1725 = vsub.f32 %v1699, %v1715
    %v1726 = vsub.f32 %v1702, %v1718
    %v1727 = vsub.f32 %v1707, %v1721
    %v1728 = vsub.f32 %v1710, %v1724
    %v1729 = vmul.f32 %v1725, 1.442695
    %v1730 = vpow.pop %v1729
    %v1731 = vmul.f32 %v1726, 1.442695
    %v1732 = vpow.pop %v1731
    %v1733 = vmul.f32 %v1727, 1.442695
    %v1734 = vpow.pop %v1733
    %v1735 = vmul.f32 %v1728, 1.442695
    %v1736 = vpow.pop %v1735
    %v1737 = vsel %vm251, %v1730, 0.0
    %1738 = vadd.xlane.f32.xlu0 %v1737
    %v1739 = vpop.xlane.xlu0 %1738
    %v1740 = vsel %vm251, %v1732, 0.0
    %1741 = vadd.xlane.f32.xlu0 %v1740
    %v1742 = vpop.xlane.xlu0 %1741
    %v1743 = vsel %vm251, %v1734, 0.0
    %1744 = vadd.xlane.f32.xlu0 %v1743
    %v1745 = vpop.xlane.xlu0 %1744
    %v1746 = vsel %vm251, %v1736, 0.0
    %1747 = vadd.xlane.f32.xlu0 %v1746
    %v1748 = vpop.xlane.xlu0 %1747
    %v1749 = vpack.c.bf16 %v1732, %v1730
    %v1750 = vpack.c.bf16 %v1736, %v1734
    %1751 = vrot.lane.b32.xlu0 %v1644, 48
    %v1752 = vpop.permute.xlu0 %1751
    %1753 = vrot.lane.b32.xlu0 %v1645, 48
    %v1754 = vpop.permute.xlu0 %1753
    %v1758 = vsel %vm251, %v1749, 0
    %v1761 = vsel %vm251, %v1750, 0
    %1763 = vmatprep.subr.bf16.mxu0 0
    %1764 = vmatpush1.bf16.msra.mxu0 %v1752
    %1765 = vmatprep.subr.bf16.mxu0 0
    %1766 = vmatpush1.bf16.msra.mxu0 %v1754
    %1767 = vmatprep.subr.bf16.mxu0 0
    %1768 = vmatpush1.bf16.msra.mxu0 0
    %1769 = vmatprep.subr.bf16.mxu0 0
    %1770 = vmatpush1.bf16.msra.mxu0 0
    %1771 = vmatprep.subr.bf16.mxu0 0
    %1772 = vmatpush1.bf16.msra.mxu0 0
    %1773 = vmatprep.subr.bf16.mxu0 0
    %1774 = vmatpush1.bf16.msra.mxu0 0
    %1775 = vmatprep.subr.bf16.mxu0 0
    %1776 = vmatpush1.bf16.msra.mxu0 0
    %1777 = vmatprep.subr.bf16.mxu0 0
    %1778 = vmatpush1.bf16.msra.mxu0 0
    %1779 = vmatprep.subr.bf16.mxu0 0
    %1780 = vmatpush1.bf16.msra.mxu0 0
    %1781 = vmatprep.subr.bf16.mxu0 0
    %1782 = vmatpush1.bf16.msra.mxu0 0
    %1783 = vmatprep.subr.bf16.mxu0 0
    %1784 = vmatpush1.bf16.msra.mxu0 0
    %1785 = vmatprep.subr.bf16.mxu0 0
    %1786 = vmatpush1.bf16.msra.mxu0 0
    %1787 = vmatprep.subr.bf16.mxu0 0
    %1788 = vmatpush1.bf16.msra.mxu0 0
    %1789 = vmatprep.subr.bf16.mxu0 0
    %1790 = vmatpush1.bf16.msra.mxu0 0
    %1791 = vmatprep.subr.bf16.mxu0 0
    %1792 = vmatpush1.bf16.msra.mxu0 0
    %1793 = vmatprep.subr.bf16.mxu0 0
    %1794 = vmatpush1.bf16.msra.mxu0 0
    %1795 = vmatprep.mubr.bf16.mxu0 0
    %1796 = vmatmul.mubr.bf16.gmra.mrb[0].mxu0 %v1758
    %v1797 = vpop.f32.mrb[0].mxu0
    %v1798 = vadd.f32 0.0, %v1797
    %v1799 = vpop.f32.mrb[0].mxu0
    %v1800 = vpop.f32.mrb[0].mxu0
    %v1801 = vadd.f32 0.0, %v1800
    %v1802 = vpop.f32.mrb[0].mxu0
    %1803 = vmatprep.mubr.bf16.mxu0 0
    %1804 = vmatmul.mubr.bf16.gmra.mrb[0].mxu0 %v1761
    %v1805 = vpop.f32.mrb[0].mxu0
    %v1806 = vadd.f32 0.0, %v1805
    %v1807 = vpop.f32.mrb[0].mxu0
    %v1808 = vpop.f32.mrb[0].mxu0
    %v1809 = vadd.f32 0.0, %v1808
    %v1810 = vpop.f32.mrb[0].mxu0
    %1811 = vdwg.mxu0
    %v1812 = vrcp.pop %v1739
    %v1813 = vrcp.pop %v1742
    %v1814 = vrcp.pop %v1745
    %v1815 = vrcp.pop %v1748
    %v1816 = vmul.f32 %v1798, %v1812
    %v1817 = vmul.f32 %v1801, %v1813
    %v1818 = vmul.f32 %v1806, %v1814
    %v1819 = vmul.f32 %v1809, %v1815
    %v1820 = vpack.c.bf16 %v1817, %v1816
    %v1821 = vpack.c.bf16 %v1819, %v1818
    %1822 = vst.msk [vmem:[#allocation2] sm:$0xff] %vm189, %v1820
    %1823 = vst.msk [vmem:[#allocation2 + $0x8] sm:$0xff] %vm189, %v1821
    %1824 = vrot.lane.b32.xlu0 %v1644, 112
    %v1825 = vpop.permute.xlu0 %1824
    %1826 = vrot.lane.b32.xlu0 %v1645, 112
    %v1827 = vpop.permute.xlu0 %1826
    %v1829 = vsel %vm189, %v1825, 0
    %v1832 = vsel %vm189, %v1827, 0
    %1834 = vmatprep.subr.bf16.mxu0 0
    %1835 = vmatpush1.bf16.xpose.msra.mxu0 %v1659
    %1836 = vmatprep.subr.bf16.mxu0 0
    %1837 = vmatpush1.bf16.xpose.msra.mxu0 %v1662
    %1838 = vmatprep.subr.bf16.mxu0 0
    %1839 = vmatpush1.bf16.xpose.msra.mxu0 0
    %1840 = vmatprep.subr.bf16.mxu0 0
    %1841 = vmatpush1.bf16.xpose.msra.mxu0 0
    %1842 = vmatprep.subr.bf16.mxu0 0
    %1843 = vmatpush1.bf16.xpose.msra.mxu0 0
    %1844 = vmatprep.subr.bf16.mxu0 0
    %1845 = vmatpush1.bf16.xpose.msra.mxu0 0
    %1846 = vmatprep.subr.bf16.mxu0 0
    %1847 = vmatpush1.bf16.xpose.msra.mxu0 0
    %1848 = vmatprep.subr.bf16.mxu0 0
    %1849 = vmatpush1.bf16.xpose.msra.mxu0 0
    %1850 = vmatprep.subr.bf16.mxu0 0
    %1851 = vmatpush1.bf16.xpose.msra.mxu0 0
    %1852 = vmatprep.subr.bf16.mxu0 0
    %1853 = vmatpush1.bf16.xpose.msra.mxu0 0
    %1854 = vmatprep.subr.bf16.mxu0 0
    %1855 = vmatpush1.bf16.xpose.msra.mxu0 0
    %1856 = vmatprep.subr.bf16.mxu0 0
    %1857 = vmatpush1.bf16.xpose.msra.mxu0 0
    %1858 = vmatprep.subr.bf16.mxu0 0
    %1859 = vmatpush1.bf16.xpose.msra.mxu0 0
    %1860 = vmatprep.subr.bf16.mxu0 0
    %1861 = vmatpush1.bf16.xpose.msra.mxu0 0
    %1862 = vmatprep.subr.bf16.mxu0 0
    %1863 = vmatpush1.bf16.xpose.msra.mxu0 0
    %1864 = vmatprep.subr.bf16.mxu0 0
    %1865 = vmatpush1.bf16.xpose.msra.mxu0 0
    %1866 = vmatprep.mubr.bf16.mxu0 0
    %1867 = vmatmul.mubr.bf16.gmra.mrb[0].mxu0 %v1829
    %v1868 = vpop.f32.mrb[0].mxu0
    %v1869 = vadd.f32 %v46, %v1868
    %v1870 = vpop.f32.mrb[0].mxu0
    %v1871 = vpop.f32.mrb[0].mxu0
    %v1872 = vadd.f32 %v47, %v1871
    %v1873 = vpop.f32.mrb[0].mxu0
    %1874 = vmatprep.mubr.bf16.mxu0 0
    %1875 = vmatmul.mubr.bf16.gmra.mrb[0].mxu0 %v1832
    %v1876 = vpop.f32.mrb[0].mxu0
    %v1877 = vadd.f32 %v48, %v1876
    %v1878 = vpop.f32.mrb[0].mxu0
    %v1879 = vpop.f32.mrb[0].mxu0
    %v1880 = vadd.f32 %v49, %v1879
    %v1881 = vpop.f32.mrb[0].mxu0
    %1882 = vdwg.mxu0
    %v1883 = vsel %vm251, %v1869, -inf
    %1884 = vmax.xlane.f32.xlu0 %v1883
    %v1885 = vpop.xlane.xlu0 %1884
    %v1886 = vsel %vm251, %v1872, -inf
    %1887 = vmax.xlane.f32.xlu0 %v1886
    %v1888 = vpop.xlane.xlu0 %1887
    %v1889 = vsel %vm251, %v1877, -inf
    %1890 = vmax.xlane.f32.xlu0 %v1889
    %v1891 = vpop.xlane.xlu0 %1890
    %v1892 = vsel %vm251, %v1880, -inf
    %1893 = vmax.xlane.f32.xlu0 %v1892
    %v1894 = vpop.xlane.xlu0 %1893
    %v1895 = vsub.f32 %v1869, %v1885
    %v1896 = vsub.f32 %v1872, %v1888
    %v1897 = vsub.f32 %v1877, %v1891
    %v1898 = vsub.f32 %v1880, %v1894
    %v1899 = vmul.f32 %v1895, 1.442695
    %v1900 = vpow.pop %v1899
    %v1901 = vmul.f32 %v1896, 1.442695
    %v1902 = vpow.pop %v1901
    %v1903 = vmul.f32 %v1897, 1.442695
    %v1904 = vpow.pop %v1903
    %v1905 = vmul.f32 %v1898, 1.442695
    %v1906 = vpow.pop %v1905
    %v1907 = vsel %vm251, %v1900, 0.0
    %1908 = vadd.xlane.f32.xlu0 %v1907
    %v1909 = vpop.xlane.xlu0 %1908
    %v1910 = vsel %vm251, %v1902, 0.0
    %1911 = vadd.xlane.f32.xlu0 %v1910
    %v1912 = vpop.xlane.xlu0 %1911
    %v1913 = vsel %vm251, %v1904, 0.0
    %1914 = vadd.xlane.f32.xlu0 %v1913
    %v1915 = vpop.xlane.xlu0 %1914
    %v1916 = vsel %vm251, %v1906, 0.0
    %1917 = vadd.xlane.f32.xlu0 %v1916
    %v1918 = vpop.xlane.xlu0 %1917
    %v1919 = vpack.c.bf16 %v1902, %v1900
    %v1920 = vpack.c.bf16 %v1906, %v1904
    %v1922 = vsel %vm251, %v1919, 0
    %v1925 = vsel %vm251, %v1920, 0
    %1927 = vmatprep.subr.bf16.mxu0 0
    %1928 = vmatpush1.bf16.msra.mxu0 %v1752
    %1929 = vmatprep.subr.bf16.mxu0 0
    %1930 = vmatpush1.bf16.msra.mxu0 %v1754
    %1931 = vmatprep.subr.bf16.mxu0 0
    %1932 = vmatpush1.bf16.msra.mxu0 0
    %1933 = vmatprep.subr.bf16.mxu0 0
    %1934 = vmatpush1.bf16.msra.mxu0 0
    %1935 = vmatprep.subr.bf16.mxu0 0
    %1936 = vmatpush1.bf16.msra.mxu0 0
    %1937 = vmatprep.subr.bf16.mxu0 0
    %1938 = vmatpush1.bf16.msra.mxu0 0
    %1939 = vmatprep.subr.bf16.mxu0 0
    %1940 = vmatpush1.bf16.msra.mxu0 0
    %1941 = vmatprep.subr.bf16.mxu0 0
    %1942 = vmatpush1.bf16.msra.mxu0 0
    %1943 = vmatprep.subr.bf16.mxu0 0
    %1944 = vmatpush1.bf16.msra.mxu0 0
    %1945 = vmatprep.subr.bf16.mxu0 0
    %1946 = vmatpush1.bf16.msra.mxu0 0
    %1947 = vmatprep.subr.bf16.mxu0 0
    %1948 = vmatpush1.bf16.msra.mxu0 0
    %1949 = vmatprep.subr.bf16.mxu0 0
    %1950 = vmatpush1.bf16.msra.mxu0 0
    %1951 = vmatprep.subr.bf16.mxu0 0
    %1952 = vmatpush1.bf16.msra.mxu0 0
    %1953 = vmatprep.subr.bf16.mxu0 0
    %1954 = vmatpush1.bf16.msra.mxu0 0
    %1955 = vmatprep.subr.bf16.mxu0 0
    %1956 = vmatpush1.bf16.msra.mxu0 0
    %1957 = vmatprep.subr.bf16.mxu0 0
    %1958 = vmatpush1.bf16.msra.mxu0 0
    %1959 = vmatprep.mubr.bf16.mxu0 0
    %1960 = vmatmul.mubr.bf16.gmra.mrb[0].mxu0 %v1922
    %v1961 = vpop.f32.mrb[0].mxu0
    %v1962 = vadd.f32 0.0, %v1961
    %v1963 = vpop.f32.mrb[0].mxu0
    %v1964 = vpop.f32.mrb[0].mxu0
    %v1965 = vadd.f32 0.0, %v1964
    %v1966 = vpop.f32.mrb[0].mxu0
    %1967 = vmatprep.mubr.bf16.mxu0 0
    %1968 = vmatmul.mubr.bf16.gmra.mrb[0].mxu0 %v1925
    %v1969 = vpop.f32.mrb[0].mxu0
    %v1970 = vadd.f32 0.0, %v1969
    %v1971 = vpop.f32.mrb[0].mxu0
    %v1972 = vpop.f32.mrb[0].mxu0
    %v1973 = vadd.f32 0.0, %v1972
    %v1974 = vpop.f32.mrb[0].mxu0
    %1975 = vdwg.mxu0
    %v1976 = vrcp.pop %v1909
    %v1977 = vrcp.pop %v1912
    %v1978 = vrcp.pop %v1915
    %v1979 = vrcp.pop %v1918
    %v1980 = vmul.f32 %v1962, %v1976
    %v1981 = vmul.f32 %v1965, %v1977
    %v1982 = vmul.f32 %v1970, %v1978
    %v1983 = vmul.f32 %v1973, %v1979
    %v1984 = vpack.c.bf16 %v1981, %v1980
    %v1985 = vpack.c.bf16 %v1983, %v1982
    %1988 = vrot.lane.b32.xlu0 %v1984, 16
    %v1989 = vpop.permute.xlu0 %1988
    %1990 = vrot.lane.b32.xlu0 %v1985, 16
    %v1991 = vpop.permute.xlu0 %1990
    %1994 = vst.msk [vmem:[#allocation2] sm:$0xff] %vm533, %v1989
    %1995 = vst.msk [vmem:[#allocation2 + $0x8] sm:$0xff] %vm533, %v1991
    %1996 = vrot.lane.b32.xlu0 %v1644, 96
    %v1997 = vpop.permute.xlu0 %1996
    %1998 = vrot.lane.b32.xlu0 %v1645, 96
    %v1999 = vpop.permute.xlu0 %1998
    %2000 = vrot.lane.b32.xlu0 %v1644, 32
    %v2001 = vpop.permute.xlu0 %2000
    %2002 = vrot.lane.b32.xlu0 %v1645, 32
    %v2003 = vpop.permute.xlu0 %2002
    %v2005 = vsel %vm189, %v1997, 0
    %v2008 = vsel %vm189, %v1999, 0
    %v2011 = vsel %vm189, %v2001, 0
    %v2014 = vsel %vm189, %v2003, 0
    %2016 = vmatprep.subr.bf16.mxu0 0
    %2017 = vmatpush1.bf16.xpose.msra.mxu0 %v2011
    %2018 = vmatprep.subr.bf16.mxu0 0
    %2019 = vmatpush1.bf16.xpose.msra.mxu0 %v2014
    %2020 = vmatprep.subr.bf16.mxu0 0
    %2021 = vmatpush1.bf16.xpose.msra.mxu0 0
    %2022 = vmatprep.subr.bf16.mxu0 0
    %2023 = vmatpush1.bf16.xpose.msra.mxu0 0
    %2024 = vmatprep.subr.bf16.mxu0 0
    %2025 = vmatpush1.bf16.xpose.msra.mxu0 0
    %2026 = vmatprep.subr.bf16.mxu0 0
    %2027 = vmatpush1.bf16.xpose.msra.mxu0 0
    %2028 = vmatprep.subr.bf16.mxu0 0
    %2029 = vmatpush1.bf16.xpose.msra.mxu0 0
    %2030 = vmatprep.subr.bf16.mxu0 0
    %2031 = vmatpush1.bf16.xpose.msra.mxu0 0
    %2032 = vmatprep.subr.bf16.mxu0 0
    %2033 = vmatpush1.bf16.xpose.msra.mxu0 0
    %2034 = vmatprep.subr.bf16.mxu0 0
    %2035 = vmatpush1.bf16.xpose.msra.mxu0 0
    %2036 = vmatprep.subr.bf16.mxu0 0
    %2037 = vmatpush1.bf16.xpose.msra.mxu0 0
    %2038 = vmatprep.subr.bf16.mxu0 0
    %2039 = vmatpush1.bf16.xpose.msra.mxu0 0
    %2040 = vmatprep.subr.bf16.mxu0 0
    %2041 = vmatpush1.bf16.xpose.msra.mxu0 0
    %2042 = vmatprep.subr.bf16.mxu0 0
    %2043 = vmatpush1.bf16.xpose.msra.mxu0 0
    %2044 = vmatprep.subr.bf16.mxu0 0
    %2045 = vmatpush1.bf16.xpose.msra.mxu0 0
    %2046 = vmatprep.subr.bf16.mxu0 0
    %2047 = vmatpush1.bf16.xpose.msra.mxu0 0
    %2048 = vmatprep.mubr.bf16.mxu0 0
    %2049 = vmatmul.mubr.bf16.gmra.mrb[0].mxu0 %v2005
    %v2050 = vpop.f32.mrb[0].mxu0
    %v2051 = vadd.f32 %v46, %v2050
    %v2052 = vpop.f32.mrb[0].mxu0
    %v2053 = vpop.f32.mrb[0].mxu0
    %v2054 = vadd.f32 %v47, %v2053
    %v2055 = vpop.f32.mrb[0].mxu0
    %2056 = vmatprep.mubr.bf16.mxu0 0
    %2057 = vmatmul.mubr.bf16.gmra.mrb[0].mxu0 %v2008
    %v2058 = vpop.f32.mrb[0].mxu0
    %v2059 = vadd.f32 %v48, %v2058
    %v2060 = vpop.f32.mrb[0].mxu0
    %v2061 = vpop.f32.mrb[0].mxu0
    %v2062 = vadd.f32 %v49, %v2061
    %v2063 = vpop.f32.mrb[0].mxu0
    %2064 = vdwg.mxu0
    %v2065 = vsel %vm251, %v2051, -inf
    %2066 = vmax.xlane.f32.xlu0 %v2065
    %v2067 = vpop.xlane.xlu0 %2066
    %v2068 = vsel %vm251, %v2054, -inf
    %2069 = vmax.xlane.f32.xlu0 %v2068
    %v2070 = vpop.xlane.xlu0 %2069
    %v2071 = vsel %vm251, %v2059, -inf
    %2072 = vmax.xlane.f32.xlu0 %v2071
    %v2073 = vpop.xlane.xlu0 %2072
    %v2074 = vsel %vm251, %v2062, -inf
    %2075 = vmax.xlane.f32.xlu0 %v2074
    %v2076 = vpop.xlane.xlu0 %2075
    %v2077 = vsub.f32 %v2051, %v2067
    %v2078 = vsub.f32 %v2054, %v2070
    %v2079 = vsub.f32 %v2059, %v2073
    %v2080 = vsub.f32 %v2062, %v2076
    %v2081 = vmul.f32 %v2077, 1.442695
    %v2082 = vpow.pop %v2081
    %v2083 = vmul.f32 %v2078, 1.442695
    %v2084 = vpow.pop %v2083
    %v2085 = vmul.f32 %v2079, 1.442695
    %v2086 = vpow.pop %v2085
    %v2087 = vmul.f32 %v2080, 1.442695
    %v2088 = vpow.pop %v2087
    %v2089 = vsel %vm251, %v2082, 0.0
    %2090 = vadd.xlane.f32.xlu0 %v2089
    %v2091 = vpop.xlane.xlu0 %2090
    %v2092 = vsel %vm251, %v2084, 0.0
    %2093 = vadd.xlane.f32.xlu0 %v2092
    %v2094 = vpop.xlane.xlu0 %2093
    %v2095 = vsel %vm251, %v2086, 0.0
    %2096 = vadd.xlane.f32.xlu0 %v2095
    %v2097 = vpop.xlane.xlu0 %2096
    %v2098 = vsel %vm251, %v2088, 0.0
    %2099 = vadd.xlane.f32.xlu0 %v2098
    %v2100 = vpop.xlane.xlu0 %2099
    %v2101 = vpack.c.bf16 %v2084, %v2082
    %v2102 = vpack.c.bf16 %v2088, %v2086
    %2103 = vrot.lane.b32.xlu0 %v1644, 16
    %v2104 = vpop.permute.xlu0 %2103
    %2105 = vrot.lane.b32.xlu0 %v1645, 16
    %v2106 = vpop.permute.xlu0 %2105
    %v2110 = vsel %vm251, %v2101, 0
    %v2113 = vsel %vm251, %v2102, 0
    %2115 = vmatprep.subr.bf16.mxu0 0
    %2116 = vmatpush1.bf16.msra.mxu0 %v2104
    %2117 = vmatprep.subr.bf16.mxu0 0
    %2118 = vmatpush1.bf16.msra.mxu0 %v2106
    %2119 = vmatprep.subr.bf16.mxu0 0
    %2120 = vmatpush1.bf16.msra.mxu0 0
    %2121 = vmatprep.subr.bf16.mxu0 0
    %2122 = vmatpush1.bf16.msra.mxu0 0
    %2123 = vmatprep.subr.bf16.mxu0 0
    %2124 = vmatpush1.bf16.msra.mxu0 0
    %2125 = vmatprep.subr.bf16.mxu0 0
    %2126 = vmatpush1.bf16.msra.mxu0 0
    %2127 = vmatprep.subr.bf16.mxu0 0
    %2128 = vmatpush1.bf16.msra.mxu0 0
    %2129 = vmatprep.subr.bf16.mxu0 0
    %2130 = vmatpush1.bf16.msra.mxu0 0
    %2131 = vmatprep.subr.bf16.mxu0 0
    %2132 = vmatpush1.bf16.msra.mxu0 0
    %2133 = vmatprep.subr.bf16.mxu0 0
    %2134 = vmatpush1.bf16.msra.mxu0 0
    %2135 = vmatprep.subr.bf16.mxu0 0
    %2136 = vmatpush1.bf16.msra.mxu0 0
    %2137 = vmatprep.subr.bf16.mxu0 0
    %2138 = vmatpush1.bf16.msra.mxu0 0
    %2139 = vmatprep.subr.bf16.mxu0 0
    %2140 = vmatpush1.bf16.msra.mxu0 0
    %2141 = vmatprep.subr.bf16.mxu0 0
    %2142 = vmatpush1.bf16.msra.mxu0 0
    %2143 = vmatprep.subr.bf16.mxu0 0
    %2144 = vmatpush1.bf16.msra.mxu0 0
    %2145 = vmatprep.subr.bf16.mxu0 0
    %2146 = vmatpush1.bf16.msra.mxu0 0
    %2147 = vmatprep.mubr.bf16.mxu0 0
    %2148 = vmatmul.mubr.bf16.gmra.mrb[0].mxu0 %v2110
    %v2149 = vpop.f32.mrb[0].mxu0
    %v2150 = vadd.f32 0.0, %v2149
    %v2151 = vpop.f32.mrb[0].mxu0
    %v2152 = vpop.f32.mrb[0].mxu0
    %v2153 = vadd.f32 0.0, %v2152
    %v2154 = vpop.f32.mrb[0].mxu0
    %2155 = vmatprep.mubr.bf16.mxu0 0
    %2156 = vmatmul.mubr.bf16.gmra.mrb[0].mxu0 %v2113
    %v2157 = vpop.f32.mrb[0].mxu0
    %v2158 = vadd.f32 0.0, %v2157
    %v2159 = vpop.f32.mrb[0].mxu0
    %v2160 = vpop.f32.mrb[0].mxu0
    %v2161 = vadd.f32 0.0, %v2160
    %v2162 = vpop.f32.mrb[0].mxu0
    %2163 = vdwg.mxu0
    %v2164 = vrcp.pop %v2091
    %v2165 = vrcp.pop %v2094
    %v2166 = vrcp.pop %v2097
    %v2167 = vrcp.pop %v2100
    %v2168 = vmul.f32 %v2150, %v2164
    %v2169 = vmul.f32 %v2153, %v2165
    %v2170 = vmul.f32 %v2158, %v2166
    %v2171 = vmul.f32 %v2161, %v2167
    %v2172 = vpack.c.bf16 %v2169, %v2168
    %v2173 = vpack.c.bf16 %v2171, %v2170
    %2176 = vrot.lane.b32.xlu0 %v2172, 32
    %v2177 = vpop.permute.xlu0 %2176
    %2178 = vrot.lane.b32.xlu0 %v2173, 32
    %v2179 = vpop.permute.xlu0 %2178
    %2182 = vst.msk [vmem:[#allocation2] sm:$0xff] %vm722, %v2177
    %2183 = vst.msk [vmem:[#allocation2 + $0x8] sm:$0xff] %vm722, %v2179
    %2184 = vrot.lane.b32.xlu0 %v1644, 80
    %v2185 = vpop.permute.xlu0 %2184
    %2186 = vrot.lane.b32.xlu0 %v1645, 80
    %v2187 = vpop.permute.xlu0 %2186
    %v2189 = vsel %vm189, %v2185, 0
    %v2192 = vsel %vm189, %v2187, 0
    %2194 = vmatprep.subr.bf16.mxu0 0
    %2195 = vmatpush1.bf16.xpose.msra.mxu0 %v2011
    %2196 = vmatprep.subr.bf16.mxu0 0
    %2197 = vmatpush1.bf16.xpose.msra.mxu0 %v2014
    %2198 = vmatprep.subr.bf16.mxu0 0
    %2199 = vmatpush1.bf16.xpose.msra.mxu0 0
    %2200 = vmatprep.subr.bf16.mxu0 0
    %2201 = vmatpush1.bf16.xpose.msra.mxu0 0
    %2202 = vmatprep.subr.bf16.mxu0 0
    %2203 = vmatpush1.bf16.xpose.msra.mxu0 0
    %2204 = vmatprep.subr.bf16.mxu0 0
    %2205 = vmatpush1.bf16.xpose.msra.mxu0 0
    %2206 = vmatprep.subr.bf16.mxu0 0
    %2207 = vmatpush1.bf16.xpose.msra.mxu0 0
    %2208 = vmatprep.subr.bf16.mxu0 0
    %2209 = vmatpush1.bf16.xpose.msra.mxu0 0
    %2210 = vmatprep.subr.bf16.mxu0 0
    %2211 = vmatpush1.bf16.xpose.msra.mxu0 0
    %2212 = vmatprep.subr.bf16.mxu0 0
    %2213 = vmatpush1.bf16.xpose.msra.mxu0 0
    %2214 = vmatprep.subr.bf16.mxu0 0
    %2215 = vmatpush1.bf16.xpose.msra.mxu0 0
    %2216 = vmatprep.subr.bf16.mxu0 0
    %2217 = vmatpush1.bf16.xpose.msra.mxu0 0
    %2218 = vmatprep.subr.bf16.mxu0 0
    %2219 = vmatpush1.bf16.xpose.msra.mxu0 0
    %2220 = vmatprep.subr.bf16.mxu0 0
    %2221 = vmatpush1.bf16.xpose.msra.mxu0 0
    %2222 = vmatprep.subr.bf16.mxu0 0
    %2223 = vmatpush1.bf16.xpose.msra.mxu0 0
    %2224 = vmatprep.subr.bf16.mxu0 0
    %2225 = vmatpush1.bf16.xpose.msra.mxu0 0
    %2226 = vmatprep.mubr.bf16.mxu0 0
    %2227 = vmatmul.mubr.bf16.gmra.mrb[0].mxu0 %v2189
    %v2228 = vpop.f32.mrb[0].mxu0
    %v2229 = vadd.f32 %v46, %v2228
    %v2230 = vpop.f32.mrb[0].mxu0
    %v2231 = vpop.f32.mrb[0].mxu0
    %v2232 = vadd.f32 %v47, %v2231
    %v2233 = vpop.f32.mrb[0].mxu0
    %2234 = vmatprep.mubr.bf16.mxu0 0
    %2235 = vmatmul.mubr.bf16.gmra.mrb[0].mxu0 %v2192
    %v2236 = vpop.f32.mrb[0].mxu0
    %v2237 = vadd.f32 %v48, %v2236
    %v2238 = vpop.f32.mrb[0].mxu0
    %v2239 = vpop.f32.mrb[0].mxu0
    %v2240 = vadd.f32 %v49, %v2239
    %v2241 = vpop.f32.mrb[0].mxu0
    %2242 = vdwg.mxu0
    %v2243 = vsel %vm251, %v2229, -inf
    %2244 = vmax.xlane.f32.xlu0 %v2243
    %v2245 = vpop.xlane.xlu0 %2244
    %v2246 = vsel %vm251, %v2232, -inf
    %2247 = vmax.xlane.f32.xlu0 %v2246
    %v2248 = vpop.xlane.xlu0 %2247
    %v2249 = vsel %vm251, %v2237, -inf
    %2250 = vmax.xlane.f32.xlu0 %v2249
    %v2251 = vpop.xlane.xlu0 %2250
    %v2252 = vsel %vm251, %v2240, -inf
    %2253 = vmax.xlane.f32.xlu0 %v2252
    %v2254 = vpop.xlane.xlu0 %2253
    %v2255 = vsub.f32 %v2229, %v2245
    %v2256 = vsub.f32 %v2232, %v2248
    %v2257 = vsub.f32 %v2237, %v2251
    %v2258 = vsub.f32 %v2240, %v2254
    %v2259 = vmul.f32 %v2255, 1.442695
    %v2260 = vpow.pop %v2259
    %v2261 = vmul.f32 %v2256, 1.442695
    %v2262 = vpow.pop %v2261
    %v2263 = vmul.f32 %v2257, 1.442695
    %v2264 = vpow.pop %v2263
    %v2265 = vmul.f32 %v2258, 1.442695
    %v2266 = vpow.pop %v2265
    %v2267 = vsel %vm251, %v2260, 0.0
    %2268 = vadd.xlane.f32.xlu0 %v2267
    %v2269 = vpop.xlane.xlu0 %2268
    %v2270 = vsel %vm251, %v2262, 0.0
    %2271 = vadd.xlane.f32.xlu0 %v2270
    %v2272 = vpop.xlane.xlu0 %2271
    %v2273 = vsel %vm251, %v2264, 0.0
    %2274 = vadd.xlane.f32.xlu0 %v2273
    %v2275 = vpop.xlane.xlu0 %2274
    %v2276 = vsel %vm251, %v2266, 0.0
    %2277 = vadd.xlane.f32.xlu0 %v2276
    %v2278 = vpop.xlane.xlu0 %2277
    %v2279 = vpack.c.bf16 %v2262, %v2260
    %v2280 = vpack.c.bf16 %v2266, %v2264
    %v2282 = vsel %vm251, %v2279, 0
    %v2285 = vsel %vm251, %v2280, 0
    %2287 = vmatprep.subr.bf16.mxu0 0
    %2288 = vmatpush1.bf16.msra.mxu0 %v2104
    %2289 = vmatprep.subr.bf16.mxu0 0
    %2290 = vmatpush1.bf16.msra.mxu0 %v2106
    %2291 = vmatprep.subr.bf16.mxu0 0
    %2292 = vmatpush1.bf16.msra.mxu0 0
    %2293 = vmatprep.subr.bf16.mxu0 0
    %2294 = vmatpush1.bf16.msra.mxu0 0
    %2295 = vmatprep.subr.bf16.mxu0 0
    %2296 = vmatpush1.bf16.msra.mxu0 0
    %2297 = vmatprep.subr.bf16.mxu0 0
    %2298 = vmatpush1.bf16.msra.mxu0 0
    %2299 = vmatprep.subr.bf16.mxu0 0
    %2300 = vmatpush1.bf16.msra.mxu0 0
    %2301 = vmatprep.subr.bf16.mxu0 0
    %2302 = vmatpush1.bf16.msra.mxu0 0
    %2303 = vmatprep.subr.bf16.mxu0 0
    %2304 = vmatpush1.bf16.msra.mxu0 0
    %2305 = vmatprep.subr.bf16.mxu0 0
    %2306 = vmatpush1.bf16.msra.mxu0 0
    %2307 = vmatprep.subr.bf16.mxu0 0
    %2308 = vmatpush1.bf16.msra.mxu0 0
    %2309 = vmatprep.subr.bf16.mxu0 0
    %2310 = vmatpush1.bf16.msra.mxu0 0
    %2311 = vmatprep.subr.bf16.mxu0 0
    %2312 = vmatpush1.bf16.msra.mxu0 0
    %2313 = vmatprep.subr.bf16.mxu0 0
    %2314 = vmatpush1.bf16.msra.mxu0 0
    %2315 = vmatprep.subr.bf16.mxu0 0
    %2316 = vmatpush1.bf16.msra.mxu0 0
    %2317 = vmatprep.subr.bf16.mxu0 0
    %2318 = vmatpush1.bf16.msra.mxu0 0
    %2319 = vmatprep.mubr.bf16.mxu0 0
    %2320 = vmatmul.mubr.bf16.gmra.mrb[0].mxu0 %v2282
    %v2321 = vpop.f32.mrb[0].mxu0
    %v2322 = vadd.f32 0.0, %v2321
    %v2323 = vpop.f32.mrb[0].mxu0
    %v2324 = vpop.f32.mrb[0].mxu0
    %v2325 = vadd.f32 0.0, %v2324
    %v2326 = vpop.f32.mrb[0].mxu0
    %2327 = vmatprep.mubr.bf16.mxu0 0
    %2328 = vmatmul.mubr.bf16.gmra.mrb[0].mxu0 %v2285
    %v2329 = vpop.f32.mrb[0].mxu0
    %v2330 = vadd.f32 0.0, %v2329
    %v2331 = vpop.f32.mrb[0].mxu0
    %v2332 = vpop.f32.mrb[0].mxu0
    %v2333 = vadd.f32 0.0, %v2332
    %v2334 = vpop.f32.mrb[0].mxu0
    %2335 = vdwg.mxu0
    %v2336 = vrcp.pop %v2269
    %v2337 = vrcp.pop %v2272
    %v2338 = vrcp.pop %v2275
    %v2339 = vrcp.pop %v2278
    %v2340 = vmul.f32 %v2322, %v2336
    %v2341 = vmul.f32 %v2325, %v2337
    %v2342 = vmul.f32 %v2330, %v2338
    %v2343 = vmul.f32 %v2333, %v2339
    %v2344 = vpack.c.bf16 %v2341, %v2340
    %v2345 = vpack.c.bf16 %v2343, %v2342
    %2348 = vrot.lane.b32.xlu0 %v2344, 48
    %v2349 = vpop.permute.xlu0 %2348
    %2350 = vrot.lane.b32.xlu0 %v2345, 48
    %v2351 = vpop.permute.xlu0 %2350
    %2354 = vst.msk [vmem:[#allocation2] sm:$0xff] %vm895, %v2349
    %2355 = vst.msk [vmem:[#allocation2 + $0x8] sm:$0xff] %vm895, %v2351
    %v2356 = vld [vmem:[#allocation2] sm:$0xff]
    %v2357 = vld [vmem:[#allocation2 + $0x8] sm:$0xff]
    %s2358 = scalar_lea.vmem %s2, 32
    %v2359 = vld [vmem:[%s2358] sm:$0xf]
    %v2360 = vld [vmem:[%s2358 + $0x4] sm:$0xf]
    %v2361 = vld [vmem:[%s2358 + $0x8] sm:$0xf]
    %v2362 = vld [vmem:[%s2358 + $0xc] sm:$0xf]
    %v2363 = vld [vmem:[%s2358 + $0x10] sm:$0xf]
    %v2364 = vld [vmem:[%s2358 + $0x14] sm:$0xf]
    %v2365 = vld [vmem:[%s2358 + $0x18] sm:$0xf]
    %v2366 = vld [vmem:[%s2358 + $0x1c] sm:$0xf]
    %v2375 = vunpack.c.l.b16 %v2359
    %v2376 = vunpack.c.l.b16 %v2360
    %v2377 = vunpack.c.l.b16 %v2361
    %v2378 = vunpack.c.l.b16 %v2362
    %v2379 = vunpack.c.l.b16 %v2363
    %v2380 = vunpack.c.l.b16 %v2364
    %v2381 = vunpack.c.l.b16 %v2365
    %v2382 = vunpack.c.l.b16 %v2366
    %v2383 = vpack.c.b16 %v2376, %v2375
    %v2384 = vpack.c.b16 %v2378, %v2377
    %v2385 = vpack.c.b16 %v2380, %v2379
    %v2386 = vpack.c.b16 %v2382, %v2381
    %v2392 = vsel %vm62, %v2356, 0
    %v2395 = vsel %vm62, %v2357, 0
    %2397 = vmatprep.subr.bf16.mxu0 0
    %2398 = vmatpush1.bf16.msra.mxu0 %v2383
    %2399 = vmatprep.subr.bf16.mxu0 0
    %2400 = vmatpush1.bf16.msra.mxu0 %v2384
    %2401 = vmatprep.subr.bf16.mxu0 0
    %2402 = vmatpush1.bf16.msra.mxu0 %v2385
    %2403 = vmatprep.subr.bf16.mxu0 0
    %2404 = vmatpush1.bf16.msra.mxu0 %v2386
    %2405 = vmatprep.subr.bf16.mxu0 0
    %2406 = vmatpush1.bf16.msra.mxu0 0
    %2407 = vmatprep.subr.bf16.mxu0 0
    %2408 = vmatpush1.bf16.msra.mxu0 0
    %2409 = vmatprep.subr.bf16.mxu0 0
    %2410 = vmatpush1.bf16.msra.mxu0 0
    %2411 = vmatprep.subr.bf16.mxu0 0
    %2412 = vmatpush1.bf16.msra.mxu0 0
    %2413 = vmatprep.subr.bf16.mxu0 0
    %2414 = vmatpush1.bf16.msra.mxu0 0
    %2415 = vmatprep.subr.bf16.mxu0 0
    %2416 = vmatpush1.bf16.msra.mxu0 0
    %2417 = vmatprep.subr.bf16.mxu0 0
    %2418 = vmatpush1.bf16.msra.mxu0 0
    %2419 = vmatprep.subr.bf16.mxu0 0
    %2420 = vmatpush1.bf16.msra.mxu0 0
    %2421 = vmatprep.subr.bf16.mxu0 0
    %2422 = vmatpush1.bf16.msra.mxu0 0
    %2423 = vmatprep.subr.bf16.mxu0 0
    %2424 = vmatpush1.bf16.msra.mxu0 0
    %2425 = vmatprep.subr.bf16.mxu0 0
    %2426 = vmatpush1.bf16.msra.mxu0 0
    %2427 = vmatprep.subr.bf16.mxu0 0
    %2428 = vmatpush1.bf16.msra.mxu0 0
    %2429 = vmatprep.mubr.bf16.mxu0 0
    %2430 = vmatmul.mubr.bf16.gmra.mrb[0].mxu0 %v2392
    %v2431 = vpop.f32.mrb[0].mxu0
    %v2432 = vadd.f32 0.0, %v2431
    %v2433 = vpop.f32.mrb[0].mxu0
    %v2434 = vpop.f32.mrb[0].mxu0
    %v2435 = vadd.f32 0.0, %v2434
    %v2436 = vpop.f32.mrb[0].mxu0
    %2437 = vmatprep.mubr.bf16.mxu0 0
    %2438 = vmatmul.mubr.bf16.gmra.mrb[0].mxu0 %v2395
    %v2439 = vpop.f32.mrb[0].mxu0
    %v2440 = vadd.f32 0.0, %v2439
    %v2441 = vpop.f32.mrb[0].mxu0
    %v2442 = vpop.f32.mrb[0].mxu0
    %v2443 = vadd.f32 0.0, %v2442
    %v2444 = vpop.f32.mrb[0].mxu0
    %2445 = vdwg.mxu0
    %v2446 = vpack.c.bf16 %v2435, %v2432
    %v2447 = vpack.c.bf16 %v2443, %v2440
    %v2450 = vunpack.c.l.b16 %v2446
    %v2451 = vunpack.c.h.b16 %v2446
    %v2452 = vunpack.c.l.b16 %v2447
    %v2453 = vunpack.c.h.b16 %v2447
    %v2454 = vpack.c.b16 %v2450, %v2450
    %v2455 = vpack.c.b16 %v2451, %v2451
    %v2456 = vpack.c.b16 %v2452, %v2452
    %v2457 = vpack.c.b16 %v2453, %v2453
    %v2462 = vadd.bf16 %v1514, %v2454
    %v2463 = vadd.bf16 %v1515, %v2455
    %v2464 = vadd.bf16 %v1516, %v2456
    %v2465 = vadd.bf16 %v1517, %v2457
    %v2466 = vunpack.c.l.bf16 %v2462
    %v2467 = vunpack.c.l.bf16 %v2463
    %v2468 = vunpack.c.l.bf16 %v2464
    %v2469 = vunpack.c.l.bf16 %v2465
    %v2470 = vmul.f32 %v2466, %v2466
    %v2471 = vmul.f32 %v2467, %v2467
    %v2472 = vmul.f32 %v2468, %v2468
    %v2473 = vmul.f32 %v2469, %v2469
    %v2474 = vsel %vm62, %v2470, 0.0
    %2475 = vadd.xlane.f32.xlu0 %v2474
    %v2476 = vpop.xlane.xlu0 %2475
    %v2477 = vsel %vm62, %v2471, 0.0
    %2478 = vadd.xlane.f32.xlu0 %v2477
    %v2479 = vpop.xlane.xlu0 %2478
    %v2480 = vsel %vm62, %v2472, 0.0
    %2481 = vadd.xlane.f32.xlu0 %v2480
    %v2482 = vpop.xlane.xlu0 %2481
    %v2483 = vsel %vm62, %v2473, 0.0
    %2484 = vadd.xlane.f32.xlu0 %v2483
    %v2485 = vpop.xlane.xlu0 %2484
    %v2486 = vmul.f32 %v2476, %v75
    %v2487 = vmul.f32 %v2479, %v75
    %v2488 = vmul.f32 %v2482, %v75
    %v2489 = vmul.f32 %v2485, %v75
    %v2490 = vadd.f32 %v2486, 1e-05
    %v2491 = vadd.f32 %v2487, 1e-05
    %v2492 = vadd.f32 %v2488, 1e-05
    %v2493 = vadd.f32 %v2489, 1e-05
    %v2494 = vrsqrt.pop %v2490
    %v2495 = vrsqrt.pop %v2491
    %v2496 = vrsqrt.pop %v2492
    %v2497 = vrsqrt.pop %v2493
    %v2498 = vmul.f32 %v2466, %v2494
    %v2499 = vmul.f32 %v2467, %v2495
    %v2500 = vmul.f32 %v2468, %v2496
    %v2501 = vmul.f32 %v2469, %v2497
    %v2502 = vpack.c.bf16 %v2499, %v2498
    %v2503 = vpack.c.bf16 %v2501, %v2500
    %s2504 = scalar_lea.vmem %s3, 128
    %v2505 = vld [vmem:[%s2504] sm:$0xff]
    %v2506 = vld [vmem:[%s2504 + $0x8] sm:$0xff]
    %v2507 = vld [vmem:[%s2504 + $0x10] sm:$0xff]
    %v2508 = vld [vmem:[%s2504 + $0x18] sm:$0xff]
    %v2509 = vld [vmem:[%s2504 + $0x20] sm:$0xff]
    %v2510 = vld [vmem:[%s2504 + $0x28] sm:$0xff]
    %v2511 = vld [vmem:[%s2504 + $0x30] sm:$0xff]
    %v2512 = vld [vmem:[%s2504 + $0x38] sm:$0xff]
    %v2513 = vld [vmem:[%s2504 + $0x40] sm:$0xff]
    %v2514 = vld [vmem:[%s2504 + $0x48] sm:$0xff]
    %v2515 = vld [vmem:[%s2504 + $0x50] sm:$0xff]
    %v2516 = vld [vmem:[%s2504 + $0x58] sm:$0xff]
    %v2517 = vld [vmem:[%s2504 + $0x60] sm:$0xff]
    %v2518 = vld [vmem:[%s2504 + $0x68] sm:$0xff]
    %v2519 = vld [vmem:[%s2504 + $0x70] sm:$0xff]
    %v2520 = vld [vmem:[%s2504 + $0x78] sm:$0xff]
    %v2537 = vunpack.c.l.b16 %v2505
    %v2538 = vunpack.c.h.b16 %v2505
    %v2539 = vunpack.c.l.b16 %v2506
    %v2540 = vunpack.c.h.b16 %v2506
    %v2541 = vunpack.c.l.b16 %v2507
    %v2542 = vunpack.c.h.b16 %v2507
    %v2543 = vunpack.c.l.b16 %v2508
    %v2544 = vunpack.c.h.b16 %v2508
    %v2545 = vunpack.c.l.b16 %v2509
    %v2546 = vunpack.c.h.b16 %v2509
    %v2547 = vunpack.c.l.b16 %v2510
    %v2548 = vunpack.c.h.b16 %v2510
    %v2549 = vunpack.c.l.b16 %v2511
    %v2550 = vunpack.c.h.b16 %v2511
    %v2551 = vunpack.c.l.b16 %v2512
    %v2552 = vunpack.c.h.b16 %v2512
    %v2553 = vunpack.c.l.b16 %v2513
    %v2554 = vunpack.c.h.b16 %v2513
    %v2555 = vunpack.c.l.b16 %v2514
    %v2556 = vunpack.c.h.b16 %v2514
    %v2557 = vunpack.c.l.b16 %v2515
    %v2558 = vunpack.c.h.b16 %v2515
    %v2559 = vunpack.c.l.b16 %v2516
    %v2560 = vunpack.c.h.b16 %v2516
    %v2561 = vunpack.c.l.b16 %v2517
    %v2562 = vunpack.c.h.b16 %v2517
    %v2563 = vunpack.c.l.b16 %v2518
    %v2564 = vunpack.c.h.b16 %v2518
    %v2565 = vunpack.c.l.b16 %v2519
    %v2566 = vunpack.c.h.b16 %v2519
    %v2567 = vunpack.c.l.b16 %v2520
    %v2568 = vunpack.c.h.b16 %v2520
    %v2569 = vpack.c.b16 %v2541, %v2537
    %v2570 = vpack.c.b16 %v2542, %v2538
    %v2571 = vpack.c.b16 %v2543, %v2539
    %v2572 = vpack.c.b16 %v2544, %v2540
    %v2573 = vpack.c.b16 %v2549, %v2545
    %v2574 = vpack.c.b16 %v2550, %v2546
    %v2575 = vpack.c.b16 %v2551, %v2547
    %v2576 = vpack.c.b16 %v2552, %v2548
    %v2577 = vpack.c.b16 %v2557, %v2553
    %v2578 = vpack.c.b16 %v2558, %v2554
    %v2579 = vpack.c.b16 %v2559, %v2555
    %v2580 = vpack.c.b16 %v2560, %v2556
    %v2581 = vpack.c.b16 %v2565, %v2561
    %v2582 = vpack.c.b16 %v2566, %v2562
    %v2583 = vpack.c.b16 %v2567, %v2563
    %v2584 = vpack.c.b16 %v2568, %v2564
    %v2602 = vsel %vm62, %v2502, 0
    %v2605 = vsel %vm62, %v2503, 0
    %2607 = vmatprep.subr.bf16.mxu0 %v2570
    %2608 = vmatpush1.bf16.msra.mxu0 %v2569
    %2609 = vmatprep.subr.bf16.mxu0 %v2574
    %2610 = vmatpush1.bf16.msra.mxu0 %v2573
    %2611 = vmatprep.subr.bf16.mxu0 %v2578
    %2612 = vmatpush1.bf16.msra.mxu0 %v2577
    %2613 = vmatprep.subr.bf16.mxu0 %v2582
    %2614 = vmatpush1.bf16.msra.mxu0 %v2581
    %2615 = vmatprep.subr.bf16.mxu0 0
    %2616 = vmatpush1.bf16.msra.mxu0 0
    %2617 = vmatprep.subr.bf16.mxu0 0
    %2618 = vmatpush1.bf16.msra.mxu0 0
    %2619 = vmatprep.subr.bf16.mxu0 0
    %2620 = vmatpush1.bf16.msra.mxu0 0
    %2621 = vmatprep.subr.bf16.mxu0 0
    %2622 = vmatpush1.bf16.msra.mxu0 0
    %2623 = vmatprep.subr.bf16.mxu0 0
    %2624 = vmatpush1.bf16.msra.mxu0 0
    %2625 = vmatprep.subr.bf16.mxu0 0
    %2626 = vmatpush1.bf16.msra.mxu0 0
    %2627 = vmatprep.subr.bf16.mxu0 0
    %2628 = vmatpush1.bf16.msra.mxu0 0
    %2629 = vmatprep.subr.bf16.mxu0 0
    %2630 = vmatpush1.bf16.msra.mxu0 0
    %2631 = vmatprep.subr.bf16.mxu0 0
    %2632 = vmatpush1.bf16.msra.mxu0 0
    %2633 = vmatprep.subr.bf16.mxu0 0
    %2634 = vmatpush1.bf16.msra.mxu0 0
    %2635 = vmatprep.subr.bf16.mxu0 0
    %2636 = vmatpush1.bf16.msra.mxu0 0
    %2637 = vmatprep.subr.bf16.mxu0 0
    %2638 = vmatpush1.bf16.msra.mxu0 0
    %2639 = vmatprep.mubr.bf16.mxu0 0
    %2640 = vmatmul.mubr.bf16.gmra.mrb[0].mxu0 %v2602
    %v2641 = vpop.f32.mrb[0].mxu0
    %v2642 = vadd.f32 0.0, %v2641
    %v2643 = vpop.f32.mrb[0].mxu0
    %v2644 = vadd.f32 0.0, %v2643
    %v2645 = vpop.f32.mrb[0].mxu0
    %v2646 = vadd.f32 0.0, %v2645
    %v2647 = vpop.f32.mrb[0].mxu0
    %v2648 = vadd.f32 0.0, %v2647
    %2649 = vmatprep.mubr.bf16.mxu0 0
    %2650 = vmatmul.mubr.bf16.gmra.mrb[0].mxu0 %v2605
    %v2651 = vpop.f32.mrb[0].mxu0
    %v2652 = vadd.f32 0.0, %v2651
    %v2653 = vpop.f32.mrb[0].mxu0
    %v2654 = vadd.f32 0.0, %v2653
    %v2655 = vpop.f32.mrb[0].mxu0
    %v2656 = vadd.f32 0.0, %v2655
    %v2657 = vpop.f32.mrb[0].mxu0
    %v2658 = vadd.f32 0.0, %v2657
    %2659 = vdwg.mxu0
    %2660 = vmatprep.subr.bf16.mxu0 %v2572
    %2661 = vmatpush1.bf16.msra.mxu0 %v2571
    %2662 = vmatprep.subr.bf16.mxu0 %v2576
    %2663 = vmatpush1.bf16.msra.mxu0 %v2575
    %2664 = vmatprep.subr.bf16.mxu0 %v2580
    %2665 = vmatpush1.bf16.msra.mxu0 %v2579
    %2666 = vmatprep.subr.bf16.mxu0 %v2584
    %2667 = vmatpush1.bf16.msra.mxu0 %v2583
    %2668 = vmatprep.subr.bf16.mxu0 0
    %2669 = vmatpush1.bf16.msra.mxu0 0
    %2670 = vmatprep.subr.bf16.mxu0 0
    %2671 = vmatpush1.bf16.msra.mxu0 0
    %2672 = vmatprep.subr.bf16.mxu0 0
    %2673 = vmatpush1.bf16.msra.mxu0 0
    %2674 = vmatprep.subr.bf16.mxu0 0
    %2675 = vmatpush1.bf16.msra.mxu0 0
    %2676 = vmatprep.subr.bf16.mxu0 0
    %2677 = vmatpush1.bf16.msra.mxu0 0
    %2678 = vmatprep.subr.bf16.mxu0 0
    %2679 = vmatpush1.bf16.msra.mxu0 0
    %2680 = vmatprep.subr.bf16.mxu0 0
    %2681 = vmatpush1.bf16.msra.mxu0 0
    %2682 = vmatprep.subr.bf16.mxu0 0
    %2683 = vmatpush1.bf16.msra.mxu0 0
    %2684 = vmatprep.subr.bf16.mxu0 0
    %2685 = vmatpush1.bf16.msra.mxu0 0
    %2686 = vmatprep.subr.bf16.mxu0 0
    %2687 = vmatpush1.bf16.msra.mxu0 0
    %2688 = vmatprep.subr.bf16.mxu0 0
    %2689 = vmatpush1.bf16.msra.mxu0 0
    %2690 = vmatprep.subr.bf16.mxu0 0
    %2691 = vmatpush1.bf16.msra.mxu0 0
    %2692 = vmatprep.mubr.bf16.mxu0 0
    %2693 = vmatmul.mubr.bf16.gmra.mrb[0].mxu0 %v2602
    %v2694 = vpop.f32.mrb[0].mxu0
    %v2695 = vadd.f32 0.0, %v2694
    %v2696 = vpop.f32.mrb[0].mxu0
    %v2697 = vadd.f32 0.0, %v2696
    %v2698 = vpop.f32.mrb[0].mxu0
    %v2699 = vadd.f32 0.0, %v2698
    %v2700 = vpop.f32.mrb[0].mxu0
    %v2701 = vadd.f32 0.0, %v2700
    %2702 = vmatprep.mubr.bf16.mxu0 0
    %2703 = vmatmul.mubr.bf16.gmra.mrb[0].mxu0 %v2605
    %v2704 = vpop.f32.mrb[0].mxu0
    %v2705 = vadd.f32 0.0, %v2704
    %v2706 = vpop.f32.mrb[0].mxu0
    %v2707 = vadd.f32 0.0, %v2706
    %v2708 = vpop.f32.mrb[0].mxu0
    %v2709 = vadd.f32 0.0, %v2708
    %v2710 = vpop.f32.mrb[0].mxu0
    %v2711 = vadd.f32 0.0, %v2710
    %2712 = vdwg.mxu0
    %v2713 = vxor.u32 %v2642, 2147483648
    %v2714 = vxor.u32 %v2644, 2147483648
    %v2715 = vxor.u32 %v2646, 2147483648
    %v2716 = vxor.u32 %v2648, 2147483648
    %v2717 = vxor.u32 %v2652, 2147483648
    %v2718 = vxor.u32 %v2654, 2147483648
    %v2719 = vxor.u32 %v2656, 2147483648
    %v2720 = vxor.u32 %v2658, 2147483648
    %v2721 = vmul.f32 %v2713, 1.442695
    %v2722 = vpow.pop %v2721
    %v2723 = vmul.f32 %v2714, 1.442695
    %v2724 = vpow.pop %v2723
    %v2725 = vmul.f32 %v2715, 1.442695
    %v2726 = vpow.pop %v2725
    %v2727 = vmul.f32 %v2716, 1.442695
    %v2728 = vpow.pop %v2727
    %v2729 = vmul.f32 %v2717, 1.442695
    %v2730 = vpow.pop %v2729
    %v2731 = vmul.f32 %v2718, 1.442695
    %v2732 = vpow.pop %v2731
    %v2733 = vmul.f32 %v2719, 1.442695
    %v2734 = vpow.pop %v2733
    %v2735 = vmul.f32 %v2720, 1.442695
    %v2736 = vpow.pop %v2735
    %v2737 = vadd.f32 %v2722, 1.0
    %v2738 = vadd.f32 %v2724, 1.0
    %v2739 = vadd.f32 %v2726, 1.0
    %v2740 = vadd.f32 %v2728, 1.0
    %v2741 = vadd.f32 %v2730, 1.0
    %v2742 = vadd.f32 %v2732, 1.0
    %v2743 = vadd.f32 %v2734, 1.0
    %v2744 = vadd.f32 %v2736, 1.0
    %v2745 = vrcp.pop %v2737
    %v2746 = vmul.f32 1.0, %v2745
    %v2747 = vrcp.pop %v2738
    %v2748 = vmul.f32 1.0, %v2747
    %v2749 = vrcp.pop %v2739
    %v2750 = vmul.f32 1.0, %v2749
    %v2751 = vrcp.pop %v2740
    %v2752 = vmul.f32 1.0, %v2751
    %v2753 = vrcp.pop %v2741
    %v2754 = vmul.f32 1.0, %v2753
    %v2755 = vrcp.pop %v2742
    %v2756 = vmul.f32 1.0, %v2755
    %v2757 = vrcp.pop %v2743
    %v2758 = vmul.f32 1.0, %v2757
    %v2759 = vrcp.pop %v2744
    %v2760 = vmul.f32 1.0, %v2759
    %v2761 = vmul.f32 %v2642, %v2746
    %v2762 = vmul.f32 %v2644, %v2748
    %v2763 = vmul.f32 %v2646, %v2750
    %v2764 = vmul.f32 %v2648, %v2752
    %v2765 = vmul.f32 %v2652, %v2754
    %v2766 = vmul.f32 %v2654, %v2756
    %v2767 = vmul.f32 %v2656, %v2758
    %v2768 = vmul.f32 %v2658, %v2760
    %v2769 = vmul.f32 %v2761, %v2695
    %v2770 = vmul.f32 %v2762, %v2697
    %v2771 = vmul.f32 %v2763, %v2699
    %v2772 = vmul.f32 %v2764, %v2701
    %v2773 = vmul.f32 %v2765, %v2705
    %v2774 = vmul.f32 %v2766, %v2707
    %v2775 = vmul.f32 %v2767, %v2709
    %v2776 = vmul.f32 %v2768, %v2711
    %v2777 = vpack.c.bf16 %v2771, %v2769
    %v2778 = vpack.c.bf16 %v2772, %v2770
    %v2779 = vpack.c.bf16 %v2775, %v2773
    %v2780 = vpack.c.bf16 %v2776, %v2774
    %s2781 = scalar_lea.vmem %s4, 128
    %v2782 = vld [vmem:[%s2781] sm:$0xf]
    %v2783 = vld [vmem:[%s2781 + $0x4] sm:$0xf]
    %v2784 = vld [vmem:[%s2781 + $0x8] sm:$0xf]
    %v2785 = vld [vmem:[%s2781 + $0xc] sm:$0xf]
    %v2786 = vld [vmem:[%s2781 + $0x10] sm:$0xf]
    %v2787 = vld [vmem:[%s2781 + $0x14] sm:$0xf]
    %v2788 = vld [vmem:[%s2781 + $0x18] sm:$0xf]
    %v2789 = vld [vmem:[%s2781 + $0x1c] sm:$0xf]
    %v2790 = vld [vmem:[%s2781 + $0x20] sm:$0xf]
    %v2791 = vld [vmem:[%s2781 + $0x24] sm:$0xf]
    %v2792 = vld [vmem:[%s2781 + $0x28] sm:$0xf]
    %v2793 = vld [vmem:[%s2781 + $0x2c] sm:$0xf]
    %v2794 = vld [vmem:[%s2781 + $0x30] sm:$0xf]
    %v2795 = vld [vmem:[%s2781 + $0x34] sm:$0xf]
    %v2796 = vld [vmem:[%s2781 + $0x38] sm:$0xf]
    %v2797 = vld [vmem:[%s2781 + $0x3c] sm:$0xf]
    %v2798 = vld [vmem:[%s2781 + $0x40] sm:$0xf]
    %v2799 = vld [vmem:[%s2781 + $0x44] sm:$0xf]
    %v2800 = vld [vmem:[%s2781 + $0x48] sm:$0xf]
    %v2801 = vld [vmem:[%s2781 + $0x4c] sm:$0xf]
    %v2802 = vld [vmem:[%s2781 + $0x50] sm:$0xf]
    %v2803 = vld [vmem:[%s2781 + $0x54] sm:$0xf]
    %v2804 = vld [vmem:[%s2781 + $0x58] sm:$0xf]
    %v2805 = vld [vmem:[%s2781 + $0x5c] sm:$0xf]
    %v2806 = vld [vmem:[%s2781 + $0x60] sm:$0xf]
    %v2807 = vld [vmem:[%s2781 + $0x64] sm:$0xf]
    %v2808 = vld [vmem:[%s2781 + $0x68] sm:$0xf]
    %v2809 = vld [vmem:[%s2781 + $0x6c] sm:$0xf]
    %v2810 = vld [vmem:[%s2781 + $0x70] sm:$0xf]
    %v2811 = vld [vmem:[%s2781 + $0x74] sm:$0xf]
    %v2812 = vld [vmem:[%s2781 + $0x78] sm:$0xf]
    %v2813 = vld [vmem:[%s2781 + $0x7c] sm:$0xf]
    %v2846 = vunpack.c.l.b16 %v2782
    %v2847 = vunpack.c.l.b16 %v2783
    %v2848 = vunpack.c.l.b16 %v2784
    %v2849 = vunpack.c.l.b16 %v2785
    %v2850 = vunpack.c.l.b16 %v2786
    %v2851 = vunpack.c.l.b16 %v2787
    %v2852 = vunpack.c.l.b16 %v2788
    %v2853 = vunpack.c.l.b16 %v2789
    %v2854 = vunpack.c.l.b16 %v2790
    %v2855 = vunpack.c.l.b16 %v2791
    %v2856 = vunpack.c.l.b16 %v2792
    %v2857 = vunpack.c.l.b16 %v2793
    %v2858 = vunpack.c.l.b16 %v2794
    %v2859 = vunpack.c.l.b16 %v2795
    %v2860 = vunpack.c.l.b16 %v2796
    %v2861 = vunpack.c.l.b16 %v2797
    %v2862 = vunpack.c.l.b16 %v2798
    %v2863 = vunpack.c.l.b16 %v2799
    %v2864 = vunpack.c.l.b16 %v2800
    %v2865 = vunpack.c.l.b16 %v2801
    %v2866 = vunpack.c.l.b16 %v2802
    %v2867 = vunpack.c.l.b16 %v2803
    %v2868 = vunpack.c.l.b16 %v2804
    %v2869 = vunpack.c.l.b16 %v2805
    %v2870 = vunpack.c.l.b16 %v2806
    %v2871 = vunpack.c.l.b16 %v2807
    %v2872 = vunpack.c.l.b16 %v2808
    %v2873 = vunpack.c.l.b16 %v2809
    %v2874 = vunpack.c.l.b16 %v2810
    %v2875 = vunpack.c.l.b16 %v2811
    %v2876 = vunpack.c.l.b16 %v2812
    %v2877 = vunpack.c.l.b16 %v2813
    %v2878 = vpack.c.b16 %v2847, %v2846
    %v2879 = vpack.c.b16 %v2849, %v2848
    %v2880 = vpack.c.b16 %v2851, %v2850
    %v2881 = vpack.c.b16 %v2853, %v2852
    %v2882 = vpack.c.b16 %v2855, %v2854
    %v2883 = vpack.c.b16 %v2857, %v2856
    %v2884 = vpack.c.b16 %v2859, %v2858
    %v2885 = vpack.c.b16 %v2861, %v2860
    %v2886 = vpack.c.b16 %v2863, %v2862
    %v2887 = vpack.c.b16 %v2865, %v2864
    %v2888 = vpack.c.b16 %v2867, %v2866
    %v2889 = vpack.c.b16 %v2869, %v2868
    %v2890 = vpack.c.b16 %v2871, %v2870
    %v2891 = vpack.c.b16 %v2873, %v2872
    %v2892 = vpack.c.b16 %v2875, %v2874
    %v2893 = vpack.c.b16 %v2877, %v2876
    %2910 = vmatprep.subr.bf16.mxu0 0
    %2911 = vmatpush1.bf16.msra.mxu0 %v2878
    %2912 = vmatprep.subr.bf16.mxu0 0
    %2913 = vmatpush1.bf16.msra.mxu0 %v2879
    %2914 = vmatprep.subr.bf16.mxu0 0
    %2915 = vmatpush1.bf16.msra.mxu0 %v2880
    %2916 = vmatprep.subr.bf16.mxu0 0
    %2917 = vmatpush1.bf16.msra.mxu0 %v2881
    %2918 = vmatprep.subr.bf16.mxu0 0
    %2919 = vmatpush1.bf16.msra.mxu0 %v2882
    %2920 = vmatprep.subr.bf16.mxu0 0
    %2921 = vmatpush1.bf16.msra.mxu0 %v2883
    %2922 = vmatprep.subr.bf16.mxu0 0
    %2923 = vmatpush1.bf16.msra.mxu0 %v2884
    %2924 = vmatprep.subr.bf16.mxu0 0
    %2925 = vmatpush1.bf16.msra.mxu0 %v2885
    %2926 = vmatprep.subr.bf16.mxu0 0
    %2927 = vmatpush1.bf16.msra.mxu0 %v2886
    %2928 = vmatprep.subr.bf16.mxu0 0
    %2929 = vmatpush1.bf16.msra.mxu0 %v2887
    %2930 = vmatprep.subr.bf16.mxu0 0
    %2931 = vmatpush1.bf16.msra.mxu0 %v2888
    %2932 = vmatprep.subr.bf16.mxu0 0
    %2933 = vmatpush1.bf16.msra.mxu0 %v2889
    %2934 = vmatprep.subr.bf16.mxu0 0
    %2935 = vmatpush1.bf16.msra.mxu0 %v2890
    %2936 = vmatprep.subr.bf16.mxu0 0
    %2937 = vmatpush1.bf16.msra.mxu0 %v2891
    %2938 = vmatprep.subr.bf16.mxu0 0
    %2939 = vmatpush1.bf16.msra.mxu0 %v2892
    %2940 = vmatprep.subr.bf16.mxu0 0
    %2941 = vmatpush1.bf16.msra.mxu0 %v2893
    %2942 = vmatprep.mubr.bf16.mxu0 %v2778
    %2943 = vmatmul.mubr.bf16.gmra.mrb[0].mxu0 %v2777
    %v2944 = vpop.f32.mrb[0].mxu0
    %v2945 = vadd.f32 0.0, %v2944
    %v2946 = vpop.f32.mrb[0].mxu0
    %v2947 = vpop.f32.mrb[0].mxu0
    %v2948 = vadd.f32 0.0, %v2947
    %v2949 = vpop.f32.mrb[0].mxu0
    %2950 = vmatprep.mubr.bf16.mxu0 %v2780
    %2951 = vmatmul.mubr.bf16.gmra.mrb[0].mxu0 %v2779
    %v2952 = vpop.f32.mrb[0].mxu0
    %v2953 = vadd.f32 0.0, %v2952
    %v2954 = vpop.f32.mrb[0].mxu0
    %v2955 = vpop.f32.mrb[0].mxu0
    %v2956 = vadd.f32 0.0, %v2955
    %v2957 = vpop.f32.mrb[0].mxu0
    %2958 = vdwg.mxu0
    %v2959 = vpack.c.bf16 %v2948, %v2945
    %v2960 = vpack.c.bf16 %v2956, %v2953
    %v2963 = vunpack.c.l.b16 %v2959
    %v2964 = vunpack.c.h.b16 %v2959
    %v2965 = vunpack.c.l.b16 %v2960
    %v2966 = vunpack.c.h.b16 %v2960
    %v2967 = vpack.c.b16 %v2963, %v2963
    %v2968 = vpack.c.b16 %v2964, %v2964
    %v2969 = vpack.c.b16 %v2965, %v2965
    %v2970 = vpack.c.b16 %v2966, %v2966
    %v2975 = vadd.bf16 %v2462, %v2967
    %v2976 = vadd.bf16 %v2463, %v2968
    %v2977 = vadd.bf16 %v2464, %v2969
    %v2978 = vadd.bf16 %v2465, %v2970
    %vm2979 = vcmask 519168
    %2980 = vst.msk [vmem:[#allocation3] sm:$0xf] %vm2979, %v2975
    %2981 = vst.msk [vmem:[#allocation3 + $0x4] sm:$0xf] %vm2979, %v2976
    %2982 = vst.msk [vmem:[#allocation3 + $0x8] sm:$0xf] %vm2979, %v2977
    %2983 = vst.msk [vmem:[#allocation3 + $0xc] sm:$0xf] %vm2979, %v2978
    // Predicated region
    $region22: #{step1_text_encoder_forward.1} parent=1 // pred_check
      _
    $region23: #{step1_text_encoder_forward.1} parent=1 // pred_check_branch
      %2985 = sbr.rel (0) target = $region25
    $region24: #{step1_text_encoder_forward.1} parent=1 // pred_region
      %s2987 = ssub.s32 256, 256
      %2988 = vsyncadd [#allocation4], %s2987
      %s2989 = sshll.u32 [#allocation3], 4
      %s2990 = int_to_ptr.vmem [resolvable:$true] %s2989
      %2995 = dma.vmem_to_hbm [thread:$0]  %s2990, 256, %s5, [#allocation4], 64, 64, 4
    $region25: #{step1_text_encoder_forward.1} parent=1 // pred_fallthru
      _
    // Predicated region
    $region26: #{step1_text_encoder_forward.1} parent=1 // pred_check
      _
    $region27: #{step1_text_encoder_forward.1} parent=1 // pred_check_branch
      %2997 = sbr.rel (0) target = $region29
    $region28: #{step1_text_encoder_forward.1} parent=1 // pred_region
      %2998 = dma.done [#allocation4], 256
    $region29: #{step1_text_encoder_forward.1} parent=1 // pred_fallthru
      _
    %2999 = vsyncpa [#allocation4], 1

</llo_original>
